<compile_context>
chip_gen: v7x
topology: tpu7x:2x2x1
jax: 0.10.0
libtpu: 0.0.40
codegen_flags: <defaults>
</compile_context>

<pallas_src>
import functools

import jax
import jax.numpy as jnp
from jax.experimental import pallas as pl
from jax.experimental.pallas import tpu as pltpu

N_CH = 50          # original Conv2d out_channels
C_PAD = 128        # lane-padded channel dim (zero-padded weights/bias)
KS = (3, 4, 5)     # conv heights


def _branch(x, w_ref, b_ref, k):
    """Conv2d(1, C, (k, F)) + global temporal max + bias + ReLU, one MXU matmul."""
    _, S, F = x.shape
    L = S - k + 1
    # im2col: slab[b, l, i*F + f] = x[b, l + i, f]  ->  single contraction of depth k*F.
    slab = jnp.concatenate([x[:, i:i + L, :] for i in range(k)], axis=-1)   # (TB,L,kF) bf16
    conv = jax.lax.dot_general(
        slab, w_ref[...],                                                   # (kF, C_PAD) bf16
        dimension_numbers=(((2,), (0,)), ((), ())),
        preferred_element_type=jnp.float32)                                 # (TB,L,C_PAD) f32
    m = jnp.max(conv, axis=1)                                               # (TB, C_PAD)
    # Per-channel bias: max(relu(x + b)) == relu(max(x) + b)  -> elementwise work / L.
    return jnp.maximum(m + b_ref[0], 0.0)                                   # f32


def textcnn_kernel(x_ref, w3_ref, b3_ref, w4_ref, b4_ref, w5_ref, b5_ref,
                   wf_ref, bf_ref, o_ref):
    x = x_ref[...]                                        # (TB, S, F) bf16
    p3 = _branch(x, w3_ref, b3_ref, 3)
    p4 = _branch(x, w4_ref, b4_ref, 4)
    p5 = _branch(x, w5_ref, b5_ref, 5)
    # Lane-axis concat (XLU) + one K=3*C_PAD FC matmul.
    feat = jnp.concatenate([p3, p4, p5], axis=-1).astype(jnp.bfloat16)      # (TB, 3*C_PAD)
    out = jnp.dot(feat, wf_ref[...], preferred_element_type=jnp.float32) + bf_ref[0]
    o_ref[...] = out.astype(o_ref.dtype)                                    # (TB, NCLS_PAD)


def _pack_params(params, n_classes):
    """Fold k into the contraction dim, zero-pad channels/classes to lane width, cast bf16."""
    F = params["w3"].shape[1]
    packed = {}
    for k in KS:
        w = params[f"w{k}"].reshape(k * F, N_CH)                    # (kF, C) — matches im2col
        w = jnp.pad(w, ((0, 0), (0, C_PAD - N_CH)))
        packed[f"w{k}"] = w.astype(jnp.bfloat16)                    # (kF, C_PAD)
        b = jnp.pad(params[f"b{k}"][0], (0, C_PAD - N_CH))
        packed[f"b{k}"] = b.reshape(1, C_PAD).astype(jnp.float32)   # (1, C_PAD)
    ncls_pad = ((n_classes + 127) // 128) * 128
    wf = jnp.zeros((3 * C_PAD, ncls_pad), jnp.float32)
    for j in range(3):
        wf = wf.at[j * C_PAD:j * C_PAD + N_CH, :n_classes].set(
            params["wf"][j * N_CH:(j + 1) * N_CH, :])
    packed["wf"] = wf.astype(jnp.bfloat16)                          # (3*C_PAD, NCLS_PAD)
    bf = jnp.zeros((1, ncls_pad), jnp.float32).at[0, :n_classes].set(params["bf"][0])
    packed["bf"] = bf                                               # (1, NCLS_PAD)
    return packed, ncls_pad


def _pick_batch_block(B, block_b):
    # Keep the output block's sublane dim aligned (multiple of 8) or equal to B.
    if block_b <= B and B % block_b == 0 and block_b % 8 == 0:
        return block_b
    return B


@functools.partial(jax.jit, static_argnames=("n_classes", "block_b"))
def textcnn_forward(x, params, *, n_classes, block_b=8):
    B, S, F = x.shape
    assert S >= max(KS), "sequence length must be >= largest conv height (5)"
    packed, ncls_pad = _pack_params(params, n_classes)
    x_bf = x.astype(jnp.bfloat16)                 # bf16 matmul operands, f32 accumulation
    TB = _pick_batch_block(B, block_b)
    grid = (B // TB,)

    const = lambda shape: pl.BlockSpec(shape, lambda b: (0,) * len(shape))  # resident weights
    out_pad = pl.pallas_call(
        textcnn_kernel,
        out_shape=jax.ShapeDtypeStruct((B, ncls_pad), jnp.float32),
        grid=grid,
        in_specs=[
            pl.BlockSpec((TB, S, F), lambda b: (b, 0, 0)),          # x: batch-tiled, pipelined
            const((3 * F, C_PAD)), const((1, C_PAD)),               # conv3 w/b (DMA'd once)
            const((4 * F, C_PAD)), const((1, C_PAD)),               # conv4 w/b
            const((5 * F, C_PAD)), const((1, C_PAD)),               # conv5 w/b
            const((3 * C_PAD, ncls_pad)), const((1, ncls_pad)),     # fc w/b
        ],
        out_specs=pl.BlockSpec((TB, ncls_pad), lambda b: (b, 0)),   # lane-dense output
        compiler_params=pltpu.CompilerParams(
            # batch axis sharded across TensorCores on v7x; tile TB keeps VMEM well
            # under v7x's 64 MiB even for large S/F.
            dimension_semantics=("parallel",)),
    )(x_bf, packed["w3"], packed["b3"], packed["w4"], packed["b4"],
      packed["w5"], packed["b5"], packed["wf"], packed["bf"])
    return out_pad[:, :n_classes]


def init_params(key, f_dim, n_classes, n_ch=N_CH):
    ks = jax.random.split(key, 8)

    def u(k, shape, fan_in):
        bound = 1.0 / jnp.sqrt(float(fan_in))
        return jax.random.uniform(k, shape, jnp.float32, -bound, bound)

    params = {}
    for i, kh in enumerate(KS):
        fan_in = kh * f_dim
        params[f"w{kh}"] = u(ks[2 * i], (kh, f_dim, n_ch), fan_in)       # (k, F, C)
        params[f"b{kh}"] = u(ks[2 * i + 1], (1, n_ch), fan_in)           # (1, C)
    params["wf"] = u(ks[6], (3 * n_ch, n_classes), 3 * n_ch)             # (3C, classes)
    params["bf"] = u(ks[7], (1, n_classes), 3 * n_ch)                    # (1, classes)
    return params


def textcnn_reference(x, params):
    # Pure-JAX f32 reference of the PyTorch forward.
    outs = []
    for kh in KS:
        w, b = params[f"w{kh}"], params[f"b{kh}"]
        L = x.shape[1] - kh + 1
        acc = sum(jnp.einsum("blf,fc->blc", x[:, i:i + L, :], w[i]) for i in range(kh))
        acc = jnp.maximum(acc + b[0], 0.0)
        outs.append(jnp.max(acc, axis=1))
    feat = jnp.concatenate(outs, axis=-1)
    return feat @ params["wf"] + params["bf"][0]


if __name__ == "__main__":
    B, S, F_DIM, N_CLASSES = 16, 16, 32, 1     # small shapes; grid = (2,) batch tiles of 8

    key = jax.random.PRNGKey(0)
    kx, kp = jax.random.split(key)
    x = jax.random.normal(kx, (B, S, F_DIM), jnp.float32)
    params = init_params(kp, F_DIM, N_CLASSES)

    out = textcnn_forward(x, params, n_classes=N_CLASSES)
    out = jax.block_until_ready(out)

    ref = textcnn_reference(x, params)
    assert out.shape == (B, N_CLASSES)
    # bf16 matmul operands (f32 accumulation) -> loosened tolerance vs. the f32 reference.
    assert jnp.allclose(out, ref, atol=3e-2, rtol=3e-2), (out, ref)

    print("KERNEL_OK")
</pallas_src>

<mosaic_0001>
module attributes {stable_mosaic.version = 11 : i64} {
  func.func @textcnn_kernel(%arg0: i32, %arg1: memref<8x16x32xbf16, #tpu.memory_space<vmem>>, %arg2: memref<96x128xbf16, #tpu.memory_space<vmem>>, %arg3: memref<1x128xf32, #tpu.memory_space<vmem>>, %arg4: memref<128x128xbf16, #tpu.memory_space<vmem>>, %arg5: memref<1x128xf32, #tpu.memory_space<vmem>>, %arg6: memref<160x128xbf16, #tpu.memory_space<vmem>>, %arg7: memref<1x128xf32, #tpu.memory_space<vmem>>, %arg8: memref<384x128xbf16, #tpu.memory_space<vmem>>, %arg9: memref<1x128xf32, #tpu.memory_space<vmem>>, %arg10: memref<8x128xf32, #tpu.memory_space<vmem>>) attributes {dimension_semantics = [#tpu.dimension_semantics<parallel>], iteration_bounds = array<i64: 2>, scalar_prefetch = 0 : i64, scratch_operands = 0 : i64, tpu.core_type = #tpu.core_type<tc>, window_params = [{transform_indices = @transform_0, window_bounds = array<i64: 8, 16, 32>}, {pipeline_mode = #tpu.pipeline_mode<synchronous>, transform_indices = @transform_1, window_bounds = array<i64: 96, 128>}, {pipeline_mode = #tpu.pipeline_mode<synchronous>, transform_indices = @transform_2, window_bounds = array<i64: 1, 128>}, {pipeline_mode = #tpu.pipeline_mode<synchronous>, transform_indices = @transform_3, window_bounds = array<i64: 128, 128>}, {pipeline_mode = #tpu.pipeline_mode<synchronous>, transform_indices = @transform_4, window_bounds = array<i64: 1, 128>}, {pipeline_mode = #tpu.pipeline_mode<synchronous>, transform_indices = @transform_5, window_bounds = array<i64: 160, 128>}, {pipeline_mode = #tpu.pipeline_mode<synchronous>, transform_indices = @transform_6, window_bounds = array<i64: 1, 128>}, {pipeline_mode = #tpu.pipeline_mode<synchronous>, transform_indices = @transform_7, window_bounds = array<i64: 384, 128>}, {pipeline_mode = #tpu.pipeline_mode<synchronous>, transform_indices = @transform_8, window_bounds = array<i64: 1, 128>}, {transform_indices = @transform_9, window_bounds = array<i64: 8, 128>}]} {
    %c0 = arith.constant 0 : index
    %c0_0 = arith.constant 0 : index
    %c0_1 = arith.constant 0 : index
    %0 = vector.load %arg1[%c0, %c0_0, %c0_1] : memref<8x16x32xbf16, #tpu.memory_space<vmem>>, vector<8x16x32xbf16>
    %1 = vector.extract_strided_slice %0 {offsets = [0, 0, 0], sizes = [8, 14, 32], strides = [1, 1, 1]} : vector<8x16x32xbf16> to vector<8x14x32xbf16>
    %2 = vector.extract_strided_slice %0 {offsets = [0, 1, 0], sizes = [8, 14, 32], strides = [1, 1, 1]} : vector<8x16x32xbf16> to vector<8x14x32xbf16>
    %3 = vector.extract_strided_slice %0 {offsets = [0, 2, 0], sizes = [8, 14, 32], strides = [1, 1, 1]} : vector<8x16x32xbf16> to vector<8x14x32xbf16>
    %4 = tpu.concatenate %1, %2, %3 in 2 : vector<8x14x32xbf16>, vector<8x14x32xbf16>, vector<8x14x32xbf16> -> vector<8x14x96xbf16>
    %c0_2 = arith.constant 0 : index
    %c0_3 = arith.constant 0 : index
    %5 = vector.load %arg2[%c0_2, %c0_3] : memref<96x128xbf16, #tpu.memory_space<vmem>>, vector<96x128xbf16>
    %cst = arith.constant dense<0.000000e+00> : vector<8x14x128xf32>
    %6 = tpu.matmul %4, %5, %cst {dimension_numbers = #tpu.dot_dimension_numbers<[2], [0], [0, 1], [1], [0, 0, 0, 1, 1, 1], [], []>} : vector<8x14x96xbf16>, vector<96x128xbf16>, vector<8x14x128xf32> -> vector<8x14x128xf32>
    %cst_4 = arith.constant dense<0xFF800000> : vector<8x128xf32>
    %7 = vector.multi_reduction <maximumf>, %6, %cst_4 [1] : vector<8x14x128xf32> to vector<8x128xf32>
    %c0_5 = arith.constant 0 : index
    %c0_6 = arith.constant 0 : index
    %8 = vector.load %arg3[%c0_5, %c0_6] : memref<1x128xf32, #tpu.memory_space<vmem>>, vector<1x128xf32>
    %9 = vector.shape_cast %8 : vector<1x128xf32> to vector<128xf32>
    %10 = vector.shape_cast %9 : vector<128xf32> to vector<1x128xf32>
    %11 = vector.broadcast %10 : vector<1x128xf32> to vector<8x128xf32>
    %12 = arith.addf %7, %11 : vector<8x128xf32>
    %cst_7 = arith.constant 0.000000e+00 : f32
    %13 = vector.broadcast %cst_7 : f32 to vector<8x128xf32>
    %14 = arith.maximumf %12, %13 : vector<8x128xf32>
    %15 = vector.extract_strided_slice %0 {offsets = [0, 0, 0], sizes = [8, 13, 32], strides = [1, 1, 1]} : vector<8x16x32xbf16> to vector<8x13x32xbf16>
    %16 = vector.extract_strided_slice %0 {offsets = [0, 1, 0], sizes = [8, 13, 32], strides = [1, 1, 1]} : vector<8x16x32xbf16> to vector<8x13x32xbf16>
    %17 = vector.extract_strided_slice %0 {offsets = [0, 2, 0], sizes = [8, 13, 32], strides = [1, 1, 1]} : vector<8x16x32xbf16> to vector<8x13x32xbf16>
    %18 = vector.extract_strided_slice %0 {offsets = [0, 3, 0], sizes = [8, 13, 32], strides = [1, 1, 1]} : vector<8x16x32xbf16> to vector<8x13x32xbf16>
    %19 = tpu.concatenate %15, %16, %17, %18 in 2 : vector<8x13x32xbf16>, vector<8x13x32xbf16>, vector<8x13x32xbf16>, vector<8x13x32xbf16> -> vector<8x13x128xbf16>
    %c0_8 = arith.constant 0 : index
    %c0_9 = arith.constant 0 : index
    %20 = vector.load %arg4[%c0_8, %c0_9] : memref<128x128xbf16, #tpu.memory_space<vmem>>, vector<128x128xbf16>
    %cst_10 = arith.constant dense<0.000000e+00> : vector<8x13x128xf32>
    %21 = tpu.matmul %19, %20, %cst_10 {dimension_numbers = #tpu.dot_dimension_numbers<[2], [0], [0, 1], [1], [0, 0, 0, 1, 1, 1], [], []>} : vector<8x13x128xbf16>, vector<128x128xbf16>, vector<8x13x128xf32> -> vector<8x13x128xf32>
    %cst_11 = arith.constant dense<0xFF800000> : vector<8x128xf32>
    %22 = vector.multi_reduction <maximumf>, %21, %cst_11 [1] : vector<8x13x128xf32> to vector<8x128xf32>
    %c0_12 = arith.constant 0 : index
    %c0_13 = arith.constant 0 : index
    %23 = vector.load %arg5[%c0_12, %c0_13] : memref<1x128xf32, #tpu.memory_space<vmem>>, vector<1x128xf32>
    %24 = vector.shape_cast %23 : vector<1x128xf32> to vector<128xf32>
    %25 = vector.shape_cast %24 : vector<128xf32> to vector<1x128xf32>
    %26 = vector.broadcast %25 : vector<1x128xf32> to vector<8x128xf32>
    %27 = arith.addf %22, %26 : vector<8x128xf32>
    %cst_14 = arith.constant 0.000000e+00 : f32
    %28 = vector.broadcast %cst_14 : f32 to vector<8x128xf32>
    %29 = arith.maximumf %27, %28 : vector<8x128xf32>
    %30 = vector.extract_strided_slice %0 {offsets = [0, 0, 0], sizes = [8, 12, 32], strides = [1, 1, 1]} : vector<8x16x32xbf16> to vector<8x12x32xbf16>
    %31 = vector.extract_strided_slice %0 {offsets = [0, 1, 0], sizes = [8, 12, 32], strides = [1, 1, 1]} : vector<8x16x32xbf16> to vector<8x12x32xbf16>
    %32 = vector.extract_strided_slice %0 {offsets = [0, 2, 0], sizes = [8, 12, 32], strides = [1, 1, 1]} : vector<8x16x32xbf16> to vector<8x12x32xbf16>
    %33 = vector.extract_strided_slice %0 {offsets = [0, 3, 0], sizes = [8, 12, 32], strides = [1, 1, 1]} : vector<8x16x32xbf16> to vector<8x12x32xbf16>
    %34 = vector.extract_strided_slice %0 {offsets = [0, 4, 0], sizes = [8, 12, 32], strides = [1, 1, 1]} : vector<8x16x32xbf16> to vector<8x12x32xbf16>
    %35 = tpu.concatenate %30, %31, %32, %33, %34 in 2 : vector<8x12x32xbf16>, vector<8x12x32xbf16>, vector<8x12x32xbf16>, vector<8x12x32xbf16>, vector<8x12x32xbf16> -> vector<8x12x160xbf16>
    %c0_15 = arith.constant 0 : index
    %c0_16 = arith.constant 0 : index
    %36 = vector.load %arg6[%c0_15, %c0_16] : memref<160x128xbf16, #tpu.memory_space<vmem>>, vector<160x128xbf16>
    %cst_17 = arith.constant dense<0.000000e+00> : vector<8x12x128xf32>
    %37 = tpu.matmul %35, %36, %cst_17 {dimension_numbers = #tpu.dot_dimension_numbers<[2], [0], [0, 1], [1], [0, 0, 0, 1, 1, 1], [], []>} : vector<8x12x160xbf16>, vector<160x128xbf16>, vector<8x12x128xf32> -> vector<8x12x128xf32>
    %cst_18 = arith.constant dense<0xFF800000> : vector<8x128xf32>
    %38 = vector.multi_reduction <maximumf>, %37, %cst_18 [1] : vector<8x12x128xf32> to vector<8x128xf32>
    %c0_19 = arith.constant 0 : index
    %c0_20 = arith.constant 0 : index
    %39 = vector.load %arg7[%c0_19, %c0_20] : memref<1x128xf32, #tpu.memory_space<vmem>>, vector<1x128xf32>
    %40 = vector.shape_cast %39 : vector<1x128xf32> to vector<128xf32>
    %41 = vector.shape_cast %40 : vector<128xf32> to vector<1x128xf32>
    %42 = vector.broadcast %41 : vector<1x128xf32> to vector<8x128xf32>
    %43 = arith.addf %38, %42 : vector<8x128xf32>
    %cst_21 = arith.constant 0.000000e+00 : f32
    %44 = vector.broadcast %cst_21 : f32 to vector<8x128xf32>
    %45 = arith.maximumf %43, %44 : vector<8x128xf32>
    %46 = tpu.concatenate %14, %29, %45 in 1 : vector<8x128xf32>, vector<8x128xf32>, vector<8x128xf32> -> vector<8x384xf32>
    %47 = arith.truncf %46 : vector<8x384xf32> to vector<8x384xbf16>
    %c0_22 = arith.constant 0 : index
    %c0_23 = arith.constant 0 : index
    %48 = vector.load %arg8[%c0_22, %c0_23] : memref<384x128xbf16, #tpu.memory_space<vmem>>, vector<384x128xbf16>
    %cst_24 = arith.constant dense<0.000000e+00> : vector<8x128xf32>
    %49 = tpu.matmul %47, %48, %cst_24 {dimension_numbers = #tpu.dot_dimension_numbers<[1], [0], [0], [1], [0, 0, 1, 1], [], []>} : vector<8x384xbf16>, vector<384x128xbf16>, vector<8x128xf32> -> vector<8x128xf32>
    %c0_25 = arith.constant 0 : index
    %c0_26 = arith.constant 0 : index
    %50 = vector.load %arg9[%c0_25, %c0_26] : memref<1x128xf32, #tpu.memory_space<vmem>>, vector<1x128xf32>
    %51 = vector.shape_cast %50 : vector<1x128xf32> to vector<128xf32>
    %52 = vector.shape_cast %51 : vector<128xf32> to vector<1x128xf32>
    %53 = vector.broadcast %52 : vector<1x128xf32> to vector<8x128xf32>
    %54 = arith.addf %49, %53 : vector<8x128xf32>
    %c0_27 = arith.constant 0 : index
    %c0_28 = arith.constant 0 : index
    %55 = vector.load %arg10[%c0_27, %c0_28] : memref<8x128xf32, #tpu.memory_space<vmem>>, vector<8x128xf32>
    tpu.vector_store %arg10[%c0_27, %c0_28], %54 {strides = array<i32>} : memref<8x128xf32, #tpu.memory_space<vmem>>, vector<8x128xf32>,
    return
  }
  func.func @transform_0(%arg0: i32) -> (i32, i32, i32) {
    %c0_i32 = arith.constant 0 : i32
    %c0_i32_0 = arith.constant 0 : i32
    %c0_i32_1 = arith.constant 0 : i32
    return %arg0, %c0_i32, %c0_i32_0 : i32, i32, i32
  }
  func.func @transform_1(%arg0: i32) -> (i32, i32) {
    %c0_i32 = arith.constant 0 : i32
    %c0_i32_0 = arith.constant 0 : i32
    %c0_i32_1 = arith.constant 0 : i32
    return %c0_i32, %c0_i32_0 : i32, i32
  }
  func.func @transform_2(%arg0: i32) -> (i32, i32) {
    %c0_i32 = arith.constant 0 : i32
    %c0_i32_0 = arith.constant 0 : i32
    %c0_i32_1 = arith.constant 0 : i32
    return %c0_i32, %c0_i32_0 : i32, i32
  }
  func.func @transform_3(%arg0: i32) -> (i32, i32) {
    %c0_i32 = arith.constant 0 : i32
    %c0_i32_0 = arith.constant 0 : i32
    %c0_i32_1 = arith.constant 0 : i32
    return %c0_i32, %c0_i32_0 : i32, i32
  }
  func.func @transform_4(%arg0: i32) -> (i32, i32) {
    %c0_i32 = arith.constant 0 : i32
    %c0_i32_0 = arith.constant 0 : i32
    %c0_i32_1 = arith.constant 0 : i32
    return %c0_i32, %c0_i32_0 : i32, i32
  }
  func.func @transform_5(%arg0: i32) -> (i32, i32) {
    %c0_i32 = arith.constant 0 : i32
    %c0_i32_0 = arith.constant 0 : i32
    %c0_i32_1 = arith.constant 0 : i32
    return %c0_i32, %c0_i32_0 : i32, i32
  }
  func.func @transform_6(%arg0: i32) -> (i32, i32) {
    %c0_i32 = arith.constant 0 : i32
    %c0_i32_0 = arith.constant 0 : i32
    %c0_i32_1 = arith.constant 0 : i32
    return %c0_i32, %c0_i32_0 : i32, i32
  }
  func.func @transform_7(%arg0: i32) -> (i32, i32) {
    %c0_i32 = arith.constant 0 : i32
    %c0_i32_0 = arith.constant 0 : i32
    %c0_i32_1 = arith.constant 0 : i32
    return %c0_i32, %c0_i32_0 : i32, i32
  }
  func.func @transform_8(%arg0: i32) -> (i32, i32) {
    %c0_i32 = arith.constant 0 : i32
    %c0_i32_0 = arith.constant 0 : i32
    %c0_i32_1 = arith.constant 0 : i32
    return %c0_i32, %c0_i32_0 : i32, i32
  }
  func.func @transform_9(%arg0: i32) -> (i32, i32) {
    %c0_i32 = arith.constant 0 : i32
    %c0_i32_0 = arith.constant 0 : i32
    return %arg0, %c0_i32 : i32, i32
  }
}

</mosaic_0001>

<llo_original>
// kernel: textcnn_forward.1
$region0: #{textcnn_forward.1}
  #allocation0 [shape = 'u32[]', space=smem, size = 0x4, offset = 0x4, fixed_abs, tag = 'smem constant byte address 0x4 - core index']
  #allocation1 [shape = 'u32[144,128]{1,0:T(1,128)}', space=vmem, size = 0x12000, scoped, tag = 'internal scratch']
  %s0 = inlined_call_operand.vmem [shape: bf16[16,16,32], index: 0, kind: input, shape index: {}]
  %s1 = inlined_call_operand.vmem [shape: bf16[96,128], index: 1, kind: input, shape index: {}]
  %s2 = inlined_call_operand.vmem [shape: f32[1,128], index: 2, kind: input, shape index: {}]
  %s3 = inlined_call_operand.vmem [shape: bf16[128,128], index: 3, kind: input, shape index: {}]
  %s4 = inlined_call_operand.vmem [shape: f32[1,128], index: 4, kind: input, shape index: {}]
  %s5 = inlined_call_operand.vmem [shape: bf16[160,128], index: 5, kind: input, shape index: {}]
  %s6 = inlined_call_operand.vmem [shape: f32[1,128], index: 6, kind: input, shape index: {}]
  %s7 = inlined_call_operand.vmem [shape: bf16[384,128], index: 7, kind: input, shape index: {}]
  %s8 = inlined_call_operand.vmem [shape: f32[1,128], index: 8, kind: input, shape index: {}]
  %s9 = inlined_call_operand.vmem [shape: f32[16,128], index: 9, kind: output, shape index: {}]
  %s10 = sld [smem:[#allocation0]]
  $region69: #{textcnn_forward.1} parent=0
    _
  %s12 = ssub.s32 1, %s10
  %s13 = scalar_select 0, %s12, %s10
  loop: start=0, step=1, limit=4
  $region2: #{textcnn_forward.1} parent=0 // loop_pre_header
    _
  $region3: #{textcnn_forward.1} parent=0 // loop_header
    %s15 = sphi 0, %s19
    %p16 = scmp.ge.s32.totalorder %s15, 4
    %s25 = sphi 0, %s27
    %s28 = sphi 0, %s25
    %s29 = sphi 0, %s28
    %s45 = sphi 0, %s29
    %s49 = sphi 0, %s49
    %s51 = sphi 0, %s49
    %s52 = sphi 0, %s51
    %s66 = sphi 0, %s52
    %s70 = sphi 0, %s70
    %s72 = sphi 0, %s70
    %s73 = sphi 0, %s72
    %s87 = sphi 0, %s73
    %s91 = sphi 0, %s91
    %s93 = sphi 0, %s91
    %s94 = sphi 0, %s93
    %s108 = sphi 0, %s94
    %s112 = sphi 0, %s112
    %s114 = sphi 0, %s112
    %s115 = sphi 0, %s114
    %s129 = sphi 0, %s115
    %s133 = sphi 0, %s133
    %s135 = sphi 0, %s133
    %s136 = sphi 0, %s135
    %s150 = sphi 0, %s136
    %s154 = sphi 0, %s154
    %s156 = sphi 0, %s154
    %s157 = sphi 0, %s156
    %s171 = sphi 0, %s157
    %s175 = sphi 0, %s175
    %s177 = sphi 0, %s175
    %s178 = sphi 0, %s177
    %s192 = sphi 0, %s178
    %s196 = sphi 0, %s196
    %s198 = sphi 0, %s196
    %s199 = sphi 0, %s198
    %s213 = sphi 0, %s199
    %s219 = sphi 0, %s221
    %s222 = sphi 0, %s219
    %s223 = sphi 0, %s222
    %s239 = sphi 0, %s223
  $region4: #{textcnn_forward.1} parent=0 // loop_header_branch
    %18 = sbr.rel (%p16) target = $region8
  $region5: #{textcnn_forward.1} parent=0 // loop_body
    %s20 = ssub.s32 %s15, 1
    %s21 = ssub.s32 %s15, 2
    %s22 = sadd.s32 %s15, 1
    %s23 = ssub.s32 %s15, %s22
    %p24 = scmp.eq.s32.totalorder %s23, 0
    %s26 = sadd.s32 %s25, 1
    %s27 = scalar_select %p24, %s25, %s26
    %p30 = pneg %p24
    %p31 = scmp.eq.s32.totalorder %s15, 1
    %p32 = por %p30, %p31
    %p33 = scmp.ne.s32.totalorder %s25, %s28
    %p34 = scmp.eq.s32.totalorder %s15, 0
    %p35 = por %p33, %p34
    %p36 = scmp.ne.s32.totalorder %s25, %s28
    %p37 = scmp.eq.s32.totalorder %s20, 1
    %p38 = por %p36, %p37
    %p39 = scmp.ne.s32.totalorder %s28, %s29
    %p40 = scmp.eq.s32.totalorder %s20, 0
    %p41 = por %p39, %p40
    %p42 = scmp.ne.s32.totalorder %s28, %s29
    %p43 = scmp.eq.s32.totalorder %s21, 1
    %p44 = por %p42, %p43
    %p46 = scmp.ne.s32.totalorder %s29, %s45
    %p47 = scmp.eq.s32.totalorder %s21, 0
    %p48 = por %p46, %p47
    %s50 = sadd.s32 %s49, 1
    %p53 = scmp.eq.s32.totalorder %s15, 1
    %p54 = scmp.ne.s32.totalorder %s49, %s51
    %p55 = scmp.eq.s32.totalorder %s15, 0
    %p56 = por %p54, %p55
    %p57 = scmp.ne.s32.totalorder %s49, %s51
    %p58 = scmp.eq.s32.totalorder %s20, 1
    %p59 = por %p57, %p58
    %p60 = scmp.ne.s32.totalorder %s51, %s52
    %p61 = scmp.eq.s32.totalorder %s20, 0
    %p62 = por %p60, %p61
    %p63 = scmp.ne.s32.totalorder %s51, %s52
    %p64 = scmp.eq.s32.totalorder %s21, 1
    %p65 = por %p63, %p64
    %p67 = scmp.ne.s32.totalorder %s52, %s66
    %p68 = scmp.eq.s32.totalorder %s21, 0
    %p69 = por %p67, %p68
    %s71 = sadd.s32 %s70, 1
    %p74 = scmp.eq.s32.totalorder %s15, 1
    %p75 = scmp.ne.s32.totalorder %s70, %s72
    %p76 = scmp.eq.s32.totalorder %s15, 0
    %p77 = por %p75, %p76
    %p78 = scmp.ne.s32.totalorder %s70, %s72
    %p79 = scmp.eq.s32.totalorder %s20, 1
    %p80 = por %p78, %p79
    %p81 = scmp.ne.s32.totalorder %s72, %s73
    %p82 = scmp.eq.s32.totalorder %s20, 0
    %p83 = por %p81, %p82
    %p84 = scmp.ne.s32.totalorder %s72, %s73
    %p85 = scmp.eq.s32.totalorder %s21, 1
    %p86 = por %p84, %p85
    %p88 = scmp.ne.s32.totalorder %s73, %s87
    %p89 = scmp.eq.s32.totalorder %s21, 0
    %p90 = por %p88, %p89
    %s92 = sadd.s32 %s91, 1
    %p95 = scmp.eq.s32.totalorder %s15, 1
    %p96 = scmp.ne.s32.totalorder %s91, %s93
    %p97 = scmp.eq.s32.totalorder %s15, 0
    %p98 = por %p96, %p97
    %p99 = scmp.ne.s32.totalorder %s91, %s93
    %p100 = scmp.eq.s32.totalorder %s20, 1
    %p101 = por %p99, %p100
    %p102 = scmp.ne.s32.totalorder %s93, %s94
    %p103 = scmp.eq.s32.totalorder %s20, 0
    %p104 = por %p102, %p103
    %p105 = scmp.ne.s32.totalorder %s93, %s94
    %p106 = scmp.eq.s32.totalorder %s21, 1
    %p107 = por %p105, %p106
    %p109 = scmp.ne.s32.totalorder %s94, %s108
    %p110 = scmp.eq.s32.totalorder %s21, 0
    %p111 = por %p109, %p110
    %s113 = sadd.s32 %s112, 1
    %p116 = scmp.eq.s32.totalorder %s15, 1
    %p117 = scmp.ne.s32.totalorder %s112, %s114
    %p118 = scmp.eq.s32.totalorder %s15, 0
    %p119 = por %p117, %p118
    %p120 = scmp.ne.s32.totalorder %s112, %s114
    %p121 = scmp.eq.s32.totalorder %s20, 1
    %p122 = por %p120, %p121
    %p123 = scmp.ne.s32.totalorder %s114, %s115
    %p124 = scmp.eq.s32.totalorder %s20, 0
    %p125 = por %p123, %p124
    %p126 = scmp.ne.s32.totalorder %s114, %s115
    %p127 = scmp.eq.s32.totalorder %s21, 1
    %p128 = por %p126, %p127
    %p130 = scmp.ne.s32.totalorder %s115, %s129
    %p131 = scmp.eq.s32.totalorder %s21, 0
    %p132 = por %p130, %p131
    %s134 = sadd.s32 %s133, 1
    %p137 = scmp.eq.s32.totalorder %s15, 1
    %p138 = scmp.ne.s32.totalorder %s133, %s135
    %p139 = scmp.eq.s32.totalorder %s15, 0
    %p140 = por %p138, %p139
    %p141 = scmp.ne.s32.totalorder %s133, %s135
    %p142 = scmp.eq.s32.totalorder %s20, 1
    %p143 = por %p141, %p142
    %p144 = scmp.ne.s32.totalorder %s135, %s136
    %p145 = scmp.eq.s32.totalorder %s20, 0
    %p146 = por %p144, %p145
    %p147 = scmp.ne.s32.totalorder %s135, %s136
    %p148 = scmp.eq.s32.totalorder %s21, 1
    %p149 = por %p147, %p148
    %p151 = scmp.ne.s32.totalorder %s136, %s150
    %p152 = scmp.eq.s32.totalorder %s21, 0
    %p153 = por %p151, %p152
    %s155 = sadd.s32 %s154, 1
    %p158 = scmp.eq.s32.totalorder %s15, 1
    %p159 = scmp.ne.s32.totalorder %s154, %s156
    %p160 = scmp.eq.s32.totalorder %s15, 0
    %p161 = por %p159, %p160
    %p162 = scmp.ne.s32.totalorder %s154, %s156
    %p163 = scmp.eq.s32.totalorder %s20, 1
    %p164 = por %p162, %p163
    %p165 = scmp.ne.s32.totalorder %s156, %s157
    %p166 = scmp.eq.s32.totalorder %s20, 0
    %p167 = por %p165, %p166
    %p168 = scmp.ne.s32.totalorder %s156, %s157
    %p169 = scmp.eq.s32.totalorder %s21, 1
    %p170 = por %p168, %p169
    %p172 = scmp.ne.s32.totalorder %s157, %s171
    %p173 = scmp.eq.s32.totalorder %s21, 0
    %p174 = por %p172, %p173
    %s176 = sadd.s32 %s175, 1
    %p179 = scmp.eq.s32.totalorder %s15, 1
    %p180 = scmp.ne.s32.totalorder %s175, %s177
    %p181 = scmp.eq.s32.totalorder %s15, 0
    %p182 = por %p180, %p181
    %p183 = scmp.ne.s32.totalorder %s175, %s177
    %p184 = scmp.eq.s32.totalorder %s20, 1
    %p185 = por %p183, %p184
    %p186 = scmp.ne.s32.totalorder %s177, %s178
    %p187 = scmp.eq.s32.totalorder %s20, 0
    %p188 = por %p186, %p187
    %p189 = scmp.ne.s32.totalorder %s177, %s178
    %p190 = scmp.eq.s32.totalorder %s21, 1
    %p191 = por %p189, %p190
    %p193 = scmp.ne.s32.totalorder %s178, %s192
    %p194 = scmp.eq.s32.totalorder %s21, 0
    %p195 = por %p193, %p194
    %s197 = sadd.s32 %s196, 1
    %p200 = scmp.eq.s32.totalorder %s15, 1
    %p201 = scmp.ne.s32.totalorder %s196, %s198
    %p202 = scmp.eq.s32.totalorder %s15, 0
    %p203 = por %p201, %p202
    %p204 = scmp.ne.s32.totalorder %s196, %s198
    %p205 = scmp.eq.s32.totalorder %s20, 1
    %p206 = por %p204, %p205
    %p207 = scmp.ne.s32.totalorder %s198, %s199
    %p208 = scmp.eq.s32.totalorder %s20, 0
    %p209 = por %p207, %p208
    %p210 = scmp.ne.s32.totalorder %s198, %s199
    %p211 = scmp.eq.s32.totalorder %s21, 1
    %p212 = por %p210, %p211
    %p214 = scmp.ne.s32.totalorder %s199, %s213
    %p215 = scmp.eq.s32.totalorder %s21, 0
    %p216 = por %p214, %p215
    %s217 = ssub.s32 %s15, %s22
    %p218 = scmp.eq.s32.totalorder %s217, 0
    %s220 = sadd.s32 %s219, 1
    %s221 = scalar_select %p218, %s219, %s220
    %p224 = pneg %p218
    %p225 = scmp.eq.s32.totalorder %s15, 1
    %p226 = por %p224, %p225
    %p227 = scmp.ne.s32.totalorder %s219, %s222
    %p228 = scmp.eq.s32.totalorder %s15, 0
    %p229 = por %p227, %p228
    %p230 = scmp.ne.s32.totalorder %s219, %s222
    %p231 = scmp.eq.s32.totalorder %s20, 1
    %p232 = por %p230, %p231
    %p233 = scmp.ne.s32.totalorder %s222, %s223
    %p234 = scmp.eq.s32.totalorder %s20, 0
    %p235 = por %p233, %p234
    %p236 = scmp.ne.s32.totalorder %s222, %s223
    %p237 = scmp.eq.s32.totalorder %s21, 1
    %p238 = por %p236, %p237
    %p240 = scmp.ne.s32.totalorder %s223, %s239
    %p241 = scmp.eq.s32.totalorder %s21, 0
    %p242 = por %p240, %p241
    %p243 = scmp.le.s32.totalorder 1, %s15
    %p244 = scmp.lt.s32.totalorder %s15, 3
    %p245 = pnand %p243, %p244
    %p246 = pneg %p245
    // Predicated region
    $region9: #{textcnn_forward.1} parent=5 // pred_check
      _
    $region10: #{textcnn_forward.1} parent=5 // pred_check_branch
      %248 = sbr.rel (%p245) target = $region12
    $region11: #{textcnn_forward.1} parent=5 // pred_region
      %s249 = ssub.s32 %s15, 1
      // Predicated region
      $region13: #{textcnn_forward.1} parent=11 // pred_check
        %p250 = pneg %p62
      $region14: #{textcnn_forward.1} parent=11 // pred_check_branch
        %252 = sbr.rel (%p250) target = $region16
      $region15: #{textcnn_forward.1} parent=11 // pred_region
        _
      $region16: #{textcnn_forward.1} parent=11 // pred_fallthru
        _
      // Predicated region
      $region17: #{textcnn_forward.1} parent=11 // pred_check
        %p253 = pneg %p83
      $region18: #{textcnn_forward.1} parent=11 // pred_check_branch
        %255 = sbr.rel (%p253) target = $region20
      $region19: #{textcnn_forward.1} parent=11 // pred_region
        _
      $region20: #{textcnn_forward.1} parent=11 // pred_fallthru
        _
      // Predicated region
      $region21: #{textcnn_forward.1} parent=11 // pred_check
        %p256 = pneg %p104
      $region22: #{textcnn_forward.1} parent=11 // pred_check_branch
        %258 = sbr.rel (%p256) target = $region24
      $region23: #{textcnn_forward.1} parent=11 // pred_region
        _
      $region24: #{textcnn_forward.1} parent=11 // pred_fallthru
        _
      // Predicated region
      $region25: #{textcnn_forward.1} parent=11 // pred_check
        %p259 = pneg %p125
      $region26: #{textcnn_forward.1} parent=11 // pred_check_branch
        %261 = sbr.rel (%p259) target = $region28
      $region27: #{textcnn_forward.1} parent=11 // pred_region
        _
      $region28: #{textcnn_forward.1} parent=11 // pred_fallthru
        _
      // Predicated region
      $region29: #{textcnn_forward.1} parent=11 // pred_check
        %p262 = pneg %p146
      $region30: #{textcnn_forward.1} parent=11 // pred_check_branch
        %264 = sbr.rel (%p262) target = $region32
      $region31: #{textcnn_forward.1} parent=11 // pred_region
        _
      $region32: #{textcnn_forward.1} parent=11 // pred_fallthru
        _
      // Predicated region
      $region33: #{textcnn_forward.1} parent=11 // pred_check
        %p265 = pneg %p167
      $region34: #{textcnn_forward.1} parent=11 // pred_check_branch
        %267 = sbr.rel (%p265) target = $region36
      $region35: #{textcnn_forward.1} parent=11 // pred_region
        _
      $region36: #{textcnn_forward.1} parent=11 // pred_fallthru
        _
      // Predicated region
      $region37: #{textcnn_forward.1} parent=11 // pred_check
        %p268 = pneg %p188
      $region38: #{textcnn_forward.1} parent=11 // pred_check_branch
        %270 = sbr.rel (%p268) target = $region40
      $region39: #{textcnn_forward.1} parent=11 // pred_region
        _
      $region40: #{textcnn_forward.1} parent=11 // pred_fallthru
        _
      // Predicated region
      $region41: #{textcnn_forward.1} parent=11 // pred_check
        %p271 = pneg %p209
      $region42: #{textcnn_forward.1} parent=11 // pred_check_branch
        %273 = sbr.rel (%p271) target = $region44
      $region43: #{textcnn_forward.1} parent=11 // pred_region
        _
      $region44: #{textcnn_forward.1} parent=11 // pred_fallthru
        _
    $region12: #{textcnn_forward.1} parent=5 // pred_fallthru
      _
    %p274 = scmp.lt.s32.totalorder %s15, 2
    // Predicated region
    $region45: #{textcnn_forward.1} parent=5 // pred_check
      %p275 = pneg %p274
    $region46: #{textcnn_forward.1} parent=5 // pred_check_branch
      %277 = sbr.rel (%p275) target = $region48
    $region47: #{textcnn_forward.1} parent=5 // pred_region
      // Predicated region
      $region49: #{textcnn_forward.1} parent=47 // pred_check
        %p278 = pneg %p35
      $region50: #{textcnn_forward.1} parent=47 // pred_check_branch
        %280 = sbr.rel (%p278) target = $region52
      $region51: #{textcnn_forward.1} parent=47 // pred_region
        %s281 = smul.u32 8, %s15
        %p282 = scmp.lt.s32.totalorder %s281, 15
        %s283 = scalar_select %p282, %s281, 15
        %s284 = smul.addr %s283, 2
        %s285 = smul.addr %s284, 4
        %s286 = scalar_lea.vmem %s0, %s285
        %s287 = smul.u32 8, %s15
      $region52: #{textcnn_forward.1} parent=47 // pred_fallthru
        _
    $region48: #{textcnn_forward.1} parent=5 // pred_fallthru
      _
    %p288 = scmp.le.s32.totalorder 1, %s15
    %p289 = scmp.lt.s32.totalorder %s15, 3
    %p290 = pnand %p288, %p289
    %p291 = pneg %p290
    // Predicated region
    $region53: #{textcnn_forward.1} parent=5 // pred_check
      _
    $region54: #{textcnn_forward.1} parent=5 // pred_check_branch
      %293 = sbr.rel (%p290) target = $region56
    $region55: #{textcnn_forward.1} parent=5 // pred_region
      %s294 = ssub.s32 %s15, 1
      %s295 = smul.u32 8, %s20
      %p296 = scmp.lt.s32.totalorder %s295, 15
      %s297 = scalar_select %p296, %s295, 15
      %s298 = smul.addr %s297, 2
      %s299 = smul.addr %s298, 4
      %s300 = scalar_lea.vmem %s0, %s299
      %p301 = pneg %p41
      %p302 = pneg %p38
      %p303 = pneg %p62
      %p304 = pneg %p59
      %p305 = pneg %p83
      %p306 = pneg %p80
      %p307 = pneg %p104
      %p308 = pneg %p101
      %p309 = pneg %p125
      %p310 = pneg %p122
      %p311 = pneg %p146
      %p312 = pneg %p143
      %p313 = pneg %p167
      %p314 = pneg %p164
      %p315 = pneg %p188
      %p316 = pneg %p185
      %p317 = pneg %p209
      %p318 = pneg %p206
      %p319 = pneg %p235
      %p320 = pneg %p232
      %p321 = scmp.lt.s32.totalorder %s20, 1
      %s322 = scalar_select %p321, %s20, 1
      %s323 = smul.addr %s322, 8
      %s324 = scalar_lea.vmem %s9, %s323
      %s325 = smul.u32 8, %s20
      %p326 = scmp.lt.s32.totalorder %s325, 15
      %s327 = scalar_select %p326, %s325, 15
      %s328 = smul.addr %s327, 2
      %s329 = smul.addr %s328, 4
      %s330 = scalar_lea.vmem %s0, %s329
      %s331 = smul.u32 8, %s20
      %p332 = scmp.lt.s32.totalorder %s20, 1
      %s333 = scalar_select %p332, %s20, 1
      %s334 = smul.addr %s333, 8
      %s335 = scalar_lea.vmem %s9, %s334
      %v337 = vld [vmem:[%s330] sm:$0xf]
      %v338 = vld [vmem:[%s330 + $0x4] sm:$0xf]
      %v339 = vld [vmem:[%s330 + $0x8] sm:$0xf]
      %v340 = vld [vmem:[%s330 + $0xc] sm:$0xf]
      %v341 = vld [vmem:[%s330 + $0x10] sm:$0xf]
      %v342 = vld [vmem:[%s330 + $0x14] sm:$0xf]
      %v343 = vld [vmem:[%s330 + $0x18] sm:$0xf]
      %v344 = vld [vmem:[%s330 + $0x1c] sm:$0xf]
      %v345 = vld [vmem:[%s330 + $0x20] sm:$0xf]
      %v346 = vld [vmem:[%s330 + $0x24] sm:$0xf]
      %v347 = vld [vmem:[%s330 + $0x28] sm:$0xf]
      %v348 = vld [vmem:[%s330 + $0x2c] sm:$0xf]
      %v349 = vld [vmem:[%s330 + $0x30] sm:$0xf]
      %v350 = vld [vmem:[%s330 + $0x34] sm:$0xf]
      %v351 = vld [vmem:[%s330 + $0x38] sm:$0xf]
      %v352 = vld [vmem:[%s330 + $0x3c] sm:$0xf]
      %v369 = vunpack.c.l.b16 %v337
      %v370 = vunpack.c.l.b16 %v338
      %v371 = vunpack.c.l.b16 %v339
      %v372 = vunpack.c.l.b16 %v340
      %v373 = vunpack.c.l.b16 %v341
      %v374 = vunpack.c.l.b16 %v342
      %v375 = vunpack.c.l.b16 %v343
      %v376 = vunpack.c.l.b16 %v344
      %v377 = vunpack.c.l.b16 %v345
      %v378 = vunpack.c.l.b16 %v346
      %v379 = vunpack.c.l.b16 %v347
      %v380 = vunpack.c.l.b16 %v348
      %v381 = vunpack.c.l.b16 %v349
      %v382 = vunpack.c.l.b16 %v350
      %v383 = vunpack.c.l.b16 %v351
      %v384 = vunpack.c.l.b16 %v352
      %v385 = vpack.c.b16 %v370, %v369
      %v386 = vpack.c.b16 %v372, %v371
      %v387 = vpack.c.b16 %v374, %v373
      %v388 = vpack.c.b16 %v376, %v375
      %v389 = vpack.c.b16 %v378, %v377
      %v390 = vpack.c.b16 %v380, %v379
      %v391 = vpack.c.b16 %v382, %v381
      %v392 = vpack.c.b16 %v384, %v383
      %v394 = vshrl.u32 %v385, 16
      %v396 = vshll.u32 %v385, 16
      %v398 = vrot.slane %v396, 1
      %v399 = vor.u32 %v394, %v398
      %v401 = vshrl.u32 %v386, 16
      %v403 = vshll.u32 %v386, 16
      %v405 = vrot.slane %v403, 1
      %v406 = vor.u32 %v401, %v405
      %v408 = vshrl.u32 %v387, 16
      %v410 = vshll.u32 %v387, 16
      %v412 = vrot.slane %v410, 1
      %v413 = vor.u32 %v408, %v412
      %v415 = vshrl.u32 %v388, 16
      %v417 = vshll.u32 %v388, 16
      %v419 = vrot.slane %v417, 1
      %v420 = vor.u32 %v415, %v419
      %v422 = vshrl.u32 %v389, 16
      %v424 = vshll.u32 %v389, 16
      %v426 = vrot.slane %v424, 1
      %v427 = vor.u32 %v422, %v426
      %v429 = vshrl.u32 %v390, 16
      %v431 = vshll.u32 %v390, 16
      %v433 = vrot.slane %v431, 1
      %v434 = vor.u32 %v429, %v433
      %v436 = vshrl.u32 %v391, 16
      %v438 = vshll.u32 %v391, 16
      %v440 = vrot.slane %v438, 1
      %v441 = vor.u32 %v436, %v440
      %v443 = vshrl.u32 %v392, 16
      %v445 = vshll.u32 %v392, 16
      %v447 = vrot.slane %v445, 1
      %v448 = vor.u32 %v443, %v447
      %449 = vrot.lane.b32.xlu0 %v399, 32
      %v450 = vpop.permute.xlu0 %449
      %451 = vrot.lane.b32.xlu0 %v406, 32
      %v452 = vpop.permute.xlu0 %451
      %453 = vrot.lane.b32.xlu0 %v413, 32
      %v454 = vpop.permute.xlu0 %453
      %455 = vrot.lane.b32.xlu0 %v420, 32
      %v456 = vpop.permute.xlu0 %455
      %457 = vrot.lane.b32.xlu0 %v427, 32
      %v458 = vpop.permute.xlu0 %457
      %459 = vrot.lane.b32.xlu0 %v434, 32
      %v460 = vpop.permute.xlu0 %459
      %461 = vrot.lane.b32.xlu0 %v441, 32
      %v462 = vpop.permute.xlu0 %461
      %463 = vrot.lane.b32.xlu0 %v448, 32
      %v464 = vpop.permute.xlu0 %463
      %v465 = vrot.slane %v385, 1
      %v466 = vrot.slane %v386, 1
      %v467 = vrot.slane %v387, 1
      %v468 = vrot.slane %v388, 1
      %v469 = vrot.slane %v389, 1
      %v470 = vrot.slane %v390, 1
      %v471 = vrot.slane %v391, 1
      %v472 = vrot.slane %v392, 1
      %473 = vrot.lane.b32.xlu0 %v465, 64
      %v474 = vpop.permute.xlu0 %473
      %475 = vrot.lane.b32.xlu0 %v466, 64
      %v476 = vpop.permute.xlu0 %475
      %477 = vrot.lane.b32.xlu0 %v467, 64
      %v478 = vpop.permute.xlu0 %477
      %479 = vrot.lane.b32.xlu0 %v468, 64
      %v480 = vpop.permute.xlu0 %479
      %481 = vrot.lane.b32.xlu0 %v469, 64
      %v482 = vpop.permute.xlu0 %481
      %483 = vrot.lane.b32.xlu0 %v470, 64
      %v484 = vpop.permute.xlu0 %483
      %485 = vrot.lane.b32.xlu0 %v471, 64
      %v486 = vpop.permute.xlu0 %485
      %487 = vrot.lane.b32.xlu0 %v472, 64
      %v488 = vpop.permute.xlu0 %487
      %vm489 = vcmask 261120
      %v491 = vsel %vm489, %v385, %v450
      %v493 = vsel %vm489, %v386, %v452
      %v495 = vsel %vm489, %v387, %v454
      %v497 = vsel %vm489, %v388, %v456
      %v499 = vsel %vm489, %v389, %v458
      %v501 = vsel %vm489, %v390, %v460
      %v503 = vsel %vm489, %v391, %v462
      %v505 = vsel %vm489, %v392, %v464
      %vm506 = vcmask 523264
      %v508 = vsel %vm506, %v491, %v474
      %v510 = vsel %vm506, %v493, %v476
      %v512 = vsel %vm506, %v495, %v478
      %v514 = vsel %vm506, %v497, %v480
      %v516 = vsel %vm506, %v499, %v482
      %v518 = vsel %vm506, %v501, %v484
      %v520 = vsel %vm506, %v503, %v486
      %v522 = vsel %vm506, %v505, %v488
      %v523 = vld [vmem:[%s1] sm:$0xf]
      %v524 = vld [vmem:[%s1 + $0x4] sm:$0xf]
      %v525 = vld [vmem:[%s1 + $0x8] sm:$0xf]
      %v526 = vld [vmem:[%s1 + $0xc] sm:$0xf]
      %v527 = vld [vmem:[%s1 + $0x10] sm:$0xf]
      %v528 = vld [vmem:[%s1 + $0x14] sm:$0xf]
      %v529 = vld [vmem:[%s1 + $0x18] sm:$0xf]
      %v530 = vld [vmem:[%s1 + $0x1c] sm:$0xf]
      %v531 = vld [vmem:[%s1 + $0x20] sm:$0xf]
      %v532 = vld [vmem:[%s1 + $0x24] sm:$0xf]
      %v533 = vld [vmem:[%s1 + $0x28] sm:$0xf]
      %v534 = vld [vmem:[%s1 + $0x2c] sm:$0xf]
      %v543 = vcombine.high %v508, %v508
      %v545 = vunpack.c.l.s4 1966171168
      %v546 = vunpack.c.0.s8 %v545
      %v547 = vlaneseq
      %v548 = vshrl.u32 %v547, 7
      %v549 = vsub.s32 %v546, %v548
      %v550 = vrot.slane %v508, %v549
      %v552 = vunpack.c.l.s4 1966171168
      %v553 = vunpack.c.0.s8 %v552
      %v554 = vlaneseq
      %v555 = vshrl.u32 %v554, 7
      %v556 = vsub.s32 %v553, %v555
      %v557 = vrot.slane %v543, %v556
      %v558 = vcombine.high %v550, %v550
      %v559 = vcombine.high %v557, %v557
      %v561 = vunpack.c.l.s4 1966171168
      %v562 = vunpack.c.0.s8 %v561
      %v563 = vlaneseq
      %v564 = vshrl.u32 %v563, 7
      %v565 = vsub.s32 %v562, %v564
      %v566 = vrot.slane %v550, %v565
      %v568 = vunpack.c.l.s4 1966171168
      %v569 = vunpack.c.0.s8 %v568
      %v570 = vlaneseq
      %v571 = vshrl.u32 %v570, 7
      %v572 = vsub.s32 %v569, %v571
      %v573 = vrot.slane %v557, %v572
      %v575 = vunpack.c.l.s4 1966171168
      %v576 = vunpack.c.0.s8 %v575
      %v577 = vlaneseq
      %v578 = vshrl.u32 %v577, 7
      %v579 = vsub.s32 %v576, %v578
      %v580 = vrot.slane %v558, %v579
      %v582 = vunpack.c.l.s4 1966171168
      %v583 = vunpack.c.0.s8 %v582
      %v584 = vlaneseq
      %v585 = vshrl.u32 %v584, 7
      %v586 = vsub.s32 %v583, %v585
      %v587 = vrot.slane %v559, %v586
      %v588 = vcombine.high %v566, %v566
      %v589 = vcombine.high %v573, %v573
      %v590 = vcombine.high %v580, %v580
      %v591 = vcombine.high %v510, %v510
      %v593 = vunpack.c.l.s4 1966171168
      %v594 = vunpack.c.0.s8 %v593
      %v595 = vlaneseq
      %v596 = vshrl.u32 %v595, 7
      %v597 = vsub.s32 %v594, %v596
      %v598 = vrot.slane %v510, %v597
      %v600 = vunpack.c.l.s4 1966171168
      %v601 = vunpack.c.0.s8 %v600
      %v602 = vlaneseq
      %v603 = vshrl.u32 %v602, 7
      %v604 = vsub.s32 %v601, %v603
      %v605 = vrot.slane %v591, %v604
      %v606 = vcombine.high %v598, %v598
      %v607 = vcombine.high %v605, %v605
      %v609 = vunpack.c.l.s4 1966171168
      %v610 = vunpack.c.0.s8 %v609
      %v611 = vlaneseq
      %v612 = vshrl.u32 %v611, 7
      %v613 = vsub.s32 %v610, %v612
      %v614 = vrot.slane %v598, %v613
      %v616 = vunpack.c.l.s4 1966171168
      %v617 = vunpack.c.0.s8 %v616
      %v618 = vlaneseq
      %v619 = vshrl.u32 %v618, 7
      %v620 = vsub.s32 %v617, %v619
      %v621 = vrot.slane %v605, %v620
      %v623 = vunpack.c.l.s4 1966171168
      %v624 = vunpack.c.0.s8 %v623
      %v625 = vlaneseq
      %v626 = vshrl.u32 %v625, 7
      %v627 = vsub.s32 %v624, %v626
      %v628 = vrot.slane %v606, %v627
      %v630 = vunpack.c.l.s4 1966171168
      %v631 = vunpack.c.0.s8 %v630
      %v632 = vlaneseq
      %v633 = vshrl.u32 %v632, 7
      %v634 = vsub.s32 %v631, %v633
      %v635 = vrot.slane %v607, %v634
      %v636 = vcombine.high %v614, %v614
      %v637 = vcombine.high %v621, %v621
      %v638 = vcombine.high %v628, %v628
      %v639 = vcombine.high %v512, %v512
      %v641 = vunpack.c.l.s4 1966171168
      %v642 = vunpack.c.0.s8 %v641
      %v643 = vlaneseq
      %v644 = vshrl.u32 %v643, 7
      %v645 = vsub.s32 %v642, %v644
      %v646 = vrot.slane %v512, %v645
      %v648 = vunpack.c.l.s4 1966171168
      %v649 = vunpack.c.0.s8 %v648
      %v650 = vlaneseq
      %v651 = vshrl.u32 %v650, 7
      %v652 = vsub.s32 %v649, %v651
      %v653 = vrot.slane %v639, %v652
      %v654 = vcombine.high %v646, %v646
      %v655 = vcombine.high %v653, %v653
      %v657 = vunpack.c.l.s4 1966171168
      %v658 = vunpack.c.0.s8 %v657
      %v659 = vlaneseq
      %v660 = vshrl.u32 %v659, 7
      %v661 = vsub.s32 %v658, %v660
      %v662 = vrot.slane %v646, %v661
      %v664 = vunpack.c.l.s4 1966171168
      %v665 = vunpack.c.0.s8 %v664
      %v666 = vlaneseq
      %v667 = vshrl.u32 %v666, 7
      %v668 = vsub.s32 %v665, %v667
      %v669 = vrot.slane %v653, %v668
      %v671 = vunpack.c.l.s4 1966171168
      %v672 = vunpack.c.0.s8 %v671
      %v673 = vlaneseq
      %v674 = vshrl.u32 %v673, 7
      %v675 = vsub.s32 %v672, %v674
      %v676 = vrot.slane %v654, %v675
      %v678 = vunpack.c.l.s4 1966171168
      %v679 = vunpack.c.0.s8 %v678
      %v680 = vlaneseq
      %v681 = vshrl.u32 %v680, 7
      %v682 = vsub.s32 %v679, %v681
      %v683 = vrot.slane %v655, %v682
      %v684 = vcombine.high %v662, %v662
      %v685 = vcombine.high %v669, %v669
      %v686 = vcombine.high %v676, %v676
      %v687 = vcombine.high %v514, %v514
      %v689 = vunpack.c.l.s4 1966171168
      %v690 = vunpack.c.0.s8 %v689
      %v691 = vlaneseq
      %v692 = vshrl.u32 %v691, 7
      %v693 = vsub.s32 %v690, %v692
      %v694 = vrot.slane %v514, %v693
      %v696 = vunpack.c.l.s4 1966171168
      %v697 = vunpack.c.0.s8 %v696
      %v698 = vlaneseq
      %v699 = vshrl.u32 %v698, 7
      %v700 = vsub.s32 %v697, %v699
      %v701 = vrot.slane %v687, %v700
      %v702 = vcombine.high %v694, %v694
      %v703 = vcombine.high %v701, %v701
      %v705 = vunpack.c.l.s4 1966171168
      %v706 = vunpack.c.0.s8 %v705
      %v707 = vlaneseq
      %v708 = vshrl.u32 %v707, 7
      %v709 = vsub.s32 %v706, %v708
      %v710 = vrot.slane %v694, %v709
      %v712 = vunpack.c.l.s4 1966171168
      %v713 = vunpack.c.0.s8 %v712
      %v714 = vlaneseq
      %v715 = vshrl.u32 %v714, 7
      %v716 = vsub.s32 %v713, %v715
      %v717 = vrot.slane %v701, %v716
      %v719 = vunpack.c.l.s4 1966171168
      %v720 = vunpack.c.0.s8 %v719
      %v721 = vlaneseq
      %v722 = vshrl.u32 %v721, 7
      %v723 = vsub.s32 %v720, %v722
      %v724 = vrot.slane %v702, %v723
      %v726 = vunpack.c.l.s4 1966171168
      %v727 = vunpack.c.0.s8 %v726
      %v728 = vlaneseq
      %v729 = vshrl.u32 %v728, 7
      %v730 = vsub.s32 %v727, %v729
      %v731 = vrot.slane %v703, %v730
      %v732 = vcombine.high %v710, %v710
      %v733 = vcombine.high %v717, %v717
      %v734 = vcombine.high %v724, %v724
      %v735 = vcombine.high %v516, %v516
      %v737 = vunpack.c.l.s4 1966171168
      %v738 = vunpack.c.0.s8 %v737
      %v739 = vlaneseq
      %v740 = vshrl.u32 %v739, 7
      %v741 = vsub.s32 %v738, %v740
      %v742 = vrot.slane %v516, %v741
      %v744 = vunpack.c.l.s4 1966171168
      %v745 = vunpack.c.0.s8 %v744
      %v746 = vlaneseq
      %v747 = vshrl.u32 %v746, 7
      %v748 = vsub.s32 %v745, %v747
      %v749 = vrot.slane %v735, %v748
      %v750 = vcombine.high %v742, %v742
      %v751 = vcombine.high %v749, %v749
      %v753 = vunpack.c.l.s4 1966171168
      %v754 = vunpack.c.0.s8 %v753
      %v755 = vlaneseq
      %v756 = vshrl.u32 %v755, 7
      %v757 = vsub.s32 %v754, %v756
      %v758 = vrot.slane %v742, %v757
      %v760 = vunpack.c.l.s4 1966171168
      %v761 = vunpack.c.0.s8 %v760
      %v762 = vlaneseq
      %v763 = vshrl.u32 %v762, 7
      %v764 = vsub.s32 %v761, %v763
      %v765 = vrot.slane %v749, %v764
      %v767 = vunpack.c.l.s4 1966171168
      %v768 = vunpack.c.0.s8 %v767
      %v769 = vlaneseq
      %v770 = vshrl.u32 %v769, 7
      %v771 = vsub.s32 %v768, %v770
      %v772 = vrot.slane %v750, %v771
      %v774 = vunpack.c.l.s4 1966171168
      %v775 = vunpack.c.0.s8 %v774
      %v776 = vlaneseq
      %v777 = vshrl.u32 %v776, 7
      %v778 = vsub.s32 %v775, %v777
      %v779 = vrot.slane %v751, %v778
      %v780 = vcombine.high %v758, %v758
      %v781 = vcombine.high %v765, %v765
      %v782 = vcombine.high %v772, %v772
      %v783 = vcombine.high %v518, %v518
      %v785 = vunpack.c.l.s4 1966171168
      %v786 = vunpack.c.0.s8 %v785
      %v787 = vlaneseq
      %v788 = vshrl.u32 %v787, 7
      %v789 = vsub.s32 %v786, %v788
      %v790 = vrot.slane %v518, %v789
      %v792 = vunpack.c.l.s4 1966171168
      %v793 = vunpack.c.0.s8 %v792
      %v794 = vlaneseq
      %v795 = vshrl.u32 %v794, 7
      %v796 = vsub.s32 %v793, %v795
      %v797 = vrot.slane %v783, %v796
      %v798 = vcombine.high %v790, %v790
      %v799 = vcombine.high %v797, %v797
      %v801 = vunpack.c.l.s4 1966171168
      %v802 = vunpack.c.0.s8 %v801
      %v803 = vlaneseq
      %v804 = vshrl.u32 %v803, 7
      %v805 = vsub.s32 %v802, %v804
      %v806 = vrot.slane %v790, %v805
      %v808 = vunpack.c.l.s4 1966171168
      %v809 = vunpack.c.0.s8 %v808
      %v810 = vlaneseq
      %v811 = vshrl.u32 %v810, 7
      %v812 = vsub.s32 %v809, %v811
      %v813 = vrot.slane %v797, %v812
      %v815 = vunpack.c.l.s4 1966171168
      %v816 = vunpack.c.0.s8 %v815
      %v817 = vlaneseq
      %v818 = vshrl.u32 %v817, 7
      %v819 = vsub.s32 %v816, %v818
      %v820 = vrot.slane %v798, %v819
      %v822 = vunpack.c.l.s4 1966171168
      %v823 = vunpack.c.0.s8 %v822
      %v824 = vlaneseq
      %v825 = vshrl.u32 %v824, 7
      %v826 = vsub.s32 %v823, %v825
      %v827 = vrot.slane %v799, %v826
      %v828 = vcombine.high %v806, %v806
      %v829 = vcombine.high %v813, %v813
      %v830 = vcombine.high %v820, %v820
      %v831 = vcombine.high %v520, %v520
      %v833 = vunpack.c.l.s4 1966171168
      %v834 = vunpack.c.0.s8 %v833
      %v835 = vlaneseq
      %v836 = vshrl.u32 %v835, 7
      %v837 = vsub.s32 %v834, %v836
      %v838 = vrot.slane %v520, %v837
      %v840 = vunpack.c.l.s4 1966171168
      %v841 = vunpack.c.0.s8 %v840
      %v842 = vlaneseq
      %v843 = vshrl.u32 %v842, 7
      %v844 = vsub.s32 %v841, %v843
      %v845 = vrot.slane %v831, %v844
      %v846 = vcombine.high %v838, %v838
      %v847 = vcombine.high %v845, %v845
      %v849 = vunpack.c.l.s4 1966171168
      %v850 = vunpack.c.0.s8 %v849
      %v851 = vlaneseq
      %v852 = vshrl.u32 %v851, 7
      %v853 = vsub.s32 %v850, %v852
      %v854 = vrot.slane %v838, %v853
      %v856 = vunpack.c.l.s4 1966171168
      %v857 = vunpack.c.0.s8 %v856
      %v858 = vlaneseq
      %v859 = vshrl.u32 %v858, 7
      %v860 = vsub.s32 %v857, %v859
      %v861 = vrot.slane %v845, %v860
      %v863 = vunpack.c.l.s4 1966171168
      %v864 = vunpack.c.0.s8 %v863
      %v865 = vlaneseq
      %v866 = vshrl.u32 %v865, 7
      %v867 = vsub.s32 %v864, %v866
      %v868 = vrot.slane %v846, %v867
      %v870 = vunpack.c.l.s4 1966171168
      %v871 = vunpack.c.0.s8 %v870
      %v872 = vlaneseq
      %v873 = vshrl.u32 %v872, 7
      %v874 = vsub.s32 %v871, %v873
      %v875 = vrot.slane %v847, %v874
      %v876 = vcombine.high %v854, %v854
      %v877 = vcombine.high %v861, %v861
      %v878 = vcombine.high %v868, %v868
      %v879 = vcombine.high %v522, %v522
      %v881 = vunpack.c.l.s4 1966171168
      %v882 = vunpack.c.0.s8 %v881
      %v883 = vlaneseq
      %v884 = vshrl.u32 %v883, 7
      %v885 = vsub.s32 %v882, %v884
      %v886 = vrot.slane %v522, %v885
      %v888 = vunpack.c.l.s4 1966171168
      %v889 = vunpack.c.0.s8 %v888
      %v890 = vlaneseq
      %v891 = vshrl.u32 %v890, 7
      %v892 = vsub.s32 %v889, %v891
      %v893 = vrot.slane %v879, %v892
      %v894 = vcombine.high %v886, %v886
      %v895 = vcombine.high %v893, %v893
      %v897 = vunpack.c.l.s4 1966171168
      %v898 = vunpack.c.0.s8 %v897
      %v899 = vlaneseq
      %v900 = vshrl.u32 %v899, 7
      %v901 = vsub.s32 %v898, %v900
      %v902 = vrot.slane %v886, %v901
      %v904 = vunpack.c.l.s4 1966171168
      %v905 = vunpack.c.0.s8 %v904
      %v906 = vlaneseq
      %v907 = vshrl.u32 %v906, 7
      %v908 = vsub.s32 %v905, %v907
      %v909 = vrot.slane %v893, %v908
      %v911 = vunpack.c.l.s4 1966171168
      %v912 = vunpack.c.0.s8 %v911
      %v913 = vlaneseq
      %v914 = vshrl.u32 %v913, 7
      %v915 = vsub.s32 %v912, %v914
      %v916 = vrot.slane %v894, %v915
      %v918 = vunpack.c.l.s4 1966171168
      %v919 = vunpack.c.0.s8 %v918
      %v920 = vlaneseq
      %v921 = vshrl.u32 %v920, 7
      %v922 = vsub.s32 %v919, %v921
      %v923 = vrot.slane %v895, %v922
      %v924 = vcombine.high %v902, %v902
      %v925 = vcombine.high %v909, %v909
      %v926 = vcombine.high %v916, %v916
      %v927 = vcombine.low %v566, %v580
      %v928 = vcombine.low %v588, %v590
      %v929 = vcombine.low %v573, %v587
      %v930 = vcombine.low %v589, %v614
      %v932 = vunpack.c.l.s4 1966171168
      %v933 = vunpack.c.0.s8 %v932
      %v934 = vlaneseq
      %v935 = vshrl.u32 %v934, 7
      %v936 = vsub.s32 %v933, %v935
      %v937 = vrot.slane %v927, %v936
      %v939 = vunpack.c.l.s4 1966171168
      %v940 = vunpack.c.0.s8 %v939
      %v941 = vlaneseq
      %v942 = vshrl.u32 %v941, 7
      %v943 = vsub.s32 %v940, %v942
      %v944 = vrot.slane %v928, %v943
      %v946 = vunpack.c.l.s4 1966171168
      %v947 = vunpack.c.0.s8 %v946
      %v948 = vlaneseq
      %v949 = vshrl.u32 %v948, 7
      %v950 = vsub.s32 %v947, %v949
      %v951 = vrot.slane %v929, %v950
      %v953 = vunpack.c.l.s4 1966171168
      %v954 = vunpack.c.0.s8 %v953
      %v955 = vlaneseq
      %v956 = vshrl.u32 %v955, 7
      %v957 = vsub.s32 %v954, %v956
      %v958 = vrot.slane %v930, %v957
      %v959 = vcombine.low %v937, %v944
      %v960 = vcombine.low %v951, %v958
      %v962 = vunpack.c.l.s4 1966171168
      %v963 = vunpack.c.0.s8 %v962
      %v964 = vlaneseq
      %v965 = vshrl.u32 %v964, 7
      %v966 = vsub.s32 %v963, %v965
      %v967 = vrot.slane %v959, %v966
      %v969 = vunpack.c.l.s4 1966171168
      %v970 = vunpack.c.0.s8 %v969
      %v971 = vlaneseq
      %v972 = vshrl.u32 %v971, 7
      %v973 = vsub.s32 %v970, %v972
      %v974 = vrot.slane %v960, %v973
      %v975 = vcombine.low %v967, %v974
      %v976 = vcombine.low %v628, %v636
      %v977 = vcombine.low %v638, %v621
      %v978 = vcombine.low %v635, %v637
      %v979 = vcombine.low %v662, %v676
      %v981 = vunpack.c.l.s4 1966171168
      %v982 = vunpack.c.0.s8 %v981
      %v983 = vlaneseq
      %v984 = vshrl.u32 %v983, 7
      %v985 = vsub.s32 %v982, %v984
      %v986 = vrot.slane %v976, %v985
      %v988 = vunpack.c.l.s4 1966171168
      %v989 = vunpack.c.0.s8 %v988
      %v990 = vlaneseq
      %v991 = vshrl.u32 %v990, 7
      %v992 = vsub.s32 %v989, %v991
      %v993 = vrot.slane %v977, %v992
      %v995 = vunpack.c.l.s4 1966171168
      %v996 = vunpack.c.0.s8 %v995
      %v997 = vlaneseq
      %v998 = vshrl.u32 %v997, 7
      %v999 = vsub.s32 %v996, %v998
      %v1000 = vrot.slane %v978, %v999
      %v1002 = vunpack.c.l.s4 1966171168
      %v1003 = vunpack.c.0.s8 %v1002
      %v1004 = vlaneseq
      %v1005 = vshrl.u32 %v1004, 7
      %v1006 = vsub.s32 %v1003, %v1005
      %v1007 = vrot.slane %v979, %v1006
      %v1008 = vcombine.low %v986, %v993
      %v1009 = vcombine.low %v1000, %v1007
      %v1011 = vunpack.c.l.s4 1966171168
      %v1012 = vunpack.c.0.s8 %v1011
      %v1013 = vlaneseq
      %v1014 = vshrl.u32 %v1013, 7
      %v1015 = vsub.s32 %v1012, %v1014
      %v1016 = vrot.slane %v1008, %v1015
      %v1018 = vunpack.c.l.s4 1966171168
      %v1019 = vunpack.c.0.s8 %v1018
      %v1020 = vlaneseq
      %v1021 = vshrl.u32 %v1020, 7
      %v1022 = vsub.s32 %v1019, %v1021
      %v1023 = vrot.slane %v1009, %v1022
      %v1024 = vcombine.low %v1016, %v1023
      %v1025 = vcombine.low %v684, %v686
      %v1026 = vcombine.low %v669, %v683
      %v1027 = vcombine.low %v685, %v710
      %v1028 = vcombine.low %v724, %v732
      %v1030 = vunpack.c.l.s4 1966171168
      %v1031 = vunpack.c.0.s8 %v1030
      %v1032 = vlaneseq
      %v1033 = vshrl.u32 %v1032, 7
      %v1034 = vsub.s32 %v1031, %v1033
      %v1035 = vrot.slane %v1025, %v1034
      %v1037 = vunpack.c.l.s4 1966171168
      %v1038 = vunpack.c.0.s8 %v1037
      %v1039 = vlaneseq
      %v1040 = vshrl.u32 %v1039, 7
      %v1041 = vsub.s32 %v1038, %v1040
      %v1042 = vrot.slane %v1026, %v1041
      %v1044 = vunpack.c.l.s4 1966171168
      %v1045 = vunpack.c.0.s8 %v1044
      %v1046 = vlaneseq
      %v1047 = vshrl.u32 %v1046, 7
      %v1048 = vsub.s32 %v1045, %v1047
      %v1049 = vrot.slane %v1027, %v1048
      %v1051 = vunpack.c.l.s4 1966171168
      %v1052 = vunpack.c.0.s8 %v1051
      %v1053 = vlaneseq
      %v1054 = vshrl.u32 %v1053, 7
      %v1055 = vsub.s32 %v1052, %v1054
      %v1056 = vrot.slane %v1028, %v1055
      %v1057 = vcombine.low %v1035, %v1042
      %v1058 = vcombine.low %v1049, %v1056
      %v1060 = vunpack.c.l.s4 1966171168
      %v1061 = vunpack.c.0.s8 %v1060
      %v1062 = vlaneseq
      %v1063 = vshrl.u32 %v1062, 7
      %v1064 = vsub.s32 %v1061, %v1063
      %v1065 = vrot.slane %v1057, %v1064
      %v1067 = vunpack.c.l.s4 1966171168
      %v1068 = vunpack.c.0.s8 %v1067
      %v1069 = vlaneseq
      %v1070 = vshrl.u32 %v1069, 7
      %v1071 = vsub.s32 %v1068, %v1070
      %v1072 = vrot.slane %v1058, %v1071
      %v1073 = vcombine.low %v1065, %v1072
      %v1074 = vcombine.low %v734, %v717
      %v1075 = vcombine.low %v731, %v733
      %v1076 = vcombine.low %v758, %v772
      %v1077 = vcombine.low %v780, %v782
      %v1079 = vunpack.c.l.s4 1966171168
      %v1080 = vunpack.c.0.s8 %v1079
      %v1081 = vlaneseq
      %v1082 = vshrl.u32 %v1081, 7
      %v1083 = vsub.s32 %v1080, %v1082
      %v1084 = vrot.slane %v1074, %v1083
      %v1086 = vunpack.c.l.s4 1966171168
      %v1087 = vunpack.c.0.s8 %v1086
      %v1088 = vlaneseq
      %v1089 = vshrl.u32 %v1088, 7
      %v1090 = vsub.s32 %v1087, %v1089
      %v1091 = vrot.slane %v1075, %v1090
      %v1093 = vunpack.c.l.s4 1966171168
      %v1094 = vunpack.c.0.s8 %v1093
      %v1095 = vlaneseq
      %v1096 = vshrl.u32 %v1095, 7
      %v1097 = vsub.s32 %v1094, %v1096
      %v1098 = vrot.slane %v1076, %v1097
      %v1100 = vunpack.c.l.s4 1966171168
      %v1101 = vunpack.c.0.s8 %v1100
      %v1102 = vlaneseq
      %v1103 = vshrl.u32 %v1102, 7
      %v1104 = vsub.s32 %v1101, %v1103
      %v1105 = vrot.slane %v1077, %v1104
      %v1106 = vcombine.low %v1084, %v1091
      %v1107 = vcombine.low %v1098, %v1105
      %v1109 = vunpack.c.l.s4 1966171168
      %v1110 = vunpack.c.0.s8 %v1109
      %v1111 = vlaneseq
      %v1112 = vshrl.u32 %v1111, 7
      %v1113 = vsub.s32 %v1110, %v1112
      %v1114 = vrot.slane %v1106, %v1113
      %v1116 = vunpack.c.l.s4 1966171168
      %v1117 = vunpack.c.0.s8 %v1116
      %v1118 = vlaneseq
      %v1119 = vshrl.u32 %v1118, 7
      %v1120 = vsub.s32 %v1117, %v1119
      %v1121 = vrot.slane %v1107, %v1120
      %v1122 = vcombine.low %v1114, %v1121
      %v1123 = vcombine.low %v765, %v779
      %v1124 = vcombine.low %v781, %v806
      %v1125 = vcombine.low %v820, %v828
      %v1126 = vcombine.low %v830, %v813
      %v1128 = vunpack.c.l.s4 1966171168
      %v1129 = vunpack.c.0.s8 %v1128
      %v1130 = vlaneseq
      %v1131 = vshrl.u32 %v1130, 7
      %v1132 = vsub.s32 %v1129, %v1131
      %v1133 = vrot.slane %v1123, %v1132
      %v1135 = vunpack.c.l.s4 1966171168
      %v1136 = vunpack.c.0.s8 %v1135
      %v1137 = vlaneseq
      %v1138 = vshrl.u32 %v1137, 7
      %v1139 = vsub.s32 %v1136, %v1138
      %v1140 = vrot.slane %v1124, %v1139
      %v1142 = vunpack.c.l.s4 1966171168
      %v1143 = vunpack.c.0.s8 %v1142
      %v1144 = vlaneseq
      %v1145 = vshrl.u32 %v1144, 7
      %v1146 = vsub.s32 %v1143, %v1145
      %v1147 = vrot.slane %v1125, %v1146
      %v1149 = vunpack.c.l.s4 1966171168
      %v1150 = vunpack.c.0.s8 %v1149
      %v1151 = vlaneseq
      %v1152 = vshrl.u32 %v1151, 7
      %v1153 = vsub.s32 %v1150, %v1152
      %v1154 = vrot.slane %v1126, %v1153
      %v1155 = vcombine.low %v1133, %v1140
      %v1156 = vcombine.low %v1147, %v1154
      %v1158 = vunpack.c.l.s4 1966171168
      %v1159 = vunpack.c.0.s8 %v1158
      %v1160 = vlaneseq
      %v1161 = vshrl.u32 %v1160, 7
      %v1162 = vsub.s32 %v1159, %v1161
      %v1163 = vrot.slane %v1155, %v1162
      %v1165 = vunpack.c.l.s4 1966171168
      %v1166 = vunpack.c.0.s8 %v1165
      %v1167 = vlaneseq
      %v1168 = vshrl.u32 %v1167, 7
      %v1169 = vsub.s32 %v1166, %v1168
      %v1170 = vrot.slane %v1156, %v1169
      %v1171 = vcombine.low %v1163, %v1170
      %v1172 = vcombine.low %v827, %v829
      %v1173 = vcombine.low %v854, %v868
      %v1174 = vcombine.low %v876, %v878
      %v1175 = vcombine.low %v861, %v875
      %v1177 = vunpack.c.l.s4 1966171168
      %v1178 = vunpack.c.0.s8 %v1177
      %v1179 = vlaneseq
      %v1180 = vshrl.u32 %v1179, 7
      %v1181 = vsub.s32 %v1178, %v1180
      %v1182 = vrot.slane %v1172, %v1181
      %v1184 = vunpack.c.l.s4 1966171168
      %v1185 = vunpack.c.0.s8 %v1184
      %v1186 = vlaneseq
      %v1187 = vshrl.u32 %v1186, 7
      %v1188 = vsub.s32 %v1185, %v1187
      %v1189 = vrot.slane %v1173, %v1188
      %v1191 = vunpack.c.l.s4 1966171168
      %v1192 = vunpack.c.0.s8 %v1191
      %v1193 = vlaneseq
      %v1194 = vshrl.u32 %v1193, 7
      %v1195 = vsub.s32 %v1192, %v1194
      %v1196 = vrot.slane %v1174, %v1195
      %v1198 = vunpack.c.l.s4 1966171168
      %v1199 = vunpack.c.0.s8 %v1198
      %v1200 = vlaneseq
      %v1201 = vshrl.u32 %v1200, 7
      %v1202 = vsub.s32 %v1199, %v1201
      %v1203 = vrot.slane %v1175, %v1202
      %v1204 = vcombine.low %v1182, %v1189
      %v1205 = vcombine.low %v1196, %v1203
      %v1207 = vunpack.c.l.s4 1966171168
      %v1208 = vunpack.c.0.s8 %v1207
      %v1209 = vlaneseq
      %v1210 = vshrl.u32 %v1209, 7
      %v1211 = vsub.s32 %v1208, %v1210
      %v1212 = vrot.slane %v1204, %v1211
      %v1214 = vunpack.c.l.s4 1966171168
      %v1215 = vunpack.c.0.s8 %v1214
      %v1216 = vlaneseq
      %v1217 = vshrl.u32 %v1216, 7
      %v1218 = vsub.s32 %v1215, %v1217
      %v1219 = vrot.slane %v1205, %v1218
      %v1220 = vcombine.low %v1212, %v1219
      %v1221 = vcombine.low %v877, %v902
      %v1222 = vcombine.low %v916, %v924
      %v1223 = vcombine.low %v926, %v909
      %v1224 = vcombine.low %v923, %v925
      %v1226 = vunpack.c.l.s4 1966171168
      %v1227 = vunpack.c.0.s8 %v1226
      %v1228 = vlaneseq
      %v1229 = vshrl.u32 %v1228, 7
      %v1230 = vsub.s32 %v1227, %v1229
      %v1231 = vrot.slane %v1221, %v1230
      %v1233 = vunpack.c.l.s4 1966171168
      %v1234 = vunpack.c.0.s8 %v1233
      %v1235 = vlaneseq
      %v1236 = vshrl.u32 %v1235, 7
      %v1237 = vsub.s32 %v1234, %v1236
      %v1238 = vrot.slane %v1222, %v1237
      %v1240 = vunpack.c.l.s4 1966171168
      %v1241 = vunpack.c.0.s8 %v1240
      %v1242 = vlaneseq
      %v1243 = vshrl.u32 %v1242, 7
      %v1244 = vsub.s32 %v1241, %v1243
      %v1245 = vrot.slane %v1223, %v1244
      %v1247 = vunpack.c.l.s4 1966171168
      %v1248 = vunpack.c.0.s8 %v1247
      %v1249 = vlaneseq
      %v1250 = vshrl.u32 %v1249, 7
      %v1251 = vsub.s32 %v1248, %v1250
      %v1252 = vrot.slane %v1224, %v1251
      %v1253 = vcombine.low %v1231, %v1238
      %v1254 = vcombine.low %v1245, %v1252
      %v1256 = vunpack.c.l.s4 1966171168
      %v1257 = vunpack.c.0.s8 %v1256
      %v1258 = vlaneseq
      %v1259 = vshrl.u32 %v1258, 7
      %v1260 = vsub.s32 %v1257, %v1259
      %v1261 = vrot.slane %v1253, %v1260
      %v1263 = vunpack.c.l.s4 1966171168
      %v1264 = vunpack.c.0.s8 %v1263
      %v1265 = vlaneseq
      %v1266 = vshrl.u32 %v1265, 7
      %v1267 = vsub.s32 %v1264, %v1266
      %v1268 = vrot.slane %v1254, %v1267
      %v1269 = vcombine.low %v1261, %v1268
      %v1282 = vunpack.c.l.b16 %v523
      %v1283 = vunpack.c.l.b16 %v524
      %v1284 = vunpack.c.l.b16 %v525
      %v1285 = vunpack.c.l.b16 %v526
      %v1286 = vunpack.c.l.b16 %v527
      %v1287 = vunpack.c.l.b16 %v528
      %v1288 = vunpack.c.l.b16 %v529
      %v1289 = vunpack.c.l.b16 %v530
      %v1290 = vunpack.c.l.b16 %v531
      %v1291 = vunpack.c.l.b16 %v532
      %v1292 = vunpack.c.l.b16 %v533
      %v1293 = vunpack.c.l.b16 %v534
      %v1294 = vpack.c.b16 %v1283, %v1282
      %v1295 = vpack.c.b16 %v1285, %v1284
      %v1296 = vpack.c.b16 %v1287, %v1286
      %v1297 = vpack.c.b16 %v1289, %v1288
      %v1298 = vpack.c.b16 %v1291, %v1290
      %v1299 = vpack.c.b16 %v1293, %v1292
      %vm1306 = vcmask 785408
      %v1308 = vsel %vm1306, %v975, 0
      %v1311 = vsel %vm1306, %v1024, 0
      %v1314 = vsel %vm1306, %v1073, 0
      %v1317 = vsel %vm1306, %v1122, 0
      %v1320 = vsel %vm1306, %v1171, 0
      %v1323 = vsel %vm1306, %v1220, 0
      %v1326 = vsel %vm1306, %v1269, 0
      %1328 = vmatprep.subr.bf16.mxu0 0
      %1329 = vmatpush1.bf16.msra.mxu0 %v1294
      %1330 = vmatprep.subr.bf16.mxu0 0
      %1331 = vmatpush1.bf16.msra.mxu0 %v1295
      %1332 = vmatprep.subr.bf16.mxu0 0
      %1333 = vmatpush1.bf16.msra.mxu0 %v1296
      %1334 = vmatprep.subr.bf16.mxu0 0
      %1335 = vmatpush1.bf16.msra.mxu0 %v1297
      %1336 = vmatprep.subr.bf16.mxu0 0
      %1337 = vmatpush1.bf16.msra.mxu0 %v1298
      %1338 = vmatprep.subr.bf16.mxu0 0
      %1339 = vmatpush1.bf16.msra.mxu0 %v1299
      %1340 = vmatprep.subr.bf16.mxu0 0
      %1341 = vmatpush1.bf16.msra.mxu0 0
      %1342 = vmatprep.subr.bf16.mxu0 0
      %1343 = vmatpush1.bf16.msra.mxu0 0
      %1344 = vmatprep.subr.bf16.mxu0 0
      %1345 = vmatpush1.bf16.msra.mxu0 0
      %1346 = vmatprep.subr.bf16.mxu0 0
      %1347 = vmatpush1.bf16.msra.mxu0 0
      %1348 = vmatprep.subr.bf16.mxu0 0
      %1349 = vmatpush1.bf16.msra.mxu0 0
      %1350 = vmatprep.subr.bf16.mxu0 0
      %1351 = vmatpush1.bf16.msra.mxu0 0
      %1352 = vmatprep.subr.bf16.mxu0 0
      %1353 = vmatpush1.bf16.msra.mxu0 0
      %1354 = vmatprep.subr.bf16.mxu0 0
      %1355 = vmatpush1.bf16.msra.mxu0 0
      %1356 = vmatprep.subr.bf16.mxu0 0
      %1357 = vmatpush1.bf16.msra.mxu0 0
      %1358 = vmatprep.subr.bf16.mxu0 0
      %1359 = vmatpush1.bf16.msra.mxu0 0
      %1360 = vmatprep.mubr.bf16.mxu0 0
      %1361 = vmatmul.mubr.bf16.gmra.mrb[0].mxu0 %v1308
      %v1362 = vpop.f32.mrb[0].mxu0
      %v1363 = vadd.f32 0.0, %v1362
      %v1364 = vpop.f32.mrb[0].mxu0
      %v1365 = vpop.f32.mrb[0].mxu0
      %v1366 = vadd.f32 0.0, %v1365
      %v1367 = vpop.f32.mrb[0].mxu0
      %1368 = vmatprep.mubr.bf16.mxu0 0
      %1369 = vmatmul.mubr.bf16.gmra.mrb[0].mxu0 %v1311
      %v1370 = vpop.f32.mrb[0].mxu0
      %v1371 = vadd.f32 0.0, %v1370
      %v1372 = vpop.f32.mrb[0].mxu0
      %v1373 = vpop.f32.mrb[0].mxu0
      %v1374 = vadd.f32 0.0, %v1373
      %v1375 = vpop.f32.mrb[0].mxu0
      %1376 = vmatprep.mubr.bf16.mxu0 0
      %1377 = vmatmul.mubr.bf16.gmra.mrb[0].mxu0 %v1314
      %v1378 = vpop.f32.mrb[0].mxu0
      %v1379 = vadd.f32 0.0, %v1378
      %v1380 = vpop.f32.mrb[0].mxu0
      %v1381 = vpop.f32.mrb[0].mxu0
      %v1382 = vadd.f32 0.0, %v1381
      %v1383 = vpop.f32.mrb[0].mxu0
      %1384 = vmatprep.mubr.bf16.mxu0 0
      %1385 = vmatmul.mubr.bf16.gmra.mrb[0].mxu0 %v1317
      %v1386 = vpop.f32.mrb[0].mxu0
      %v1387 = vadd.f32 0.0, %v1386
      %v1388 = vpop.f32.mrb[0].mxu0
      %v1389 = vpop.f32.mrb[0].mxu0
      %v1390 = vadd.f32 0.0, %v1389
      %v1391 = vpop.f32.mrb[0].mxu0
      %1392 = vmatprep.mubr.bf16.mxu0 0
      %1393 = vmatmul.mubr.bf16.gmra.mrb[0].mxu0 %v1320
      %v1394 = vpop.f32.mrb[0].mxu0
      %v1395 = vadd.f32 0.0, %v1394
      %v1396 = vpop.f32.mrb[0].mxu0
      %v1397 = vpop.f32.mrb[0].mxu0
      %v1398 = vadd.f32 0.0, %v1397
      %v1399 = vpop.f32.mrb[0].mxu0
      %1400 = vmatprep.mubr.bf16.mxu0 0
      %1401 = vmatmul.mubr.bf16.gmra.mrb[0].mxu0 %v1323
      %v1402 = vpop.f32.mrb[0].mxu0
      %v1403 = vadd.f32 0.0, %v1402
      %v1404 = vpop.f32.mrb[0].mxu0
      %v1405 = vpop.f32.mrb[0].mxu0
      %v1406 = vadd.f32 0.0, %v1405
      %v1407 = vpop.f32.mrb[0].mxu0
      %1408 = vmatprep.mubr.bf16.mxu0 0
      %1409 = vmatmul.mubr.bf16.gmra.mrb[0].mxu0 %v1326
      %v1410 = vpop.f32.mrb[0].mxu0
      %v1411 = vadd.f32 0.0, %v1410
      %v1412 = vpop.f32.mrb[0].mxu0
      %v1413 = vpop.f32.mrb[0].mxu0
      %v1414 = vadd.f32 0.0, %v1413
      %v1415 = vpop.f32.mrb[0].mxu0
      %1416 = vdwg.mxu0
      %v1431 = vcombine.high %v1363, %v1363
      %v1433 = vunpack.c.l.s4 1983009808
      %v1434 = vunpack.c.0.s8 %v1433
      %v1435 = vlaneseq
      %v1436 = vshrl.u32 %v1435, 7
      %v1437 = vsub.s32 %v1434, %v1436
      %v1438 = vrot.slane %v1363, %v1437
      %v1440 = vunpack.c.l.s4 1983009808
      %v1441 = vunpack.c.0.s8 %v1440
      %v1442 = vlaneseq
      %v1443 = vshrl.u32 %v1442, 7
      %v1444 = vsub.s32 %v1441, %v1443
      %v1445 = vrot.slane %v1431, %v1444
      %v1446 = vcombine.high %v1438, %v1438
      %v1447 = vcombine.high %v1445, %v1445
      %v1448 = vcombine.high %v1366, %v1366
      %v1450 = vunpack.c.l.s4 1983009808
      %v1451 = vunpack.c.0.s8 %v1450
      %v1452 = vlaneseq
      %v1453 = vshrl.u32 %v1452, 7
      %v1454 = vsub.s32 %v1451, %v1453
      %v1455 = vrot.slane %v1366, %v1454
      %v1457 = vunpack.c.l.s4 1983009808
      %v1458 = vunpack.c.0.s8 %v1457
      %v1459 = vlaneseq
      %v1460 = vshrl.u32 %v1459, 7
      %v1461 = vsub.s32 %v1458, %v1460
      %v1462 = vrot.slane %v1448, %v1461
      %v1463 = vcombine.high %v1455, %v1455
      %v1464 = vcombine.high %v1462, %v1462
      %v1465 = vcombine.high %v1371, %v1371
      %v1467 = vunpack.c.l.s4 1983009808
      %v1468 = vunpack.c.0.s8 %v1467
      %v1469 = vlaneseq
      %v1470 = vshrl.u32 %v1469, 7
      %v1471 = vsub.s32 %v1468, %v1470
      %v1472 = vrot.slane %v1371, %v1471
      %v1474 = vunpack.c.l.s4 1983009808
      %v1475 = vunpack.c.0.s8 %v1474
      %v1476 = vlaneseq
      %v1477 = vshrl.u32 %v1476, 7
      %v1478 = vsub.s32 %v1475, %v1477
      %v1479 = vrot.slane %v1465, %v1478
      %v1480 = vcombine.high %v1472, %v1472
      %v1481 = vcombine.high %v1479, %v1479
      %v1482 = vcombine.high %v1374, %v1374
      %v1484 = vunpack.c.l.s4 1983009808
      %v1485 = vunpack.c.0.s8 %v1484
      %v1486 = vlaneseq
      %v1487 = vshrl.u32 %v1486, 7
      %v1488 = vsub.s32 %v1485, %v1487
      %v1489 = vrot.slane %v1374, %v1488
      %v1491 = vunpack.c.l.s4 1983009808
      %v1492 = vunpack.c.0.s8 %v1491
      %v1493 = vlaneseq
      %v1494 = vshrl.u32 %v1493, 7
      %v1495 = vsub.s32 %v1492, %v1494
      %v1496 = vrot.slane %v1482, %v1495
      %v1497 = vcombine.high %v1489, %v1489
      %v1498 = vcombine.high %v1496, %v1496
      %v1499 = vcombine.high %v1379, %v1379
      %v1501 = vunpack.c.l.s4 1983009808
      %v1502 = vunpack.c.0.s8 %v1501
      %v1503 = vlaneseq
      %v1504 = vshrl.u32 %v1503, 7
      %v1505 = vsub.s32 %v1502, %v1504
      %v1506 = vrot.slane %v1379, %v1505
      %v1508 = vunpack.c.l.s4 1983009808
      %v1509 = vunpack.c.0.s8 %v1508
      %v1510 = vlaneseq
      %v1511 = vshrl.u32 %v1510, 7
      %v1512 = vsub.s32 %v1509, %v1511
      %v1513 = vrot.slane %v1499, %v1512
      %v1514 = vcombine.high %v1506, %v1506
      %v1515 = vcombine.high %v1513, %v1513
      %v1516 = vcombine.high %v1382, %v1382
      %v1518 = vunpack.c.l.s4 1983009808
      %v1519 = vunpack.c.0.s8 %v1518
      %v1520 = vlaneseq
      %v1521 = vshrl.u32 %v1520, 7
      %v1522 = vsub.s32 %v1519, %v1521
      %v1523 = vrot.slane %v1382, %v1522
      %v1525 = vunpack.c.l.s4 1983009808
      %v1526 = vunpack.c.0.s8 %v1525
      %v1527 = vlaneseq
      %v1528 = vshrl.u32 %v1527, 7
      %v1529 = vsub.s32 %v1526, %v1528
      %v1530 = vrot.slane %v1516, %v1529
      %v1531 = vcombine.high %v1523, %v1523
      %v1532 = vcombine.high %v1530, %v1530
      %v1533 = vcombine.high %v1387, %v1387
      %v1535 = vunpack.c.l.s4 1983009808
      %v1536 = vunpack.c.0.s8 %v1535
      %v1537 = vlaneseq
      %v1538 = vshrl.u32 %v1537, 7
      %v1539 = vsub.s32 %v1536, %v1538
      %v1540 = vrot.slane %v1387, %v1539
      %v1542 = vunpack.c.l.s4 1983009808
      %v1543 = vunpack.c.0.s8 %v1542
      %v1544 = vlaneseq
      %v1545 = vshrl.u32 %v1544, 7
      %v1546 = vsub.s32 %v1543, %v1545
      %v1547 = vrot.slane %v1533, %v1546
      %v1548 = vcombine.high %v1540, %v1540
      %v1549 = vcombine.high %v1547, %v1547
      %v1550 = vcombine.high %v1390, %v1390
      %v1552 = vunpack.c.l.s4 1983009808
      %v1553 = vunpack.c.0.s8 %v1552
      %v1554 = vlaneseq
      %v1555 = vshrl.u32 %v1554, 7
      %v1556 = vsub.s32 %v1553, %v1555
      %v1557 = vrot.slane %v1390, %v1556
      %v1559 = vunpack.c.l.s4 1983009808
      %v1560 = vunpack.c.0.s8 %v1559
      %v1561 = vlaneseq
      %v1562 = vshrl.u32 %v1561, 7
      %v1563 = vsub.s32 %v1560, %v1562
      %v1564 = vrot.slane %v1550, %v1563
      %v1565 = vcombine.high %v1557, %v1557
      %v1566 = vcombine.high %v1564, %v1564
      %v1567 = vcombine.high %v1395, %v1395
      %v1569 = vunpack.c.l.s4 1983009808
      %v1570 = vunpack.c.0.s8 %v1569
      %v1571 = vlaneseq
      %v1572 = vshrl.u32 %v1571, 7
      %v1573 = vsub.s32 %v1570, %v1572
      %v1574 = vrot.slane %v1395, %v1573
      %v1576 = vunpack.c.l.s4 1983009808
      %v1577 = vunpack.c.0.s8 %v1576
      %v1578 = vlaneseq
      %v1579 = vshrl.u32 %v1578, 7
      %v1580 = vsub.s32 %v1577, %v1579
      %v1581 = vrot.slane %v1567, %v1580
      %v1582 = vcombine.high %v1574, %v1574
      %v1583 = vcombine.high %v1581, %v1581
      %v1584 = vcombine.high %v1398, %v1398
      %v1586 = vunpack.c.l.s4 1983009808
      %v1587 = vunpack.c.0.s8 %v1586
      %v1588 = vlaneseq
      %v1589 = vshrl.u32 %v1588, 7
      %v1590 = vsub.s32 %v1587, %v1589
      %v1591 = vrot.slane %v1398, %v1590
      %v1593 = vunpack.c.l.s4 1983009808
      %v1594 = vunpack.c.0.s8 %v1593
      %v1595 = vlaneseq
      %v1596 = vshrl.u32 %v1595, 7
      %v1597 = vsub.s32 %v1594, %v1596
      %v1598 = vrot.slane %v1584, %v1597
      %v1599 = vcombine.high %v1591, %v1591
      %v1600 = vcombine.high %v1598, %v1598
      %v1601 = vcombine.high %v1403, %v1403
      %v1603 = vunpack.c.l.s4 1983009808
      %v1604 = vunpack.c.0.s8 %v1603
      %v1605 = vlaneseq
      %v1606 = vshrl.u32 %v1605, 7
      %v1607 = vsub.s32 %v1604, %v1606
      %v1608 = vrot.slane %v1403, %v1607
      %v1610 = vunpack.c.l.s4 1983009808
      %v1611 = vunpack.c.0.s8 %v1610
      %v1612 = vlaneseq
      %v1613 = vshrl.u32 %v1612, 7
      %v1614 = vsub.s32 %v1611, %v1613
      %v1615 = vrot.slane %v1601, %v1614
      %v1616 = vcombine.high %v1608, %v1608
      %v1617 = vcombine.high %v1615, %v1615
      %v1618 = vcombine.high %v1406, %v1406
      %v1620 = vunpack.c.l.s4 1983009808
      %v1621 = vunpack.c.0.s8 %v1620
      %v1622 = vlaneseq
      %v1623 = vshrl.u32 %v1622, 7
      %v1624 = vsub.s32 %v1621, %v1623
      %v1625 = vrot.slane %v1406, %v1624
      %v1627 = vunpack.c.l.s4 1983009808
      %v1628 = vunpack.c.0.s8 %v1627
      %v1629 = vlaneseq
      %v1630 = vshrl.u32 %v1629, 7
      %v1631 = vsub.s32 %v1628, %v1630
      %v1632 = vrot.slane %v1618, %v1631
      %v1633 = vcombine.high %v1625, %v1625
      %v1634 = vcombine.high %v1632, %v1632
      %v1635 = vcombine.high %v1411, %v1411
      %v1637 = vunpack.c.l.s4 1983009808
      %v1638 = vunpack.c.0.s8 %v1637
      %v1639 = vlaneseq
      %v1640 = vshrl.u32 %v1639, 7
      %v1641 = vsub.s32 %v1638, %v1640
      %v1642 = vrot.slane %v1411, %v1641
      %v1644 = vunpack.c.l.s4 1983009808
      %v1645 = vunpack.c.0.s8 %v1644
      %v1646 = vlaneseq
      %v1647 = vshrl.u32 %v1646, 7
      %v1648 = vsub.s32 %v1645, %v1647
      %v1649 = vrot.slane %v1635, %v1648
      %v1650 = vcombine.high %v1642, %v1642
      %v1651 = vcombine.high %v1649, %v1649
      %v1652 = vcombine.high %v1414, %v1414
      %v1654 = vunpack.c.l.s4 1983009808
      %v1655 = vunpack.c.0.s8 %v1654
      %v1656 = vlaneseq
      %v1657 = vshrl.u32 %v1656, 7
      %v1658 = vsub.s32 %v1655, %v1657
      %v1659 = vrot.slane %v1414, %v1658
      %v1661 = vunpack.c.l.s4 1983009808
      %v1662 = vunpack.c.0.s8 %v1661
      %v1663 = vlaneseq
      %v1664 = vshrl.u32 %v1663, 7
      %v1665 = vsub.s32 %v1662, %v1664
      %v1666 = vrot.slane %v1652, %v1665
      %v1667 = vcombine.high %v1659, %v1659
      %v1668 = vcombine.high %v1666, %v1666
      %v1669 = vcombine.low %v1438, %v1446
      %v1670 = vcombine.low %v1445, %v1447
      %v1672 = vunpack.c.l.s4 1983009808
      %v1673 = vunpack.c.0.s8 %v1672
      %v1674 = vlaneseq
      %v1675 = vshrl.u32 %v1674, 7
      %v1676 = vsub.s32 %v1673, %v1675
      %v1677 = vrot.slane %v1669, %v1676
      %v1679 = vunpack.c.l.s4 1983009808
      %v1680 = vunpack.c.0.s8 %v1679
      %v1681 = vlaneseq
      %v1682 = vshrl.u32 %v1681, 7
      %v1683 = vsub.s32 %v1680, %v1682
      %v1684 = vrot.slane %v1670, %v1683
      %v1685 = vcombine.low %v1677, %v1684
      %v1686 = vcombine.low %v1455, %v1463
      %v1688 = vunpack.c.l.s4 1983009808
      %v1689 = vunpack.c.0.s8 %v1688
      %v1690 = vlaneseq
      %v1691 = vshrl.u32 %v1690, 7
      %v1692 = vsub.s32 %v1689, %v1691
      %v1693 = vrot.slane %v1686, %v1692
      %v1695 = vunpack.c.l.s4 1983009808
      %v1696 = vunpack.c.0.s8 %v1695
      %v1697 = vlaneseq
      %v1698 = vshrl.u32 %v1697, 7
      %v1699 = vsub.s32 %v1696, %v1698
      %v1700 = vrot.slane %v1462, %v1699
      %v1701 = vcombine.low %v1693, %v1700
      %v1702 = vcombine.low %v1464, %v1472
      %v1703 = vcombine.low %v1480, %v1479
      %v1705 = vunpack.c.l.s4 1983009808
      %v1706 = vunpack.c.0.s8 %v1705
      %v1707 = vlaneseq
      %v1708 = vshrl.u32 %v1707, 7
      %v1709 = vsub.s32 %v1706, %v1708
      %v1710 = vrot.slane %v1702, %v1709
      %v1712 = vunpack.c.l.s4 1983009808
      %v1713 = vunpack.c.0.s8 %v1712
      %v1714 = vlaneseq
      %v1715 = vshrl.u32 %v1714, 7
      %v1716 = vsub.s32 %v1713, %v1715
      %v1717 = vrot.slane %v1703, %v1716
      %v1718 = vcombine.low %v1710, %v1717
      %v1719 = vcombine.low %v1481, %v1489
      %v1721 = vunpack.c.l.s4 1983009808
      %v1722 = vunpack.c.0.s8 %v1721
      %v1723 = vlaneseq
      %v1724 = vshrl.u32 %v1723, 7
      %v1725 = vsub.s32 %v1722, %v1724
      %v1726 = vrot.slane %v1719, %v1725
      %v1728 = vunpack.c.l.s4 1983009808
      %v1729 = vunpack.c.0.s8 %v1728
      %v1730 = vlaneseq
      %v1731 = vshrl.u32 %v1730, 7
      %v1732 = vsub.s32 %v1729, %v1731
      %v1733 = vrot.slane %v1497, %v1732
      %v1734 = vcombine.low %v1726, %v1733
      %v1735 = vcombine.low %v1496, %v1498
      %v1736 = vcombine.low %v1506, %v1514
      %v1738 = vunpack.c.l.s4 1983009808
      %v1739 = vunpack.c.0.s8 %v1738
      %v1740 = vlaneseq
      %v1741 = vshrl.u32 %v1740, 7
      %v1742 = vsub.s32 %v1739, %v1741
      %v1743 = vrot.slane %v1735, %v1742
      %v1745 = vunpack.c.l.s4 1983009808
      %v1746 = vunpack.c.0.s8 %v1745
      %v1747 = vlaneseq
      %v1748 = vshrl.u32 %v1747, 7
      %v1749 = vsub.s32 %v1746, %v1748
      %v1750 = vrot.slane %v1736, %v1749
      %v1751 = vcombine.low %v1743, %v1750
      %v1752 = vcombine.low %v1513, %v1515
      %v1754 = vunpack.c.l.s4 1983009808
      %v1755 = vunpack.c.0.s8 %v1754
      %v1756 = vlaneseq
      %v1757 = vshrl.u32 %v1756, 7
      %v1758 = vsub.s32 %v1755, %v1757
      %v1759 = vrot.slane %v1752, %v1758
      %v1761 = vunpack.c.l.s4 1983009808
      %v1762 = vunpack.c.0.s8 %v1761
      %v1763 = vlaneseq
      %v1764 = vshrl.u32 %v1763, 7
      %v1765 = vsub.s32 %v1762, %v1764
      %v1766 = vrot.slane %v1523, %v1765
      %v1767 = vcombine.low %v1759, %v1766
      %v1768 = vcombine.low %v1531, %v1530
      %v1769 = vcombine.low %v1532, %v1540
      %v1771 = vunpack.c.l.s4 1983009808
      %v1772 = vunpack.c.0.s8 %v1771
      %v1773 = vlaneseq
      %v1774 = vshrl.u32 %v1773, 7
      %v1775 = vsub.s32 %v1772, %v1774
      %v1776 = vrot.slane %v1768, %v1775
      %v1778 = vunpack.c.l.s4 1983009808
      %v1779 = vunpack.c.0.s8 %v1778
      %v1780 = vlaneseq
      %v1781 = vshrl.u32 %v1780, 7
      %v1782 = vsub.s32 %v1779, %v1781
      %v1783 = vrot.slane %v1769, %v1782
      %v1784 = vcombine.low %v1776, %v1783
      %v1785 = vcombine.low %v1548, %v1547
      %v1787 = vunpack.c.l.s4 1983009808
      %v1788 = vunpack.c.0.s8 %v1787
      %v1789 = vlaneseq
      %v1790 = vshrl.u32 %v1789, 7
      %v1791 = vsub.s32 %v1788, %v1790
      %v1792 = vrot.slane %v1785, %v1791
      %v1794 = vunpack.c.l.s4 1983009808
      %v1795 = vunpack.c.0.s8 %v1794
      %v1796 = vlaneseq
      %v1797 = vshrl.u32 %v1796, 7
      %v1798 = vsub.s32 %v1795, %v1797
      %v1799 = vrot.slane %v1549, %v1798
      %v1800 = vcombine.low %v1792, %v1799
      %v1801 = vcombine.low %v1557, %v1565
      %v1802 = vcombine.low %v1564, %v1566
      %v1804 = vunpack.c.l.s4 1983009808
      %v1805 = vunpack.c.0.s8 %v1804
      %v1806 = vlaneseq
      %v1807 = vshrl.u32 %v1806, 7
      %v1808 = vsub.s32 %v1805, %v1807
      %v1809 = vrot.slane %v1801, %v1808
      %v1811 = vunpack.c.l.s4 1983009808
      %v1812 = vunpack.c.0.s8 %v1811
      %v1813 = vlaneseq
      %v1814 = vshrl.u32 %v1813, 7
      %v1815 = vsub.s32 %v1812, %v1814
      %v1816 = vrot.slane %v1802, %v1815
      %v1817 = vcombine.low %v1809, %v1816
      %v1818 = vcombine.low %v1574, %v1582
      %v1820 = vunpack.c.l.s4 1983009808
      %v1821 = vunpack.c.0.s8 %v1820
      %v1822 = vlaneseq
      %v1823 = vshrl.u32 %v1822, 7
      %v1824 = vsub.s32 %v1821, %v1823
      %v1825 = vrot.slane %v1818, %v1824
      %v1827 = vunpack.c.l.s4 1983009808
      %v1828 = vunpack.c.0.s8 %v1827
      %v1829 = vlaneseq
      %v1830 = vshrl.u32 %v1829, 7
      %v1831 = vsub.s32 %v1828, %v1830
      %v1832 = vrot.slane %v1581, %v1831
      %v1833 = vcombine.low %v1825, %v1832
      %v1834 = vcombine.low %v1583, %v1591
      %v1835 = vcombine.low %v1599, %v1598
      %v1837 = vunpack.c.l.s4 1983009808
      %v1838 = vunpack.c.0.s8 %v1837
      %v1839 = vlaneseq
      %v1840 = vshrl.u32 %v1839, 7
      %v1841 = vsub.s32 %v1838, %v1840
      %v1842 = vrot.slane %v1834, %v1841
      %v1844 = vunpack.c.l.s4 1983009808
      %v1845 = vunpack.c.0.s8 %v1844
      %v1846 = vlaneseq
      %v1847 = vshrl.u32 %v1846, 7
      %v1848 = vsub.s32 %v1845, %v1847
      %v1849 = vrot.slane %v1835, %v1848
      %v1850 = vcombine.low %v1842, %v1849
      %v1851 = vcombine.low %v1600, %v1608
      %v1853 = vunpack.c.l.s4 1983009808
      %v1854 = vunpack.c.0.s8 %v1853
      %v1855 = vlaneseq
      %v1856 = vshrl.u32 %v1855, 7
      %v1857 = vsub.s32 %v1854, %v1856
      %v1858 = vrot.slane %v1851, %v1857
      %v1860 = vunpack.c.l.s4 1983009808
      %v1861 = vunpack.c.0.s8 %v1860
      %v1862 = vlaneseq
      %v1863 = vshrl.u32 %v1862, 7
      %v1864 = vsub.s32 %v1861, %v1863
      %v1865 = vrot.slane %v1616, %v1864
      %v1866 = vcombine.low %v1858, %v1865
      %v1867 = vcombine.low %v1615, %v1617
      %v1868 = vcombine.low %v1625, %v1633
      %v1870 = vunpack.c.l.s4 1983009808
      %v1871 = vunpack.c.0.s8 %v1870
      %v1872 = vlaneseq
      %v1873 = vshrl.u32 %v1872, 7
      %v1874 = vsub.s32 %v1871, %v1873
      %v1875 = vrot.slane %v1867, %v1874
      %v1877 = vunpack.c.l.s4 1983009808
      %v1878 = vunpack.c.0.s8 %v1877
      %v1879 = vlaneseq
      %v1880 = vshrl.u32 %v1879, 7
      %v1881 = vsub.s32 %v1878, %v1880
      %v1882 = vrot.slane %v1868, %v1881
      %v1883 = vcombine.low %v1875, %v1882
      %v1884 = vcombine.low %v1632, %v1634
      %v1886 = vunpack.c.l.s4 1983009808
      %v1887 = vunpack.c.0.s8 %v1886
      %v1888 = vlaneseq
      %v1889 = vshrl.u32 %v1888, 7
      %v1890 = vsub.s32 %v1887, %v1889
      %v1891 = vrot.slane %v1884, %v1890
      %v1893 = vunpack.c.l.s4 1983009808
      %v1894 = vunpack.c.0.s8 %v1893
      %v1895 = vlaneseq
      %v1896 = vshrl.u32 %v1895, 7
      %v1897 = vsub.s32 %v1894, %v1896
      %v1898 = vrot.slane %v1642, %v1897
      %v1899 = vcombine.low %v1891, %v1898
      %v1900 = vcombine.low %v1650, %v1649
      %v1901 = vcombine.low %v1651, %v1659
      %v1903 = vunpack.c.l.s4 1983009808
      %v1904 = vunpack.c.0.s8 %v1903
      %v1905 = vlaneseq
      %v1906 = vshrl.u32 %v1905, 7
      %v1907 = vsub.s32 %v1904, %v1906
      %v1908 = vrot.slane %v1900, %v1907
      %v1910 = vunpack.c.l.s4 1983009808
      %v1911 = vunpack.c.0.s8 %v1910
      %v1912 = vlaneseq
      %v1913 = vshrl.u32 %v1912, 7
      %v1914 = vsub.s32 %v1911, %v1913
      %v1915 = vrot.slane %v1901, %v1914
      %v1916 = vcombine.low %v1908, %v1915
      %v1917 = vcombine.low %v1667, %v1666
      %v1919 = vunpack.c.l.s4 1983009808
      %v1920 = vunpack.c.0.s8 %v1919
      %v1921 = vlaneseq
      %v1922 = vshrl.u32 %v1921, 7
      %v1923 = vsub.s32 %v1920, %v1922
      %v1924 = vrot.slane %v1917, %v1923
      %v1926 = vunpack.c.l.s4 1983009808
      %v1927 = vunpack.c.0.s8 %v1926
      %v1928 = vlaneseq
      %v1929 = vshrl.u32 %v1928, 7
      %v1930 = vsub.s32 %v1927, %v1929
      %v1931 = vrot.slane %v1668, %v1930
      %v1932 = vcombine.low %v1924, %v1931
      %vm1949 = vcmask 1045504
      %v1950 = vsel %vm1949, %v1701, -inf
      %v1951 = vmax.f32 %v1685, %v1950
      %v1952 = vrot.slane %v1951, 4
      %v1953 = vmax.f32 %v1951, %v1952
      %v1954 = vrot.slane %v1953, 2
      %v1955 = vmax.f32 %v1953, %v1954
      %v1956 = vrot.slane %v1955, 1
      %v1957 = vmax.f32 %v1955, %v1956
      %v1958 = vsel %vm1949, %v1734, -inf
      %v1959 = vmax.f32 %v1718, %v1958
      %v1960 = vrot.slane %v1959, 4
      %v1961 = vmax.f32 %v1959, %v1960
      %v1962 = vrot.slane %v1961, 2
      %v1963 = vmax.f32 %v1961, %v1962
      %v1964 = vrot.slane %v1963, 1
      %v1965 = vmax.f32 %v1963, %v1964
      %v1966 = vsel %vm1949, %v1767, -inf
      %v1967 = vmax.f32 %v1751, %v1966
      %v1968 = vrot.slane %v1967, 4
      %v1969 = vmax.f32 %v1967, %v1968
      %v1970 = vrot.slane %v1969, 2
      %v1971 = vmax.f32 %v1969, %v1970
      %v1972 = vrot.slane %v1971, 1
      %v1973 = vmax.f32 %v1971, %v1972
      %v1974 = vsel %vm1949, %v1800, -inf
      %v1975 = vmax.f32 %v1784, %v1974
      %v1976 = vrot.slane %v1975, 4
      %v1977 = vmax.f32 %v1975, %v1976
      %v1978 = vrot.slane %v1977, 2
      %v1979 = vmax.f32 %v1977, %v1978
      %v1980 = vrot.slane %v1979, 1
      %v1981 = vmax.f32 %v1979, %v1980
      %v1982 = vsel %vm1949, %v1833, -inf
      %v1983 = vmax.f32 %v1817, %v1982
      %v1984 = vrot.slane %v1983, 4
      %v1985 = vmax.f32 %v1983, %v1984
      %v1986 = vrot.slane %v1985, 2
      %v1987 = vmax.f32 %v1985, %v1986
      %v1988 = vrot.slane %v1987, 1
      %v1989 = vmax.f32 %v1987, %v1988
      %v1990 = vsel %vm1949, %v1866, -inf
      %v1991 = vmax.f32 %v1850, %v1990
      %v1992 = vrot.slane %v1991, 4
      %v1993 = vmax.f32 %v1991, %v1992
      %v1994 = vrot.slane %v1993, 2
      %v1995 = vmax.f32 %v1993, %v1994
      %v1996 = vrot.slane %v1995, 1
      %v1997 = vmax.f32 %v1995, %v1996
      %v1998 = vsel %vm1949, %v1899, -inf
      %v1999 = vmax.f32 %v1883, %v1998
      %v2000 = vrot.slane %v1999, 4
      %v2001 = vmax.f32 %v1999, %v2000
      %v2002 = vrot.slane %v2001, 2
      %v2003 = vmax.f32 %v2001, %v2002
      %v2004 = vrot.slane %v2003, 1
      %v2005 = vmax.f32 %v2003, %v2004
      %v2006 = vsel %vm1949, %v1932, -inf
      %v2007 = vmax.f32 %v1916, %v2006
      %v2008 = vrot.slane %v2007, 4
      %v2009 = vmax.f32 %v2007, %v2008
      %v2010 = vrot.slane %v2009, 2
      %v2011 = vmax.f32 %v2009, %v2010
      %v2012 = vrot.slane %v2011, 1
      %v2013 = vmax.f32 %v2011, %v2012
      %v2014 = vld [vmem:[%s2] sm:$0x1]
      %v2016 = vlaneseq
      %v2017 = vshrl.u32 %v2016, 7
      %v2018 = vsub.s32 0, %v2017
      %v2019 = vrot.slane %v2014, %v2018
      %v2021 = vadd.f32 %v1957, %v2019
      %v2022 = vadd.f32 %v1965, %v2019
      %v2023 = vadd.f32 %v1973, %v2019
      %v2024 = vadd.f32 %v1981, %v2019
      %v2025 = vadd.f32 %v1989, %v2019
      %v2026 = vadd.f32 %v1997, %v2019
      %v2027 = vadd.f32 %v2005, %v2019
      %v2028 = vadd.f32 %v2013, %v2019
      %v2029 = vmax.f32 %v2021, 0.0
      %v2030 = vmax.f32 %v2022, 0.0
      %v2031 = vmax.f32 %v2023, 0.0
      %v2032 = vmax.f32 %v2024, 0.0
      %v2033 = vmax.f32 %v2025, 0.0
      %v2034 = vmax.f32 %v2026, 0.0
      %v2035 = vmax.f32 %v2027, 0.0
      %v2036 = vmax.f32 %v2028, 0.0
      %v2037 = vrot.slane %v394, 1
      %v2038 = vrot.slane %v396, 2
      %v2039 = vor.u32 %v2037, %v2038
      %v2040 = vrot.slane %v401, 1
      %v2041 = vrot.slane %v403, 2
      %v2042 = vor.u32 %v2040, %v2041
      %v2043 = vrot.slane %v408, 1
      %v2044 = vrot.slane %v410, 2
      %v2045 = vor.u32 %v2043, %v2044
      %v2046 = vrot.slane %v415, 1
      %v2047 = vrot.slane %v417, 2
      %v2048 = vor.u32 %v2046, %v2047
      %v2049 = vrot.slane %v422, 1
      %v2050 = vrot.slane %v424, 2
      %v2051 = vor.u32 %v2049, %v2050
      %v2052 = vrot.slane %v429, 1
      %v2053 = vrot.slane %v431, 2
      %v2054 = vor.u32 %v2052, %v2053
      %v2055 = vrot.slane %v436, 1
      %v2056 = vrot.slane %v438, 2
      %v2057 = vor.u32 %v2055, %v2056
      %v2058 = vrot.slane %v443, 1
      %v2059 = vrot.slane %v445, 2
      %v2060 = vor.u32 %v2058, %v2059
      %2061 = vrot.lane.b32.xlu0 %v2039, 96
      %v2062 = vpop.permute.xlu0 %2061
      %2063 = vrot.lane.b32.xlu0 %v2042, 96
      %v2064 = vpop.permute.xlu0 %2063
      %2065 = vrot.lane.b32.xlu0 %v2045, 96
      %v2066 = vpop.permute.xlu0 %2065
      %2067 = vrot.lane.b32.xlu0 %v2048, 96
      %v2068 = vpop.permute.xlu0 %2067
      %2069 = vrot.lane.b32.xlu0 %v2051, 96
      %v2070 = vpop.permute.xlu0 %2069
      %2071 = vrot.lane.b32.xlu0 %v2054, 96
      %v2072 = vpop.permute.xlu0 %2071
      %2073 = vrot.lane.b32.xlu0 %v2057, 96
      %v2074 = vpop.permute.xlu0 %2073
      %2075 = vrot.lane.b32.xlu0 %v2060, 96
      %v2076 = vpop.permute.xlu0 %2075
      %v2078 = vsel %vm1306, %v508, %v2062
      %v2080 = vsel %vm1306, %v510, %v2064
      %v2082 = vsel %vm1306, %v512, %v2066
      %v2084 = vsel %vm1306, %v514, %v2068
      %v2086 = vsel %vm1306, %v516, %v2070
      %v2088 = vsel %vm1306, %v518, %v2072
      %v2090 = vsel %vm1306, %v520, %v2074
      %v2092 = vsel %vm1306, %v522, %v2076
      %v2093 = vld [vmem:[%s3] sm:$0xf]
      %v2094 = vld [vmem:[%s3 + $0x4] sm:$0xf]
      %v2095 = vld [vmem:[%s3 + $0x8] sm:$0xf]
      %v2096 = vld [vmem:[%s3 + $0xc] sm:$0xf]
      %v2097 = vld [vmem:[%s3 + $0x10] sm:$0xf]
      %v2098 = vld [vmem:[%s3 + $0x14] sm:$0xf]
      %v2099 = vld [vmem:[%s3 + $0x18] sm:$0xf]
      %v2100 = vld [vmem:[%s3 + $0x1c] sm:$0xf]
      %v2101 = vld [vmem:[%s3 + $0x20] sm:$0xf]
      %v2102 = vld [vmem:[%s3 + $0x24] sm:$0xf]
      %v2103 = vld [vmem:[%s3 + $0x28] sm:$0xf]
      %v2104 = vld [vmem:[%s3 + $0x2c] sm:$0xf]
      %v2105 = vld [vmem:[%s3 + $0x30] sm:$0xf]
      %v2106 = vld [vmem:[%s3 + $0x34] sm:$0xf]
      %v2107 = vld [vmem:[%s3 + $0x38] sm:$0xf]
      %v2108 = vld [vmem:[%s3 + $0x3c] sm:$0xf]
      %v2117 = vcombine.high %v2078, %v2078
      %v2119 = vunpack.c.l.s4 1966171168
      %v2120 = vunpack.c.0.s8 %v2119
      %v2121 = vlaneseq
      %v2122 = vshrl.u32 %v2121, 7
      %v2123 = vsub.s32 %v2120, %v2122
      %v2124 = vrot.slane %v2078, %v2123
      %v2126 = vunpack.c.l.s4 1966171168
      %v2127 = vunpack.c.0.s8 %v2126
      %v2128 = vlaneseq
      %v2129 = vshrl.u32 %v2128, 7
      %v2130 = vsub.s32 %v2127, %v2129
      %v2131 = vrot.slane %v2117, %v2130
      %v2132 = vcombine.high %v2124, %v2124
      %v2133 = vcombine.high %v2131, %v2131
      %v2135 = vunpack.c.l.s4 1966171168
      %v2136 = vunpack.c.0.s8 %v2135
      %v2137 = vlaneseq
      %v2138 = vshrl.u32 %v2137, 7
      %v2139 = vsub.s32 %v2136, %v2138
      %v2140 = vrot.slane %v2124, %v2139
      %v2142 = vunpack.c.l.s4 1966171168
      %v2143 = vunpack.c.0.s8 %v2142
      %v2144 = vlaneseq
      %v2145 = vshrl.u32 %v2144, 7
      %v2146 = vsub.s32 %v2143, %v2145
      %v2147 = vrot.slane %v2131, %v2146
      %v2149 = vunpack.c.l.s4 1966171168
      %v2150 = vunpack.c.0.s8 %v2149
      %v2151 = vlaneseq
      %v2152 = vshrl.u32 %v2151, 7
      %v2153 = vsub.s32 %v2150, %v2152
      %v2154 = vrot.slane %v2132, %v2153
      %v2156 = vunpack.c.l.s4 1966171168
      %v2157 = vunpack.c.0.s8 %v2156
      %v2158 = vlaneseq
      %v2159 = vshrl.u32 %v2158, 7
      %v2160 = vsub.s32 %v2157, %v2159
      %v2161 = vrot.slane %v2133, %v2160
      %v2162 = vcombine.high %v2140, %v2140
      %v2163 = vcombine.high %v2147, %v2147
      %v2164 = vcombine.high %v2154, %v2154
      %v2165 = vcombine.high %v2080, %v2080
      %v2167 = vunpack.c.l.s4 1966171168
      %v2168 = vunpack.c.0.s8 %v2167
      %v2169 = vlaneseq
      %v2170 = vshrl.u32 %v2169, 7
      %v2171 = vsub.s32 %v2168, %v2170
      %v2172 = vrot.slane %v2080, %v2171
      %v2174 = vunpack.c.l.s4 1966171168
      %v2175 = vunpack.c.0.s8 %v2174
      %v2176 = vlaneseq
      %v2177 = vshrl.u32 %v2176, 7
      %v2178 = vsub.s32 %v2175, %v2177
      %v2179 = vrot.slane %v2165, %v2178
      %v2180 = vcombine.high %v2172, %v2172
      %v2181 = vcombine.high %v2179, %v2179
      %v2183 = vunpack.c.l.s4 1966171168
      %v2184 = vunpack.c.0.s8 %v2183
      %v2185 = vlaneseq
      %v2186 = vshrl.u32 %v2185, 7
      %v2187 = vsub.s32 %v2184, %v2186
      %v2188 = vrot.slane %v2172, %v2187
      %v2190 = vunpack.c.l.s4 1966171168
      %v2191 = vunpack.c.0.s8 %v2190
      %v2192 = vlaneseq
      %v2193 = vshrl.u32 %v2192, 7
      %v2194 = vsub.s32 %v2191, %v2193
      %v2195 = vrot.slane %v2179, %v2194
      %v2197 = vunpack.c.l.s4 1966171168
      %v2198 = vunpack.c.0.s8 %v2197
      %v2199 = vlaneseq
      %v2200 = vshrl.u32 %v2199, 7
      %v2201 = vsub.s32 %v2198, %v2200
      %v2202 = vrot.slane %v2180, %v2201
      %v2204 = vunpack.c.l.s4 1966171168
      %v2205 = vunpack.c.0.s8 %v2204
      %v2206 = vlaneseq
      %v2207 = vshrl.u32 %v2206, 7
      %v2208 = vsub.s32 %v2205, %v2207
      %v2209 = vrot.slane %v2181, %v2208
      %v2210 = vcombine.high %v2188, %v2188
      %v2211 = vcombine.high %v2195, %v2195
      %v2212 = vcombine.high %v2202, %v2202
      %v2213 = vcombine.high %v2082, %v2082
      %v2215 = vunpack.c.l.s4 1966171168
      %v2216 = vunpack.c.0.s8 %v2215
      %v2217 = vlaneseq
      %v2218 = vshrl.u32 %v2217, 7
      %v2219 = vsub.s32 %v2216, %v2218
      %v2220 = vrot.slane %v2082, %v2219
      %v2222 = vunpack.c.l.s4 1966171168
      %v2223 = vunpack.c.0.s8 %v2222
      %v2224 = vlaneseq
      %v2225 = vshrl.u32 %v2224, 7
      %v2226 = vsub.s32 %v2223, %v2225
      %v2227 = vrot.slane %v2213, %v2226
      %v2228 = vcombine.high %v2220, %v2220
      %v2229 = vcombine.high %v2227, %v2227
      %v2231 = vunpack.c.l.s4 1966171168
      %v2232 = vunpack.c.0.s8 %v2231
      %v2233 = vlaneseq
      %v2234 = vshrl.u32 %v2233, 7
      %v2235 = vsub.s32 %v2232, %v2234
      %v2236 = vrot.slane %v2220, %v2235
      %v2238 = vunpack.c.l.s4 1966171168
      %v2239 = vunpack.c.0.s8 %v2238
      %v2240 = vlaneseq
      %v2241 = vshrl.u32 %v2240, 7
      %v2242 = vsub.s32 %v2239, %v2241
      %v2243 = vrot.slane %v2227, %v2242
      %v2245 = vunpack.c.l.s4 1966171168
      %v2246 = vunpack.c.0.s8 %v2245
      %v2247 = vlaneseq
      %v2248 = vshrl.u32 %v2247, 7
      %v2249 = vsub.s32 %v2246, %v2248
      %v2250 = vrot.slane %v2228, %v2249
      %v2252 = vunpack.c.l.s4 1966171168
      %v2253 = vunpack.c.0.s8 %v2252
      %v2254 = vlaneseq
      %v2255 = vshrl.u32 %v2254, 7
      %v2256 = vsub.s32 %v2253, %v2255
      %v2257 = vrot.slane %v2229, %v2256
      %v2258 = vcombine.high %v2236, %v2236
      %v2259 = vcombine.high %v2243, %v2243
      %v2260 = vcombine.high %v2250, %v2250
      %v2261 = vcombine.high %v2084, %v2084
      %v2263 = vunpack.c.l.s4 1966171168
      %v2264 = vunpack.c.0.s8 %v2263
      %v2265 = vlaneseq
      %v2266 = vshrl.u32 %v2265, 7
      %v2267 = vsub.s32 %v2264, %v2266
      %v2268 = vrot.slane %v2084, %v2267
      %v2270 = vunpack.c.l.s4 1966171168
      %v2271 = vunpack.c.0.s8 %v2270
      %v2272 = vlaneseq
      %v2273 = vshrl.u32 %v2272, 7
      %v2274 = vsub.s32 %v2271, %v2273
      %v2275 = vrot.slane %v2261, %v2274
      %v2276 = vcombine.high %v2268, %v2268
      %v2277 = vcombine.high %v2275, %v2275
      %v2279 = vunpack.c.l.s4 1966171168
      %v2280 = vunpack.c.0.s8 %v2279
      %v2281 = vlaneseq
      %v2282 = vshrl.u32 %v2281, 7
      %v2283 = vsub.s32 %v2280, %v2282
      %v2284 = vrot.slane %v2268, %v2283
      %v2286 = vunpack.c.l.s4 1966171168
      %v2287 = vunpack.c.0.s8 %v2286
      %v2288 = vlaneseq
      %v2289 = vshrl.u32 %v2288, 7
      %v2290 = vsub.s32 %v2287, %v2289
      %v2291 = vrot.slane %v2275, %v2290
      %v2293 = vunpack.c.l.s4 1966171168
      %v2294 = vunpack.c.0.s8 %v2293
      %v2295 = vlaneseq
      %v2296 = vshrl.u32 %v2295, 7
      %v2297 = vsub.s32 %v2294, %v2296
      %v2298 = vrot.slane %v2276, %v2297
      %v2300 = vunpack.c.l.s4 1966171168
      %v2301 = vunpack.c.0.s8 %v2300
      %v2302 = vlaneseq
      %v2303 = vshrl.u32 %v2302, 7
      %v2304 = vsub.s32 %v2301, %v2303
      %v2305 = vrot.slane %v2277, %v2304
      %v2306 = vcombine.high %v2284, %v2284
      %v2307 = vcombine.high %v2291, %v2291
      %v2308 = vcombine.high %v2298, %v2298
      %v2309 = vcombine.high %v2086, %v2086
      %v2311 = vunpack.c.l.s4 1966171168
      %v2312 = vunpack.c.0.s8 %v2311
      %v2313 = vlaneseq
      %v2314 = vshrl.u32 %v2313, 7
      %v2315 = vsub.s32 %v2312, %v2314
      %v2316 = vrot.slane %v2086, %v2315
      %v2318 = vunpack.c.l.s4 1966171168
      %v2319 = vunpack.c.0.s8 %v2318
      %v2320 = vlaneseq
      %v2321 = vshrl.u32 %v2320, 7
      %v2322 = vsub.s32 %v2319, %v2321
      %v2323 = vrot.slane %v2309, %v2322
      %v2324 = vcombine.high %v2316, %v2316
      %v2325 = vcombine.high %v2323, %v2323
      %v2327 = vunpack.c.l.s4 1966171168
      %v2328 = vunpack.c.0.s8 %v2327
      %v2329 = vlaneseq
      %v2330 = vshrl.u32 %v2329, 7
      %v2331 = vsub.s32 %v2328, %v2330
      %v2332 = vrot.slane %v2316, %v2331
      %v2334 = vunpack.c.l.s4 1966171168
      %v2335 = vunpack.c.0.s8 %v2334
      %v2336 = vlaneseq
      %v2337 = vshrl.u32 %v2336, 7
      %v2338 = vsub.s32 %v2335, %v2337
      %v2339 = vrot.slane %v2323, %v2338
      %v2341 = vunpack.c.l.s4 1966171168
      %v2342 = vunpack.c.0.s8 %v2341
      %v2343 = vlaneseq
      %v2344 = vshrl.u32 %v2343, 7
      %v2345 = vsub.s32 %v2342, %v2344
      %v2346 = vrot.slane %v2324, %v2345
      %v2348 = vunpack.c.l.s4 1966171168
      %v2349 = vunpack.c.0.s8 %v2348
      %v2350 = vlaneseq
      %v2351 = vshrl.u32 %v2350, 7
      %v2352 = vsub.s32 %v2349, %v2351
      %v2353 = vrot.slane %v2325, %v2352
      %v2354 = vcombine.high %v2332, %v2332
      %v2355 = vcombine.high %v2339, %v2339
      %v2356 = vcombine.high %v2346, %v2346
      %v2357 = vcombine.high %v2088, %v2088
      %v2359 = vunpack.c.l.s4 1966171168
      %v2360 = vunpack.c.0.s8 %v2359
      %v2361 = vlaneseq
      %v2362 = vshrl.u32 %v2361, 7
      %v2363 = vsub.s32 %v2360, %v2362
      %v2364 = vrot.slane %v2088, %v2363
      %v2366 = vunpack.c.l.s4 1966171168
      %v2367 = vunpack.c.0.s8 %v2366
      %v2368 = vlaneseq
      %v2369 = vshrl.u32 %v2368, 7
      %v2370 = vsub.s32 %v2367, %v2369
      %v2371 = vrot.slane %v2357, %v2370
      %v2372 = vcombine.high %v2364, %v2364
      %v2373 = vcombine.high %v2371, %v2371
      %v2375 = vunpack.c.l.s4 1966171168
      %v2376 = vunpack.c.0.s8 %v2375
      %v2377 = vlaneseq
      %v2378 = vshrl.u32 %v2377, 7
      %v2379 = vsub.s32 %v2376, %v2378
      %v2380 = vrot.slane %v2364, %v2379
      %v2382 = vunpack.c.l.s4 1966171168
      %v2383 = vunpack.c.0.s8 %v2382
      %v2384 = vlaneseq
      %v2385 = vshrl.u32 %v2384, 7
      %v2386 = vsub.s32 %v2383, %v2385
      %v2387 = vrot.slane %v2371, %v2386
      %v2389 = vunpack.c.l.s4 1966171168
      %v2390 = vunpack.c.0.s8 %v2389
      %v2391 = vlaneseq
      %v2392 = vshrl.u32 %v2391, 7
      %v2393 = vsub.s32 %v2390, %v2392
      %v2394 = vrot.slane %v2372, %v2393
      %v2396 = vunpack.c.l.s4 1966171168
      %v2397 = vunpack.c.0.s8 %v2396
      %v2398 = vlaneseq
      %v2399 = vshrl.u32 %v2398, 7
      %v2400 = vsub.s32 %v2397, %v2399
      %v2401 = vrot.slane %v2373, %v2400
      %v2402 = vcombine.high %v2380, %v2380
      %v2403 = vcombine.high %v2387, %v2387
      %v2404 = vcombine.high %v2394, %v2394
      %v2405 = vcombine.high %v2090, %v2090
      %v2407 = vunpack.c.l.s4 1966171168
      %v2408 = vunpack.c.0.s8 %v2407
      %v2409 = vlaneseq
      %v2410 = vshrl.u32 %v2409, 7
      %v2411 = vsub.s32 %v2408, %v2410
      %v2412 = vrot.slane %v2090, %v2411
      %v2414 = vunpack.c.l.s4 1966171168
      %v2415 = vunpack.c.0.s8 %v2414
      %v2416 = vlaneseq
      %v2417 = vshrl.u32 %v2416, 7
      %v2418 = vsub.s32 %v2415, %v2417
      %v2419 = vrot.slane %v2405, %v2418
      %v2420 = vcombine.high %v2412, %v2412
      %v2421 = vcombine.high %v2419, %v2419
      %v2423 = vunpack.c.l.s4 1966171168
      %v2424 = vunpack.c.0.s8 %v2423
      %v2425 = vlaneseq
      %v2426 = vshrl.u32 %v2425, 7
      %v2427 = vsub.s32 %v2424, %v2426
      %v2428 = vrot.slane %v2412, %v2427
      %v2430 = vunpack.c.l.s4 1966171168
      %v2431 = vunpack.c.0.s8 %v2430
      %v2432 = vlaneseq
      %v2433 = vshrl.u32 %v2432, 7
      %v2434 = vsub.s32 %v2431, %v2433
      %v2435 = vrot.slane %v2419, %v2434
      %v2437 = vunpack.c.l.s4 1966171168
      %v2438 = vunpack.c.0.s8 %v2437
      %v2439 = vlaneseq
      %v2440 = vshrl.u32 %v2439, 7
      %v2441 = vsub.s32 %v2438, %v2440
      %v2442 = vrot.slane %v2420, %v2441
      %v2444 = vunpack.c.l.s4 1966171168
      %v2445 = vunpack.c.0.s8 %v2444
      %v2446 = vlaneseq
      %v2447 = vshrl.u32 %v2446, 7
      %v2448 = vsub.s32 %v2445, %v2447
      %v2449 = vrot.slane %v2421, %v2448
      %v2450 = vcombine.high %v2428, %v2428
      %v2451 = vcombine.high %v2435, %v2435
      %v2452 = vcombine.high %v2442, %v2442
      %v2453 = vcombine.high %v2092, %v2092
      %v2455 = vunpack.c.l.s4 1966171168
      %v2456 = vunpack.c.0.s8 %v2455
      %v2457 = vlaneseq
      %v2458 = vshrl.u32 %v2457, 7
      %v2459 = vsub.s32 %v2456, %v2458
      %v2460 = vrot.slane %v2092, %v2459
      %v2462 = vunpack.c.l.s4 1966171168
      %v2463 = vunpack.c.0.s8 %v2462
      %v2464 = vlaneseq
      %v2465 = vshrl.u32 %v2464, 7
      %v2466 = vsub.s32 %v2463, %v2465
      %v2467 = vrot.slane %v2453, %v2466
      %v2468 = vcombine.high %v2460, %v2460
      %v2469 = vcombine.high %v2467, %v2467
      %v2471 = vunpack.c.l.s4 1966171168
      %v2472 = vunpack.c.0.s8 %v2471
      %v2473 = vlaneseq
      %v2474 = vshrl.u32 %v2473, 7
      %v2475 = vsub.s32 %v2472, %v2474
      %v2476 = vrot.slane %v2460, %v2475
      %v2478 = vunpack.c.l.s4 1966171168
      %v2479 = vunpack.c.0.s8 %v2478
      %v2480 = vlaneseq
      %v2481 = vshrl.u32 %v2480, 7
      %v2482 = vsub.s32 %v2479, %v2481
      %v2483 = vrot.slane %v2467, %v2482
      %v2485 = vunpack.c.l.s4 1966171168
      %v2486 = vunpack.c.0.s8 %v2485
      %v2487 = vlaneseq
      %v2488 = vshrl.u32 %v2487, 7
      %v2489 = vsub.s32 %v2486, %v2488
      %v2490 = vrot.slane %v2468, %v2489
      %v2492 = vunpack.c.l.s4 1966171168
      %v2493 = vunpack.c.0.s8 %v2492
      %v2494 = vlaneseq
      %v2495 = vshrl.u32 %v2494, 7
      %v2496 = vsub.s32 %v2493, %v2495
      %v2497 = vrot.slane %v2469, %v2496
      %v2498 = vcombine.high %v2476, %v2476
      %v2499 = vcombine.high %v2483, %v2483
      %v2500 = vcombine.high %v2490, %v2490
      %v2501 = vunpack.i.l.s16 %v2140
      %v2502 = vunpack.i.h.s16 %v2140
      %v2503 = vunpack.i.l.s16 %v2154
      %v2504 = vunpack.i.h.s16 %v2154
      %v2505 = vunpack.i.l.s16 %v2162
      %v2506 = vunpack.i.h.s16 %v2162
      %v2507 = vunpack.i.l.s16 %v2164
      %v2508 = vunpack.i.h.s16 %v2164
      %v2509 = vunpack.i.l.s16 %v2147
      %v2510 = vunpack.i.h.s16 %v2147
      %v2511 = vunpack.i.l.s16 %v2161
      %v2512 = vunpack.i.h.s16 %v2161
      %v2513 = vunpack.i.l.s16 %v2163
      %v2514 = vunpack.i.l.s16 %v2188
      %v2515 = vunpack.i.h.s16 %v2188
      %v2516 = vunpack.i.l.s16 %v2202
      %v2517 = vunpack.i.h.s16 %v2202
      %v2518 = vunpack.i.l.s16 %v2210
      %v2519 = vunpack.i.h.s16 %v2210
      %v2520 = vunpack.i.l.s16 %v2212
      %v2521 = vunpack.i.h.s16 %v2212
      %v2522 = vunpack.i.l.s16 %v2195
      %v2523 = vunpack.i.h.s16 %v2195
      %v2524 = vunpack.i.l.s16 %v2209
      %v2525 = vunpack.i.h.s16 %v2209
      %v2526 = vunpack.i.l.s16 %v2211
      %v2527 = vunpack.i.l.s16 %v2236
      %v2528 = vunpack.i.h.s16 %v2236
      %v2529 = vunpack.i.l.s16 %v2250
      %v2530 = vunpack.i.h.s16 %v2250
      %v2531 = vunpack.i.l.s16 %v2258
      %v2532 = vunpack.i.h.s16 %v2258
      %v2533 = vunpack.i.l.s16 %v2260
      %v2534 = vunpack.i.h.s16 %v2260
      %v2535 = vunpack.i.l.s16 %v2243
      %v2536 = vunpack.i.h.s16 %v2243
      %v2537 = vunpack.i.l.s16 %v2257
      %v2538 = vunpack.i.h.s16 %v2257
      %v2539 = vunpack.i.l.s16 %v2259
      %v2540 = vunpack.i.l.s16 %v2284
      %v2541 = vunpack.i.h.s16 %v2284
      %v2542 = vunpack.i.l.s16 %v2298
      %v2543 = vunpack.i.h.s16 %v2298
      %v2544 = vunpack.i.l.s16 %v2306
      %v2545 = vunpack.i.h.s16 %v2306
      %v2546 = vunpack.i.l.s16 %v2308
      %v2547 = vunpack.i.h.s16 %v2308
      %v2548 = vunpack.i.l.s16 %v2291
      %v2549 = vunpack.i.h.s16 %v2291
      %v2550 = vunpack.i.l.s16 %v2305
      %v2551 = vunpack.i.h.s16 %v2305
      %v2552 = vunpack.i.l.s16 %v2307
      %v2553 = vunpack.i.l.s16 %v2332
      %v2554 = vunpack.i.h.s16 %v2332
      %v2555 = vunpack.i.l.s16 %v2346
      %v2556 = vunpack.i.h.s16 %v2346
      %v2557 = vunpack.i.l.s16 %v2354
      %v2558 = vunpack.i.h.s16 %v2354
      %v2559 = vunpack.i.l.s16 %v2356
      %v2560 = vunpack.i.h.s16 %v2356
      %v2561 = vunpack.i.l.s16 %v2339
      %v2562 = vunpack.i.h.s16 %v2339
      %v2563 = vunpack.i.l.s16 %v2353
      %v2564 = vunpack.i.h.s16 %v2353
      %v2565 = vunpack.i.l.s16 %v2355
      %v2566 = vunpack.i.l.s16 %v2380
      %v2567 = vunpack.i.h.s16 %v2380
      %v2568 = vunpack.i.l.s16 %v2394
      %v2569 = vunpack.i.h.s16 %v2394
      %v2570 = vunpack.i.l.s16 %v2402
      %v2571 = vunpack.i.h.s16 %v2402
      %v2572 = vunpack.i.l.s16 %v2404
      %v2573 = vunpack.i.h.s16 %v2404
      %v2574 = vunpack.i.l.s16 %v2387
      %v2575 = vunpack.i.h.s16 %v2387
      %v2576 = vunpack.i.l.s16 %v2401
      %v2577 = vunpack.i.h.s16 %v2401
      %v2578 = vunpack.i.l.s16 %v2403
      %v2579 = vunpack.i.l.s16 %v2428
      %v2580 = vunpack.i.h.s16 %v2428
      %v2581 = vunpack.i.l.s16 %v2442
      %v2582 = vunpack.i.h.s16 %v2442
      %v2583 = vunpack.i.l.s16 %v2450
      %v2584 = vunpack.i.h.s16 %v2450
      %v2585 = vunpack.i.l.s16 %v2452
      %v2586 = vunpack.i.h.s16 %v2452
      %v2587 = vunpack.i.l.s16 %v2435
      %v2588 = vunpack.i.h.s16 %v2435
      %v2589 = vunpack.i.l.s16 %v2449
      %v2590 = vunpack.i.h.s16 %v2449
      %v2591 = vunpack.i.l.s16 %v2451
      %v2592 = vunpack.i.l.s16 %v2476
      %v2593 = vunpack.i.h.s16 %v2476
      %v2594 = vunpack.i.l.s16 %v2490
      %v2595 = vunpack.i.h.s16 %v2490
      %v2596 = vunpack.i.l.s16 %v2498
      %v2597 = vunpack.i.h.s16 %v2498
      %v2598 = vunpack.i.l.s16 %v2500
      %v2599 = vunpack.i.h.s16 %v2500
      %v2600 = vunpack.i.l.s16 %v2483
      %v2601 = vunpack.i.h.s16 %v2483
      %v2602 = vunpack.i.l.s16 %v2497
      %v2603 = vunpack.i.h.s16 %v2497
      %v2604 = vunpack.i.l.s16 %v2499
      %v2605 = vpack.i.b16 %v2502, %v2501
      %v2606 = vpack.i.b16 %v2504, %v2503
      %v2607 = vpack.i.b16 %v2506, %v2505
      %v2608 = vpack.i.b16 %v2508, %v2507
      %v2609 = vpack.i.b16 %v2510, %v2509
      %v2610 = vpack.i.b16 %v2512, %v2511
      %v2611 = vpack.i.b16 %v2514, %v2513
      %v2612 = vpack.i.b16 %v2516, %v2515
      %v2613 = vpack.i.b16 %v2518, %v2517
      %v2614 = vpack.i.b16 %v2520, %v2519
      %v2615 = vpack.i.b16 %v2522, %v2521
      %v2616 = vpack.i.b16 %v2524, %v2523
      %v2617 = vpack.i.b16 %v2526, %v2525
      %v2618 = vpack.i.b16 %v2528, %v2527
      %v2619 = vpack.i.b16 %v2530, %v2529
      %v2620 = vpack.i.b16 %v2532, %v2531
      %v2621 = vpack.i.b16 %v2534, %v2533
      %v2622 = vpack.i.b16 %v2536, %v2535
      %v2623 = vpack.i.b16 %v2538, %v2537
      %v2624 = vpack.i.b16 %v2540, %v2539
      %v2625 = vpack.i.b16 %v2542, %v2541
      %v2626 = vpack.i.b16 %v2544, %v2543
      %v2627 = vpack.i.b16 %v2546, %v2545
      %v2628 = vpack.i.b16 %v2548, %v2547
      %v2629 = vpack.i.b16 %v2550, %v2549
      %v2630 = vpack.i.b16 %v2552, %v2551
      %v2631 = vpack.i.b16 %v2554, %v2553
      %v2632 = vpack.i.b16 %v2556, %v2555
      %v2633 = vpack.i.b16 %v2558, %v2557
      %v2634 = vpack.i.b16 %v2560, %v2559
      %v2635 = vpack.i.b16 %v2562, %v2561
      %v2636 = vpack.i.b16 %v2564, %v2563
      %v2637 = vpack.i.b16 %v2566, %v2565
      %v2638 = vpack.i.b16 %v2568, %v2567
      %v2639 = vpack.i.b16 %v2570, %v2569
      %v2640 = vpack.i.b16 %v2572, %v2571
      %v2641 = vpack.i.b16 %v2574, %v2573
      %v2642 = vpack.i.b16 %v2576, %v2575
      %v2643 = vpack.i.b16 %v2578, %v2577
      %v2644 = vpack.i.b16 %v2580, %v2579
      %v2645 = vpack.i.b16 %v2582, %v2581
      %v2646 = vpack.i.b16 %v2584, %v2583
      %v2647 = vpack.i.b16 %v2586, %v2585
      %v2648 = vpack.i.b16 %v2588, %v2587
      %v2649 = vpack.i.b16 %v2590, %v2589
      %v2650 = vpack.i.b16 %v2592, %v2591
      %v2651 = vpack.i.b16 %v2594, %v2593
      %v2652 = vpack.i.b16 %v2596, %v2595
      %v2653 = vpack.i.b16 %v2598, %v2597
      %v2654 = vpack.i.b16 %v2600, %v2599
      %v2655 = vpack.i.b16 %v2602, %v2601
      %v2656 = vpack.i.b16 %v2604, %v2603
      %v2657 = vcombine.low %v2605, %v2606
      %v2658 = vcombine.low %v2607, %v2608
      %v2659 = vcombine.low %v2609, %v2610
      %v2660 = vcombine.low %v2611, %v2612
      %v2662 = vunpack.c.l.s4 1966171168
      %v2663 = vunpack.c.0.s8 %v2662
      %v2664 = vlaneseq
      %v2665 = vshrl.u32 %v2664, 7
      %v2666 = vsub.s32 %v2663, %v2665
      %v2667 = vrot.slane %v2657, %v2666
      %v2669 = vunpack.c.l.s4 1966171168
      %v2670 = vunpack.c.0.s8 %v2669
      %v2671 = vlaneseq
      %v2672 = vshrl.u32 %v2671, 7
      %v2673 = vsub.s32 %v2670, %v2672
      %v2674 = vrot.slane %v2658, %v2673
      %v2676 = vunpack.c.l.s4 1966171168
      %v2677 = vunpack.c.0.s8 %v2676
      %v2678 = vlaneseq
      %v2679 = vshrl.u32 %v2678, 7
      %v2680 = vsub.s32 %v2677, %v2679
      %v2681 = vrot.slane %v2659, %v2680
      %v2683 = vunpack.c.l.s4 1966171168
      %v2684 = vunpack.c.0.s8 %v2683
      %v2685 = vlaneseq
      %v2686 = vshrl.u32 %v2685, 7
      %v2687 = vsub.s32 %v2684, %v2686
      %v2688 = vrot.slane %v2660, %v2687
      %v2689 = vcombine.low %v2667, %v2674
      %v2690 = vcombine.low %v2681, %v2688
      %v2692 = vunpack.c.l.s4 1966171168
      %v2693 = vunpack.c.0.s8 %v2692
      %v2694 = vlaneseq
      %v2695 = vshrl.u32 %v2694, 7
      %v2696 = vsub.s32 %v2693, %v2695
      %v2697 = vrot.slane %v2689, %v2696
      %v2699 = vunpack.c.l.s4 1966171168
      %v2700 = vunpack.c.0.s8 %v2699
      %v2701 = vlaneseq
      %v2702 = vshrl.u32 %v2701, 7
      %v2703 = vsub.s32 %v2700, %v2702
      %v2704 = vrot.slane %v2690, %v2703
      %v2705 = vcombine.low %v2697, %v2704
      %v2706 = vcombine.low %v2613, %v2614
      %v2707 = vcombine.low %v2615, %v2616
      %v2708 = vcombine.low %v2617, %v2618
      %v2709 = vcombine.low %v2619, %v2620
      %v2711 = vunpack.c.l.s4 1966171168
      %v2712 = vunpack.c.0.s8 %v2711
      %v2713 = vlaneseq
      %v2714 = vshrl.u32 %v2713, 7
      %v2715 = vsub.s32 %v2712, %v2714
      %v2716 = vrot.slane %v2706, %v2715
      %v2718 = vunpack.c.l.s4 1966171168
      %v2719 = vunpack.c.0.s8 %v2718
      %v2720 = vlaneseq
      %v2721 = vshrl.u32 %v2720, 7
      %v2722 = vsub.s32 %v2719, %v2721
      %v2723 = vrot.slane %v2707, %v2722
      %v2725 = vunpack.c.l.s4 1966171168
      %v2726 = vunpack.c.0.s8 %v2725
      %v2727 = vlaneseq
      %v2728 = vshrl.u32 %v2727, 7
      %v2729 = vsub.s32 %v2726, %v2728
      %v2730 = vrot.slane %v2708, %v2729
      %v2732 = vunpack.c.l.s4 1966171168
      %v2733 = vunpack.c.0.s8 %v2732
      %v2734 = vlaneseq
      %v2735 = vshrl.u32 %v2734, 7
      %v2736 = vsub.s32 %v2733, %v2735
      %v2737 = vrot.slane %v2709, %v2736
      %v2738 = vcombine.low %v2716, %v2723
      %v2739 = vcombine.low %v2730, %v2737
      %v2741 = vunpack.c.l.s4 1966171168
      %v2742 = vunpack.c.0.s8 %v2741
      %v2743 = vlaneseq
      %v2744 = vshrl.u32 %v2743, 7
      %v2745 = vsub.s32 %v2742, %v2744
      %v2746 = vrot.slane %v2738, %v2745
      %v2748 = vunpack.c.l.s4 1966171168
      %v2749 = vunpack.c.0.s8 %v2748
      %v2750 = vlaneseq
      %v2751 = vshrl.u32 %v2750, 7
      %v2752 = vsub.s32 %v2749, %v2751
      %v2753 = vrot.slane %v2739, %v2752
      %v2754 = vcombine.low %v2746, %v2753
      %v2755 = vcombine.low %v2621, %v2622
      %v2756 = vcombine.low %v2623, %v2624
      %v2757 = vcombine.low %v2625, %v2626
      %v2758 = vcombine.low %v2627, %v2628
      %v2760 = vunpack.c.l.s4 1966171168
      %v2761 = vunpack.c.0.s8 %v2760
      %v2762 = vlaneseq
      %v2763 = vshrl.u32 %v2762, 7
      %v2764 = vsub.s32 %v2761, %v2763
      %v2765 = vrot.slane %v2755, %v2764
      %v2767 = vunpack.c.l.s4 1966171168
      %v2768 = vunpack.c.0.s8 %v2767
      %v2769 = vlaneseq
      %v2770 = vshrl.u32 %v2769, 7
      %v2771 = vsub.s32 %v2768, %v2770
      %v2772 = vrot.slane %v2756, %v2771
      %v2774 = vunpack.c.l.s4 1966171168
      %v2775 = vunpack.c.0.s8 %v2774
      %v2776 = vlaneseq
      %v2777 = vshrl.u32 %v2776, 7
      %v2778 = vsub.s32 %v2775, %v2777
      %v2779 = vrot.slane %v2757, %v2778
      %v2781 = vunpack.c.l.s4 1966171168
      %v2782 = vunpack.c.0.s8 %v2781
      %v2783 = vlaneseq
      %v2784 = vshrl.u32 %v2783, 7
      %v2785 = vsub.s32 %v2782, %v2784
      %v2786 = vrot.slane %v2758, %v2785
      %v2787 = vcombine.low %v2765, %v2772
      %v2788 = vcombine.low %v2779, %v2786
      %v2790 = vunpack.c.l.s4 1966171168
      %v2791 = vunpack.c.0.s8 %v2790
      %v2792 = vlaneseq
      %v2793 = vshrl.u32 %v2792, 7
      %v2794 = vsub.s32 %v2791, %v2793
      %v2795 = vrot.slane %v2787, %v2794
      %v2797 = vunpack.c.l.s4 1966171168
      %v2798 = vunpack.c.0.s8 %v2797
      %v2799 = vlaneseq
      %v2800 = vshrl.u32 %v2799, 7
      %v2801 = vsub.s32 %v2798, %v2800
      %v2802 = vrot.slane %v2788, %v2801
      %v2803 = vcombine.low %v2795, %v2802
      %v2804 = vcombine.low %v2629, %v2630
      %v2805 = vcombine.low %v2631, %v2632
      %v2806 = vcombine.low %v2633, %v2634
      %v2807 = vcombine.low %v2635, %v2636
      %v2809 = vunpack.c.l.s4 1966171168
      %v2810 = vunpack.c.0.s8 %v2809
      %v2811 = vlaneseq
      %v2812 = vshrl.u32 %v2811, 7
      %v2813 = vsub.s32 %v2810, %v2812
      %v2814 = vrot.slane %v2804, %v2813
      %v2816 = vunpack.c.l.s4 1966171168
      %v2817 = vunpack.c.0.s8 %v2816
      %v2818 = vlaneseq
      %v2819 = vshrl.u32 %v2818, 7
      %v2820 = vsub.s32 %v2817, %v2819
      %v2821 = vrot.slane %v2805, %v2820
      %v2823 = vunpack.c.l.s4 1966171168
      %v2824 = vunpack.c.0.s8 %v2823
      %v2825 = vlaneseq
      %v2826 = vshrl.u32 %v2825, 7
      %v2827 = vsub.s32 %v2824, %v2826
      %v2828 = vrot.slane %v2806, %v2827
      %v2830 = vunpack.c.l.s4 1966171168
      %v2831 = vunpack.c.0.s8 %v2830
      %v2832 = vlaneseq
      %v2833 = vshrl.u32 %v2832, 7
      %v2834 = vsub.s32 %v2831, %v2833
      %v2835 = vrot.slane %v2807, %v2834
      %v2836 = vcombine.low %v2814, %v2821
      %v2837 = vcombine.low %v2828, %v2835
      %v2839 = vunpack.c.l.s4 1966171168
      %v2840 = vunpack.c.0.s8 %v2839
      %v2841 = vlaneseq
      %v2842 = vshrl.u32 %v2841, 7
      %v2843 = vsub.s32 %v2840, %v2842
      %v2844 = vrot.slane %v2836, %v2843
      %v2846 = vunpack.c.l.s4 1966171168
      %v2847 = vunpack.c.0.s8 %v2846
      %v2848 = vlaneseq
      %v2849 = vshrl.u32 %v2848, 7
      %v2850 = vsub.s32 %v2847, %v2849
      %v2851 = vrot.slane %v2837, %v2850
      %v2852 = vcombine.low %v2844, %v2851
      %v2853 = vcombine.low %v2637, %v2638
      %v2854 = vcombine.low %v2639, %v2640
      %v2855 = vcombine.low %v2641, %v2642
      %v2856 = vcombine.low %v2643, %v2644
      %v2858 = vunpack.c.l.s4 1966171168
      %v2859 = vunpack.c.0.s8 %v2858
      %v2860 = vlaneseq
      %v2861 = vshrl.u32 %v2860, 7
      %v2862 = vsub.s32 %v2859, %v2861
      %v2863 = vrot.slane %v2853, %v2862
      %v2865 = vunpack.c.l.s4 1966171168
      %v2866 = vunpack.c.0.s8 %v2865
      %v2867 = vlaneseq
      %v2868 = vshrl.u32 %v2867, 7
      %v2869 = vsub.s32 %v2866, %v2868
      %v2870 = vrot.slane %v2854, %v2869
      %v2872 = vunpack.c.l.s4 1966171168
      %v2873 = vunpack.c.0.s8 %v2872
      %v2874 = vlaneseq
      %v2875 = vshrl.u32 %v2874, 7
      %v2876 = vsub.s32 %v2873, %v2875
      %v2877 = vrot.slane %v2855, %v2876
      %v2879 = vunpack.c.l.s4 1966171168
      %v2880 = vunpack.c.0.s8 %v2879
      %v2881 = vlaneseq
      %v2882 = vshrl.u32 %v2881, 7
      %v2883 = vsub.s32 %v2880, %v2882
      %v2884 = vrot.slane %v2856, %v2883
      %v2885 = vcombine.low %v2863, %v2870
      %v2886 = vcombine.low %v2877, %v2884
      %v2888 = vunpack.c.l.s4 1966171168
      %v2889 = vunpack.c.0.s8 %v2888
      %v2890 = vlaneseq
      %v2891 = vshrl.u32 %v2890, 7
      %v2892 = vsub.s32 %v2889, %v2891
      %v2893 = vrot.slane %v2885, %v2892
      %v2895 = vunpack.c.l.s4 1966171168
      %v2896 = vunpack.c.0.s8 %v2895
      %v2897 = vlaneseq
      %v2898 = vshrl.u32 %v2897, 7
      %v2899 = vsub.s32 %v2896, %v2898
      %v2900 = vrot.slane %v2886, %v2899
      %v2901 = vcombine.low %v2893, %v2900
      %v2902 = vcombine.low %v2645, %v2646
      %v2903 = vcombine.low %v2647, %v2648
      %v2904 = vcombine.low %v2649, %v2650
      %v2905 = vcombine.low %v2651, %v2652
      %v2907 = vunpack.c.l.s4 1966171168
      %v2908 = vunpack.c.0.s8 %v2907
      %v2909 = vlaneseq
      %v2910 = vshrl.u32 %v2909, 7
      %v2911 = vsub.s32 %v2908, %v2910
      %v2912 = vrot.slane %v2902, %v2911
      %v2914 = vunpack.c.l.s4 1966171168
      %v2915 = vunpack.c.0.s8 %v2914
      %v2916 = vlaneseq
      %v2917 = vshrl.u32 %v2916, 7
      %v2918 = vsub.s32 %v2915, %v2917
      %v2919 = vrot.slane %v2903, %v2918
      %v2921 = vunpack.c.l.s4 1966171168
      %v2922 = vunpack.c.0.s8 %v2921
      %v2923 = vlaneseq
      %v2924 = vshrl.u32 %v2923, 7
      %v2925 = vsub.s32 %v2922, %v2924
      %v2926 = vrot.slane %v2904, %v2925
      %v2928 = vunpack.c.l.s4 1966171168
      %v2929 = vunpack.c.0.s8 %v2928
      %v2930 = vlaneseq
      %v2931 = vshrl.u32 %v2930, 7
      %v2932 = vsub.s32 %v2929, %v2931
      %v2933 = vrot.slane %v2905, %v2932
      %v2934 = vcombine.low %v2912, %v2919
      %v2935 = vcombine.low %v2926, %v2933
      %v2937 = vunpack.c.l.s4 1966171168
      %v2938 = vunpack.c.0.s8 %v2937
      %v2939 = vlaneseq
      %v2940 = vshrl.u32 %v2939, 7
      %v2941 = vsub.s32 %v2938, %v2940
      %v2942 = vrot.slane %v2934, %v2941
      %v2944 = vunpack.c.l.s4 1966171168
      %v2945 = vunpack.c.0.s8 %v2944
      %v2946 = vlaneseq
      %v2947 = vshrl.u32 %v2946, 7
      %v2948 = vsub.s32 %v2945, %v2947
      %v2949 = vrot.slane %v2935, %v2948
      %v2950 = vcombine.low %v2942, %v2949
      %v2951 = vcombine.low %v2653, %v2654
      %v2952 = vcombine.low %v2655, %v2656
      %v2954 = vunpack.c.l.s4 1966171168
      %v2955 = vunpack.c.0.s8 %v2954
      %v2956 = vlaneseq
      %v2957 = vshrl.u32 %v2956, 7
      %v2958 = vsub.s32 %v2955, %v2957
      %v2959 = vrot.slane %v2951, %v2958
      %v2961 = vunpack.c.l.s4 1966171168
      %v2962 = vunpack.c.0.s8 %v2961
      %v2963 = vlaneseq
      %v2964 = vshrl.u32 %v2963, 7
      %v2965 = vsub.s32 %v2962, %v2964
      %v2966 = vrot.slane %v2952, %v2965
      %v2967 = vcombine.low %v2959, %v2966
      %v2969 = vunpack.c.l.s4 1966171168
      %v2970 = vunpack.c.0.s8 %v2969
      %v2971 = vlaneseq
      %v2972 = vshrl.u32 %v2971, 7
      %v2973 = vsub.s32 %v2970, %v2972
      %v2974 = vrot.slane %v2967, %v2973
      %v2998 = vunpack.c.l.b16 %v2093
      %v2999 = vunpack.c.l.b16 %v2094
      %v3000 = vunpack.c.l.b16 %v2095
      %v3001 = vunpack.c.l.b16 %v2096
      %v3002 = vunpack.c.l.b16 %v2097
      %v3003 = vunpack.c.l.b16 %v2098
      %v3004 = vunpack.c.l.b16 %v2099
      %v3005 = vunpack.c.l.b16 %v2100
      %v3006 = vunpack.c.l.b16 %v2101
      %v3007 = vunpack.c.l.b16 %v2102
      %v3008 = vunpack.c.l.b16 %v2103
      %v3009 = vunpack.c.l.b16 %v2104
      %v3010 = vunpack.c.l.b16 %v2105
      %v3011 = vunpack.c.l.b16 %v2106
      %v3012 = vunpack.c.l.b16 %v2107
      %v3013 = vunpack.c.l.b16 %v2108
      %v3014 = vpack.c.b16 %v2999, %v2998
      %v3015 = vpack.c.b16 %v3001, %v3000
      %v3016 = vpack.c.b16 %v3003, %v3002
      %v3017 = vpack.c.b16 %v3005, %v3004
      %v3018 = vpack.c.b16 %v3007, %v3006
      %v3019 = vpack.c.b16 %v3009, %v3008
      %v3020 = vpack.c.b16 %v3011, %v3010
      %v3021 = vpack.c.b16 %v3013, %v3012
      %3030 = vmatprep.subr.bf16.mxu0 0
      %3031 = vmatpush1.bf16.msra.mxu0 %v3014
      %3032 = vmatprep.subr.bf16.mxu0 0
      %3033 = vmatpush1.bf16.msra.mxu0 %v3015
      %3034 = vmatprep.subr.bf16.mxu0 0
      %3035 = vmatpush1.bf16.msra.mxu0 %v3016
      %3036 = vmatprep.subr.bf16.mxu0 0
      %3037 = vmatpush1.bf16.msra.mxu0 %v3017
      %3038 = vmatprep.subr.bf16.mxu0 0
      %3039 = vmatpush1.bf16.msra.mxu0 %v3018
      %3040 = vmatprep.subr.bf16.mxu0 0
      %3041 = vmatpush1.bf16.msra.mxu0 %v3019
      %3042 = vmatprep.subr.bf16.mxu0 0
      %3043 = vmatpush1.bf16.msra.mxu0 %v3020
      %3044 = vmatprep.subr.bf16.mxu0 0
      %3045 = vmatpush1.bf16.msra.mxu0 %v3021
      %3046 = vmatprep.subr.bf16.mxu0 0
      %3047 = vmatpush1.bf16.msra.mxu0 0
      %3048 = vmatprep.subr.bf16.mxu0 0
      %3049 = vmatpush1.bf16.msra.mxu0 0
      %3050 = vmatprep.subr.bf16.mxu0 0
      %3051 = vmatpush1.bf16.msra.mxu0 0
      %3052 = vmatprep.subr.bf16.mxu0 0
      %3053 = vmatpush1.bf16.msra.mxu0 0
      %3054 = vmatprep.subr.bf16.mxu0 0
      %3055 = vmatpush1.bf16.msra.mxu0 0
      %3056 = vmatprep.subr.bf16.mxu0 0
      %3057 = vmatpush1.bf16.msra.mxu0 0
      %3058 = vmatprep.subr.bf16.mxu0 0
      %3059 = vmatpush1.bf16.msra.mxu0 0
      %3060 = vmatprep.subr.bf16.mxu0 0
      %3061 = vmatpush1.bf16.msra.mxu0 0
      %3062 = vmatprep.mubr.bf16.mxu0 0
      %3063 = vmatmul.mubr.bf16.gmra.mrb[0].mxu0 %v2705
      %v3064 = vpop.f32.mrb[0].mxu0
      %v3065 = vadd.f32 0.0, %v3064
      %v3066 = vpop.f32.mrb[0].mxu0
      %v3067 = vpop.f32.mrb[0].mxu0
      %v3068 = vadd.f32 0.0, %v3067
      %v3069 = vpop.f32.mrb[0].mxu0
      %3070 = vmatprep.mubr.bf16.mxu0 0
      %3071 = vmatmul.mubr.bf16.gmra.mrb[0].mxu0 %v2754
      %v3072 = vpop.f32.mrb[0].mxu0
      %v3073 = vadd.f32 0.0, %v3072
      %v3074 = vpop.f32.mrb[0].mxu0
      %v3075 = vpop.f32.mrb[0].mxu0
      %v3076 = vadd.f32 0.0, %v3075
      %v3077 = vpop.f32.mrb[0].mxu0
      %3078 = vmatprep.mubr.bf16.mxu0 0
      %3079 = vmatmul.mubr.bf16.gmra.mrb[0].mxu0 %v2803
      %v3080 = vpop.f32.mrb[0].mxu0
      %v3081 = vadd.f32 0.0, %v3080
      %v3082 = vpop.f32.mrb[0].mxu0
      %v3083 = vpop.f32.mrb[0].mxu0
      %v3084 = vadd.f32 0.0, %v3083
      %v3085 = vpop.f32.mrb[0].mxu0
      %3086 = vmatprep.mubr.bf16.mxu0 0
      %3087 = vmatmul.mubr.bf16.gmra.mrb[0].mxu0 %v2852
      %v3088 = vpop.f32.mrb[0].mxu0
      %v3089 = vadd.f32 0.0, %v3088
      %v3090 = vpop.f32.mrb[0].mxu0
      %v3091 = vpop.f32.mrb[0].mxu0
      %v3092 = vadd.f32 0.0, %v3091
      %v3093 = vpop.f32.mrb[0].mxu0
      %3094 = vmatprep.mubr.bf16.mxu0 0
      %3095 = vmatmul.mubr.bf16.gmra.mrb[0].mxu0 %v2901
      %v3096 = vpop.f32.mrb[0].mxu0
      %v3097 = vadd.f32 0.0, %v3096
      %v3098 = vpop.f32.mrb[0].mxu0
      %v3099 = vpop.f32.mrb[0].mxu0
      %v3100 = vadd.f32 0.0, %v3099
      %v3101 = vpop.f32.mrb[0].mxu0
      %3102 = vmatprep.mubr.bf16.mxu0 0
      %3103 = vmatmul.mubr.bf16.gmra.mrb[0].mxu0 %v2950
      %v3104 = vpop.f32.mrb[0].mxu0
      %v3105 = vadd.f32 0.0, %v3104
      %v3106 = vpop.f32.mrb[0].mxu0
      %v3107 = vpop.f32.mrb[0].mxu0
      %v3108 = vadd.f32 0.0, %v3107
      %v3109 = vpop.f32.mrb[0].mxu0
      %3110 = vmatprep.mubr.bf16.mxu0 0
      %3111 = vmatmul.mubr.bf16.gmra.mrb[0].mxu0 %v2974
      %v3112 = vpop.f32.mrb[0].mxu0
      %v3113 = vadd.f32 0.0, %v3112
      %v3114 = vpop.f32.mrb[0].mxu0
      %v3115 = vpop.f32.mrb[0].mxu0
      %v3116 = vpop.f32.mrb[0].mxu0
      %3117 = vdwg.mxu0
      %v3131 = vcombine.high %v3065, %v3065
      %v3133 = vunpack.c.l.s4 1966171168
      %v3134 = vunpack.c.0.s8 %v3133
      %v3135 = vlaneseq
      %v3136 = vshrl.u32 %v3135, 7
      %v3137 = vsub.s32 %v3134, %v3136
      %v3138 = vrot.slane %v3065, %v3137
      %v3140 = vunpack.c.l.s4 1966171168
      %v3141 = vunpack.c.0.s8 %v3140
      %v3142 = vlaneseq
      %v3143 = vshrl.u32 %v3142, 7
      %v3144 = vsub.s32 %v3141, %v3143
      %v3145 = vrot.slane %v3131, %v3144
      %v3146 = vcombine.high %v3138, %v3138
      %v3147 = vcombine.high %v3145, %v3145
      %v3149 = vunpack.c.l.s4 1966171168
      %v3150 = vunpack.c.0.s8 %v3149
      %v3151 = vlaneseq
      %v3152 = vshrl.u32 %v3151, 7
      %v3153 = vsub.s32 %v3150, %v3152
      %v3154 = vrot.slane %v3138, %v3153
      %v3156 = vunpack.c.l.s4 1966171168
      %v3157 = vunpack.c.0.s8 %v3156
      %v3158 = vlaneseq
      %v3159 = vshrl.u32 %v3158, 7
      %v3160 = vsub.s32 %v3157, %v3159
      %v3161 = vrot.slane %v3145, %v3160
      %v3163 = vunpack.c.l.s4 1966171168
      %v3164 = vunpack.c.0.s8 %v3163
      %v3165 = vlaneseq
      %v3166 = vshrl.u32 %v3165, 7
      %v3167 = vsub.s32 %v3164, %v3166
      %v3168 = vrot.slane %v3146, %v3167
      %v3170 = vunpack.c.l.s4 1966171168
      %v3171 = vunpack.c.0.s8 %v3170
      %v3172 = vlaneseq
      %v3173 = vshrl.u32 %v3172, 7
      %v3174 = vsub.s32 %v3171, %v3173
      %v3175 = vrot.slane %v3147, %v3174
      %v3176 = vcombine.high %v3154, %v3154
      %v3177 = vcombine.high %v3161, %v3161
      %v3178 = vcombine.high %v3168, %v3168
      %v3179 = vcombine.high %v3175, %v3175
      %v3180 = vcombine.high %v3068, %v3068
      %v3182 = vunpack.c.l.s4 1966171168
      %v3183 = vunpack.c.0.s8 %v3182
      %v3184 = vlaneseq
      %v3185 = vshrl.u32 %v3184, 7
      %v3186 = vsub.s32 %v3183, %v3185
      %v3187 = vrot.slane %v3068, %v3186
      %v3189 = vunpack.c.l.s4 1966171168
      %v3190 = vunpack.c.0.s8 %v3189
      %v3191 = vlaneseq
      %v3192 = vshrl.u32 %v3191, 7
      %v3193 = vsub.s32 %v3190, %v3192
      %v3194 = vrot.slane %v3180, %v3193
      %v3195 = vcombine.high %v3187, %v3187
      %v3196 = vcombine.high %v3194, %v3194
      %v3198 = vunpack.c.l.s4 1966171168
      %v3199 = vunpack.c.0.s8 %v3198
      %v3200 = vlaneseq
      %v3201 = vshrl.u32 %v3200, 7
      %v3202 = vsub.s32 %v3199, %v3201
      %v3203 = vrot.slane %v3187, %v3202
      %v3205 = vunpack.c.l.s4 1966171168
      %v3206 = vunpack.c.0.s8 %v3205
      %v3207 = vlaneseq
      %v3208 = vshrl.u32 %v3207, 7
      %v3209 = vsub.s32 %v3206, %v3208
      %v3210 = vrot.slane %v3194, %v3209
      %v3212 = vunpack.c.l.s4 1966171168
      %v3213 = vunpack.c.0.s8 %v3212
      %v3214 = vlaneseq
      %v3215 = vshrl.u32 %v3214, 7
      %v3216 = vsub.s32 %v3213, %v3215
      %v3217 = vrot.slane %v3195, %v3216
      %v3219 = vunpack.c.l.s4 1966171168
      %v3220 = vunpack.c.0.s8 %v3219
      %v3221 = vlaneseq
      %v3222 = vshrl.u32 %v3221, 7
      %v3223 = vsub.s32 %v3220, %v3222
      %v3224 = vrot.slane %v3196, %v3223
      %v3225 = vcombine.high %v3203, %v3203
      %v3226 = vcombine.high %v3210, %v3210
      %v3227 = vcombine.high %v3217, %v3217
      %v3228 = vcombine.high %v3224, %v3224
      %v3229 = vcombine.high %v3073, %v3073
      %v3231 = vunpack.c.l.s4 1966171168
      %v3232 = vunpack.c.0.s8 %v3231
      %v3233 = vlaneseq
      %v3234 = vshrl.u32 %v3233, 7
      %v3235 = vsub.s32 %v3232, %v3234
      %v3236 = vrot.slane %v3073, %v3235
      %v3238 = vunpack.c.l.s4 1966171168
      %v3239 = vunpack.c.0.s8 %v3238
      %v3240 = vlaneseq
      %v3241 = vshrl.u32 %v3240, 7
      %v3242 = vsub.s32 %v3239, %v3241
      %v3243 = vrot.slane %v3229, %v3242
      %v3244 = vcombine.high %v3236, %v3236
      %v3245 = vcombine.high %v3243, %v3243
      %v3247 = vunpack.c.l.s4 1966171168
      %v3248 = vunpack.c.0.s8 %v3247
      %v3249 = vlaneseq
      %v3250 = vshrl.u32 %v3249, 7
      %v3251 = vsub.s32 %v3248, %v3250
      %v3252 = vrot.slane %v3236, %v3251
      %v3254 = vunpack.c.l.s4 1966171168
      %v3255 = vunpack.c.0.s8 %v3254
      %v3256 = vlaneseq
      %v3257 = vshrl.u32 %v3256, 7
      %v3258 = vsub.s32 %v3255, %v3257
      %v3259 = vrot.slane %v3243, %v3258
      %v3261 = vunpack.c.l.s4 1966171168
      %v3262 = vunpack.c.0.s8 %v3261
      %v3263 = vlaneseq
      %v3264 = vshrl.u32 %v3263, 7
      %v3265 = vsub.s32 %v3262, %v3264
      %v3266 = vrot.slane %v3244, %v3265
      %v3268 = vunpack.c.l.s4 1966171168
      %v3269 = vunpack.c.0.s8 %v3268
      %v3270 = vlaneseq
      %v3271 = vshrl.u32 %v3270, 7
      %v3272 = vsub.s32 %v3269, %v3271
      %v3273 = vrot.slane %v3245, %v3272
      %v3274 = vcombine.high %v3252, %v3252
      %v3275 = vcombine.high %v3259, %v3259
      %v3276 = vcombine.high %v3266, %v3266
      %v3277 = vcombine.high %v3273, %v3273
      %v3278 = vcombine.high %v3076, %v3076
      %v3280 = vunpack.c.l.s4 1966171168
      %v3281 = vunpack.c.0.s8 %v3280
      %v3282 = vlaneseq
      %v3283 = vshrl.u32 %v3282, 7
      %v3284 = vsub.s32 %v3281, %v3283
      %v3285 = vrot.slane %v3076, %v3284
      %v3287 = vunpack.c.l.s4 1966171168
      %v3288 = vunpack.c.0.s8 %v3287
      %v3289 = vlaneseq
      %v3290 = vshrl.u32 %v3289, 7
      %v3291 = vsub.s32 %v3288, %v3290
      %v3292 = vrot.slane %v3278, %v3291
      %v3293 = vcombine.high %v3285, %v3285
      %v3294 = vcombine.high %v3292, %v3292
      %v3296 = vunpack.c.l.s4 1966171168
      %v3297 = vunpack.c.0.s8 %v3296
      %v3298 = vlaneseq
      %v3299 = vshrl.u32 %v3298, 7
      %v3300 = vsub.s32 %v3297, %v3299
      %v3301 = vrot.slane %v3285, %v3300
      %v3303 = vunpack.c.l.s4 1966171168
      %v3304 = vunpack.c.0.s8 %v3303
      %v3305 = vlaneseq
      %v3306 = vshrl.u32 %v3305, 7
      %v3307 = vsub.s32 %v3304, %v3306
      %v3308 = vrot.slane %v3292, %v3307
      %v3310 = vunpack.c.l.s4 1966171168
      %v3311 = vunpack.c.0.s8 %v3310
      %v3312 = vlaneseq
      %v3313 = vshrl.u32 %v3312, 7
      %v3314 = vsub.s32 %v3311, %v3313
      %v3315 = vrot.slane %v3293, %v3314
      %v3317 = vunpack.c.l.s4 1966171168
      %v3318 = vunpack.c.0.s8 %v3317
      %v3319 = vlaneseq
      %v3320 = vshrl.u32 %v3319, 7
      %v3321 = vsub.s32 %v3318, %v3320
      %v3322 = vrot.slane %v3294, %v3321
      %v3323 = vcombine.high %v3301, %v3301
      %v3324 = vcombine.high %v3308, %v3308
      %v3325 = vcombine.high %v3315, %v3315
      %v3326 = vcombine.high %v3322, %v3322
      %v3327 = vcombine.high %v3081, %v3081
      %v3329 = vunpack.c.l.s4 1966171168
      %v3330 = vunpack.c.0.s8 %v3329
      %v3331 = vlaneseq
      %v3332 = vshrl.u32 %v3331, 7
      %v3333 = vsub.s32 %v3330, %v3332
      %v3334 = vrot.slane %v3081, %v3333
      %v3336 = vunpack.c.l.s4 1966171168
      %v3337 = vunpack.c.0.s8 %v3336
      %v3338 = vlaneseq
      %v3339 = vshrl.u32 %v3338, 7
      %v3340 = vsub.s32 %v3337, %v3339
      %v3341 = vrot.slane %v3327, %v3340
      %v3342 = vcombine.high %v3334, %v3334
      %v3343 = vcombine.high %v3341, %v3341
      %v3345 = vunpack.c.l.s4 1966171168
      %v3346 = vunpack.c.0.s8 %v3345
      %v3347 = vlaneseq
      %v3348 = vshrl.u32 %v3347, 7
      %v3349 = vsub.s32 %v3346, %v3348
      %v3350 = vrot.slane %v3334, %v3349
      %v3352 = vunpack.c.l.s4 1966171168
      %v3353 = vunpack.c.0.s8 %v3352
      %v3354 = vlaneseq
      %v3355 = vshrl.u32 %v3354, 7
      %v3356 = vsub.s32 %v3353, %v3355
      %v3357 = vrot.slane %v3341, %v3356
      %v3359 = vunpack.c.l.s4 1966171168
      %v3360 = vunpack.c.0.s8 %v3359
      %v3361 = vlaneseq
      %v3362 = vshrl.u32 %v3361, 7
      %v3363 = vsub.s32 %v3360, %v3362
      %v3364 = vrot.slane %v3342, %v3363
      %v3366 = vunpack.c.l.s4 1966171168
      %v3367 = vunpack.c.0.s8 %v3366
      %v3368 = vlaneseq
      %v3369 = vshrl.u32 %v3368, 7
      %v3370 = vsub.s32 %v3367, %v3369
      %v3371 = vrot.slane %v3343, %v3370
      %v3372 = vcombine.high %v3350, %v3350
      %v3373 = vcombine.high %v3357, %v3357
      %v3374 = vcombine.high %v3364, %v3364
      %v3375 = vcombine.high %v3371, %v3371
      %v3376 = vcombine.high %v3084, %v3084
      %v3378 = vunpack.c.l.s4 1966171168
      %v3379 = vunpack.c.0.s8 %v3378
      %v3380 = vlaneseq
      %v3381 = vshrl.u32 %v3380, 7
      %v3382 = vsub.s32 %v3379, %v3381
      %v3383 = vrot.slane %v3084, %v3382
      %v3385 = vunpack.c.l.s4 1966171168
      %v3386 = vunpack.c.0.s8 %v3385
      %v3387 = vlaneseq
      %v3388 = vshrl.u32 %v3387, 7
      %v3389 = vsub.s32 %v3386, %v3388
      %v3390 = vrot.slane %v3376, %v3389
      %v3391 = vcombine.high %v3383, %v3383
      %v3392 = vcombine.high %v3390, %v3390
      %v3394 = vunpack.c.l.s4 1966171168
      %v3395 = vunpack.c.0.s8 %v3394
      %v3396 = vlaneseq
      %v3397 = vshrl.u32 %v3396, 7
      %v3398 = vsub.s32 %v3395, %v3397
      %v3399 = vrot.slane %v3383, %v3398
      %v3401 = vunpack.c.l.s4 1966171168
      %v3402 = vunpack.c.0.s8 %v3401
      %v3403 = vlaneseq
      %v3404 = vshrl.u32 %v3403, 7
      %v3405 = vsub.s32 %v3402, %v3404
      %v3406 = vrot.slane %v3390, %v3405
      %v3408 = vunpack.c.l.s4 1966171168
      %v3409 = vunpack.c.0.s8 %v3408
      %v3410 = vlaneseq
      %v3411 = vshrl.u32 %v3410, 7
      %v3412 = vsub.s32 %v3409, %v3411
      %v3413 = vrot.slane %v3391, %v3412
      %v3415 = vunpack.c.l.s4 1966171168
      %v3416 = vunpack.c.0.s8 %v3415
      %v3417 = vlaneseq
      %v3418 = vshrl.u32 %v3417, 7
      %v3419 = vsub.s32 %v3416, %v3418
      %v3420 = vrot.slane %v3392, %v3419
      %v3421 = vcombine.high %v3399, %v3399
      %v3422 = vcombine.high %v3406, %v3406
      %v3423 = vcombine.high %v3413, %v3413
      %v3424 = vcombine.high %v3420, %v3420
      %v3425 = vcombine.high %v3089, %v3089
      %v3427 = vunpack.c.l.s4 1966171168
      %v3428 = vunpack.c.0.s8 %v3427
      %v3429 = vlaneseq
      %v3430 = vshrl.u32 %v3429, 7
      %v3431 = vsub.s32 %v3428, %v3430
      %v3432 = vrot.slane %v3089, %v3431
      %v3434 = vunpack.c.l.s4 1966171168
      %v3435 = vunpack.c.0.s8 %v3434
      %v3436 = vlaneseq
      %v3437 = vshrl.u32 %v3436, 7
      %v3438 = vsub.s32 %v3435, %v3437
      %v3439 = vrot.slane %v3425, %v3438
      %v3440 = vcombine.high %v3432, %v3432
      %v3441 = vcombine.high %v3439, %v3439
      %v3443 = vunpack.c.l.s4 1966171168
      %v3444 = vunpack.c.0.s8 %v3443
      %v3445 = vlaneseq
      %v3446 = vshrl.u32 %v3445, 7
      %v3447 = vsub.s32 %v3444, %v3446
      %v3448 = vrot.slane %v3432, %v3447
      %v3450 = vunpack.c.l.s4 1966171168
      %v3451 = vunpack.c.0.s8 %v3450
      %v3452 = vlaneseq
      %v3453 = vshrl.u32 %v3452, 7
      %v3454 = vsub.s32 %v3451, %v3453
      %v3455 = vrot.slane %v3439, %v3454
      %v3457 = vunpack.c.l.s4 1966171168
      %v3458 = vunpack.c.0.s8 %v3457
      %v3459 = vlaneseq
      %v3460 = vshrl.u32 %v3459, 7
      %v3461 = vsub.s32 %v3458, %v3460
      %v3462 = vrot.slane %v3440, %v3461
      %v3464 = vunpack.c.l.s4 1966171168
      %v3465 = vunpack.c.0.s8 %v3464
      %v3466 = vlaneseq
      %v3467 = vshrl.u32 %v3466, 7
      %v3468 = vsub.s32 %v3465, %v3467
      %v3469 = vrot.slane %v3441, %v3468
      %v3470 = vcombine.high %v3448, %v3448
      %v3471 = vcombine.high %v3455, %v3455
      %v3472 = vcombine.high %v3462, %v3462
      %v3473 = vcombine.high %v3469, %v3469
      %v3474 = vcombine.high %v3092, %v3092
      %v3476 = vunpack.c.l.s4 1966171168
      %v3477 = vunpack.c.0.s8 %v3476
      %v3478 = vlaneseq
      %v3479 = vshrl.u32 %v3478, 7
      %v3480 = vsub.s32 %v3477, %v3479
      %v3481 = vrot.slane %v3092, %v3480
      %v3483 = vunpack.c.l.s4 1966171168
      %v3484 = vunpack.c.0.s8 %v3483
      %v3485 = vlaneseq
      %v3486 = vshrl.u32 %v3485, 7
      %v3487 = vsub.s32 %v3484, %v3486
      %v3488 = vrot.slane %v3474, %v3487
      %v3489 = vcombine.high %v3481, %v3481
      %v3490 = vcombine.high %v3488, %v3488
      %v3492 = vunpack.c.l.s4 1966171168
      %v3493 = vunpack.c.0.s8 %v3492
      %v3494 = vlaneseq
      %v3495 = vshrl.u32 %v3494, 7
      %v3496 = vsub.s32 %v3493, %v3495
      %v3497 = vrot.slane %v3481, %v3496
      %v3499 = vunpack.c.l.s4 1966171168
      %v3500 = vunpack.c.0.s8 %v3499
      %v3501 = vlaneseq
      %v3502 = vshrl.u32 %v3501, 7
      %v3503 = vsub.s32 %v3500, %v3502
      %v3504 = vrot.slane %v3488, %v3503
      %v3506 = vunpack.c.l.s4 1966171168
      %v3507 = vunpack.c.0.s8 %v3506
      %v3508 = vlaneseq
      %v3509 = vshrl.u32 %v3508, 7
      %v3510 = vsub.s32 %v3507, %v3509
      %v3511 = vrot.slane %v3489, %v3510
      %v3513 = vunpack.c.l.s4 1966171168
      %v3514 = vunpack.c.0.s8 %v3513
      %v3515 = vlaneseq
      %v3516 = vshrl.u32 %v3515, 7
      %v3517 = vsub.s32 %v3514, %v3516
      %v3518 = vrot.slane %v3490, %v3517
      %v3519 = vcombine.high %v3497, %v3497
      %v3520 = vcombine.high %v3504, %v3504
      %v3521 = vcombine.high %v3511, %v3511
      %v3522 = vcombine.high %v3518, %v3518
      %v3523 = vcombine.high %v3097, %v3097
      %v3525 = vunpack.c.l.s4 1966171168
      %v3526 = vunpack.c.0.s8 %v3525
      %v3527 = vlaneseq
      %v3528 = vshrl.u32 %v3527, 7
      %v3529 = vsub.s32 %v3526, %v3528
      %v3530 = vrot.slane %v3097, %v3529
      %v3532 = vunpack.c.l.s4 1966171168
      %v3533 = vunpack.c.0.s8 %v3532
      %v3534 = vlaneseq
      %v3535 = vshrl.u32 %v3534, 7
      %v3536 = vsub.s32 %v3533, %v3535
      %v3537 = vrot.slane %v3523, %v3536
      %v3538 = vcombine.high %v3530, %v3530
      %v3539 = vcombine.high %v3537, %v3537
      %v3541 = vunpack.c.l.s4 1966171168
      %v3542 = vunpack.c.0.s8 %v3541
      %v3543 = vlaneseq
      %v3544 = vshrl.u32 %v3543, 7
      %v3545 = vsub.s32 %v3542, %v3544
      %v3546 = vrot.slane %v3530, %v3545
      %v3548 = vunpack.c.l.s4 1966171168
      %v3549 = vunpack.c.0.s8 %v3548
      %v3550 = vlaneseq
      %v3551 = vshrl.u32 %v3550, 7
      %v3552 = vsub.s32 %v3549, %v3551
      %v3553 = vrot.slane %v3537, %v3552
      %v3555 = vunpack.c.l.s4 1966171168
      %v3556 = vunpack.c.0.s8 %v3555
      %v3557 = vlaneseq
      %v3558 = vshrl.u32 %v3557, 7
      %v3559 = vsub.s32 %v3556, %v3558
      %v3560 = vrot.slane %v3538, %v3559
      %v3562 = vunpack.c.l.s4 1966171168
      %v3563 = vunpack.c.0.s8 %v3562
      %v3564 = vlaneseq
      %v3565 = vshrl.u32 %v3564, 7
      %v3566 = vsub.s32 %v3563, %v3565
      %v3567 = vrot.slane %v3539, %v3566
      %v3568 = vcombine.high %v3546, %v3546
      %v3569 = vcombine.high %v3553, %v3553
      %v3570 = vcombine.high %v3560, %v3560
      %v3571 = vcombine.high %v3567, %v3567
      %v3572 = vcombine.high %v3100, %v3100
      %v3574 = vunpack.c.l.s4 1966171168
      %v3575 = vunpack.c.0.s8 %v3574
      %v3576 = vlaneseq
      %v3577 = vshrl.u32 %v3576, 7
      %v3578 = vsub.s32 %v3575, %v3577
      %v3579 = vrot.slane %v3100, %v3578
      %v3581 = vunpack.c.l.s4 1966171168
      %v3582 = vunpack.c.0.s8 %v3581
      %v3583 = vlaneseq
      %v3584 = vshrl.u32 %v3583, 7
      %v3585 = vsub.s32 %v3582, %v3584
      %v3586 = vrot.slane %v3572, %v3585
      %v3587 = vcombine.high %v3579, %v3579
      %v3588 = vcombine.high %v3586, %v3586
      %v3590 = vunpack.c.l.s4 1966171168
      %v3591 = vunpack.c.0.s8 %v3590
      %v3592 = vlaneseq
      %v3593 = vshrl.u32 %v3592, 7
      %v3594 = vsub.s32 %v3591, %v3593
      %v3595 = vrot.slane %v3579, %v3594
      %v3597 = vunpack.c.l.s4 1966171168
      %v3598 = vunpack.c.0.s8 %v3597
      %v3599 = vlaneseq
      %v3600 = vshrl.u32 %v3599, 7
      %v3601 = vsub.s32 %v3598, %v3600
      %v3602 = vrot.slane %v3586, %v3601
      %v3604 = vunpack.c.l.s4 1966171168
      %v3605 = vunpack.c.0.s8 %v3604
      %v3606 = vlaneseq
      %v3607 = vshrl.u32 %v3606, 7
      %v3608 = vsub.s32 %v3605, %v3607
      %v3609 = vrot.slane %v3587, %v3608
      %v3611 = vunpack.c.l.s4 1966171168
      %v3612 = vunpack.c.0.s8 %v3611
      %v3613 = vlaneseq
      %v3614 = vshrl.u32 %v3613, 7
      %v3615 = vsub.s32 %v3612, %v3614
      %v3616 = vrot.slane %v3588, %v3615
      %v3617 = vcombine.high %v3595, %v3595
      %v3618 = vcombine.high %v3602, %v3602
      %v3619 = vcombine.high %v3609, %v3609
      %v3620 = vcombine.high %v3616, %v3616
      %v3621 = vcombine.high %v3105, %v3105
      %v3623 = vunpack.c.l.s4 1966171168
      %v3624 = vunpack.c.0.s8 %v3623
      %v3625 = vlaneseq
      %v3626 = vshrl.u32 %v3625, 7
      %v3627 = vsub.s32 %v3624, %v3626
      %v3628 = vrot.slane %v3105, %v3627
      %v3630 = vunpack.c.l.s4 1966171168
      %v3631 = vunpack.c.0.s8 %v3630
      %v3632 = vlaneseq
      %v3633 = vshrl.u32 %v3632, 7
      %v3634 = vsub.s32 %v3631, %v3633
      %v3635 = vrot.slane %v3621, %v3634
      %v3636 = vcombine.high %v3628, %v3628
      %v3637 = vcombine.high %v3635, %v3635
      %v3639 = vunpack.c.l.s4 1966171168
      %v3640 = vunpack.c.0.s8 %v3639
      %v3641 = vlaneseq
      %v3642 = vshrl.u32 %v3641, 7
      %v3643 = vsub.s32 %v3640, %v3642
      %v3644 = vrot.slane %v3628, %v3643
      %v3646 = vunpack.c.l.s4 1966171168
      %v3647 = vunpack.c.0.s8 %v3646
      %v3648 = vlaneseq
      %v3649 = vshrl.u32 %v3648, 7
      %v3650 = vsub.s32 %v3647, %v3649
      %v3651 = vrot.slane %v3635, %v3650
      %v3653 = vunpack.c.l.s4 1966171168
      %v3654 = vunpack.c.0.s8 %v3653
      %v3655 = vlaneseq
      %v3656 = vshrl.u32 %v3655, 7
      %v3657 = vsub.s32 %v3654, %v3656
      %v3658 = vrot.slane %v3636, %v3657
      %v3660 = vunpack.c.l.s4 1966171168
      %v3661 = vunpack.c.0.s8 %v3660
      %v3662 = vlaneseq
      %v3663 = vshrl.u32 %v3662, 7
      %v3664 = vsub.s32 %v3661, %v3663
      %v3665 = vrot.slane %v3637, %v3664
      %v3666 = vcombine.high %v3644, %v3644
      %v3667 = vcombine.high %v3651, %v3651
      %v3668 = vcombine.high %v3658, %v3658
      %v3669 = vcombine.high %v3665, %v3665
      %v3670 = vcombine.high %v3108, %v3108
      %v3672 = vunpack.c.l.s4 1966171168
      %v3673 = vunpack.c.0.s8 %v3672
      %v3674 = vlaneseq
      %v3675 = vshrl.u32 %v3674, 7
      %v3676 = vsub.s32 %v3673, %v3675
      %v3677 = vrot.slane %v3108, %v3676
      %v3679 = vunpack.c.l.s4 1966171168
      %v3680 = vunpack.c.0.s8 %v3679
      %v3681 = vlaneseq
      %v3682 = vshrl.u32 %v3681, 7
      %v3683 = vsub.s32 %v3680, %v3682
      %v3684 = vrot.slane %v3670, %v3683
      %v3685 = vcombine.high %v3677, %v3677
      %v3686 = vcombine.high %v3684, %v3684
      %v3688 = vunpack.c.l.s4 1966171168
      %v3689 = vunpack.c.0.s8 %v3688
      %v3690 = vlaneseq
      %v3691 = vshrl.u32 %v3690, 7
      %v3692 = vsub.s32 %v3689, %v3691
      %v3693 = vrot.slane %v3677, %v3692
      %v3695 = vunpack.c.l.s4 1966171168
      %v3696 = vunpack.c.0.s8 %v3695
      %v3697 = vlaneseq
      %v3698 = vshrl.u32 %v3697, 7
      %v3699 = vsub.s32 %v3696, %v3698
      %v3700 = vrot.slane %v3684, %v3699
      %v3702 = vunpack.c.l.s4 1966171168
      %v3703 = vunpack.c.0.s8 %v3702
      %v3704 = vlaneseq
      %v3705 = vshrl.u32 %v3704, 7
      %v3706 = vsub.s32 %v3703, %v3705
      %v3707 = vrot.slane %v3685, %v3706
      %v3709 = vunpack.c.l.s4 1966171168
      %v3710 = vunpack.c.0.s8 %v3709
      %v3711 = vlaneseq
      %v3712 = vshrl.u32 %v3711, 7
      %v3713 = vsub.s32 %v3710, %v3712
      %v3714 = vrot.slane %v3686, %v3713
      %v3715 = vcombine.high %v3693, %v3693
      %v3716 = vcombine.high %v3700, %v3700
      %v3717 = vcombine.high %v3707, %v3707
      %v3718 = vcombine.high %v3714, %v3714
      %v3719 = vcombine.high %v3113, %v3113
      %v3721 = vunpack.c.l.s4 1966171168
      %v3722 = vunpack.c.0.s8 %v3721
      %v3723 = vlaneseq
      %v3724 = vshrl.u32 %v3723, 7
      %v3725 = vsub.s32 %v3722, %v3724
      %v3726 = vrot.slane %v3113, %v3725
      %v3728 = vunpack.c.l.s4 1966171168
      %v3729 = vunpack.c.0.s8 %v3728
      %v3730 = vlaneseq
      %v3731 = vshrl.u32 %v3730, 7
      %v3732 = vsub.s32 %v3729, %v3731
      %v3733 = vrot.slane %v3719, %v3732
      %v3734 = vcombine.high %v3726, %v3726
      %v3735 = vcombine.high %v3733, %v3733
      %v3737 = vunpack.c.l.s4 1966171168
      %v3738 = vunpack.c.0.s8 %v3737
      %v3739 = vlaneseq
      %v3740 = vshrl.u32 %v3739, 7
      %v3741 = vsub.s32 %v3738, %v3740
      %v3742 = vrot.slane %v3726, %v3741
      %v3744 = vunpack.c.l.s4 1966171168
      %v3745 = vunpack.c.0.s8 %v3744
      %v3746 = vlaneseq
      %v3747 = vshrl.u32 %v3746, 7
      %v3748 = vsub.s32 %v3745, %v3747
      %v3749 = vrot.slane %v3733, %v3748
      %v3751 = vunpack.c.l.s4 1966171168
      %v3752 = vunpack.c.0.s8 %v3751
      %v3753 = vlaneseq
      %v3754 = vshrl.u32 %v3753, 7
      %v3755 = vsub.s32 %v3752, %v3754
      %v3756 = vrot.slane %v3734, %v3755
      %v3758 = vunpack.c.l.s4 1966171168
      %v3759 = vunpack.c.0.s8 %v3758
      %v3760 = vlaneseq
      %v3761 = vshrl.u32 %v3760, 7
      %v3762 = vsub.s32 %v3759, %v3761
      %v3763 = vrot.slane %v3735, %v3762
      %v3764 = vcombine.high %v3742, %v3742
      %v3765 = vcombine.high %v3749, %v3749
      %v3766 = vcombine.high %v3756, %v3756
      %v3767 = vcombine.high %v3763, %v3763
      %v3768 = vcombine.low %v3154, %v3168
      %v3769 = vcombine.low %v3176, %v3178
      %v3770 = vcombine.low %v3161, %v3175
      %v3771 = vcombine.low %v3177, %v3179
      %v3773 = vunpack.c.l.s4 1966171168
      %v3774 = vunpack.c.0.s8 %v3773
      %v3775 = vlaneseq
      %v3776 = vshrl.u32 %v3775, 7
      %v3777 = vsub.s32 %v3774, %v3776
      %v3778 = vrot.slane %v3768, %v3777
      %v3780 = vunpack.c.l.s4 1966171168
      %v3781 = vunpack.c.0.s8 %v3780
      %v3782 = vlaneseq
      %v3783 = vshrl.u32 %v3782, 7
      %v3784 = vsub.s32 %v3781, %v3783
      %v3785 = vrot.slane %v3769, %v3784
      %v3787 = vunpack.c.l.s4 1966171168
      %v3788 = vunpack.c.0.s8 %v3787
      %v3789 = vlaneseq
      %v3790 = vshrl.u32 %v3789, 7
      %v3791 = vsub.s32 %v3788, %v3790
      %v3792 = vrot.slane %v3770, %v3791
      %v3794 = vunpack.c.l.s4 1966171168
      %v3795 = vunpack.c.0.s8 %v3794
      %v3796 = vlaneseq
      %v3797 = vshrl.u32 %v3796, 7
      %v3798 = vsub.s32 %v3795, %v3797
      %v3799 = vrot.slane %v3771, %v3798
      %v3800 = vcombine.low %v3778, %v3785
      %v3801 = vcombine.low %v3792, %v3799
      %v3803 = vunpack.c.l.s4 1966171168
      %v3804 = vunpack.c.0.s8 %v3803
      %v3805 = vlaneseq
      %v3806 = vshrl.u32 %v3805, 7
      %v3807 = vsub.s32 %v3804, %v3806
      %v3808 = vrot.slane %v3800, %v3807
      %v3810 = vunpack.c.l.s4 1966171168
      %v3811 = vunpack.c.0.s8 %v3810
      %v3812 = vlaneseq
      %v3813 = vshrl.u32 %v3812, 7
      %v3814 = vsub.s32 %v3811, %v3813
      %v3815 = vrot.slane %v3801, %v3814
      %v3816 = vcombine.low %v3808, %v3815
      %v3817 = vcombine.low %v3203, %v3217
      %v3818 = vcombine.low %v3225, %v3227
      %v3820 = vunpack.c.l.s4 1966171168
      %v3821 = vunpack.c.0.s8 %v3820
      %v3822 = vlaneseq
      %v3823 = vshrl.u32 %v3822, 7
      %v3824 = vsub.s32 %v3821, %v3823
      %v3825 = vrot.slane %v3817, %v3824
      %v3827 = vunpack.c.l.s4 1966171168
      %v3828 = vunpack.c.0.s8 %v3827
      %v3829 = vlaneseq
      %v3830 = vshrl.u32 %v3829, 7
      %v3831 = vsub.s32 %v3828, %v3830
      %v3832 = vrot.slane %v3818, %v3831
      %v3834 = vunpack.c.l.s4 1966171168
      %v3835 = vunpack.c.0.s8 %v3834
      %v3836 = vlaneseq
      %v3837 = vshrl.u32 %v3836, 7
      %v3838 = vsub.s32 %v3835, %v3837
      %v3839 = vrot.slane %v3210, %v3838
      %v3840 = vcombine.low %v3825, %v3832
      %v3842 = vunpack.c.l.s4 1966171168
      %v3843 = vunpack.c.0.s8 %v3842
      %v3844 = vlaneseq
      %v3845 = vshrl.u32 %v3844, 7
      %v3846 = vsub.s32 %v3843, %v3845
      %v3847 = vrot.slane %v3840, %v3846
      %v3849 = vunpack.c.l.s4 1966171168
      %v3850 = vunpack.c.0.s8 %v3849
      %v3851 = vlaneseq
      %v3852 = vshrl.u32 %v3851, 7
      %v3853 = vsub.s32 %v3850, %v3852
      %v3854 = vrot.slane %v3839, %v3853
      %v3855 = vcombine.low %v3847, %v3854
      %v3856 = vcombine.low %v3224, %v3226
      %v3857 = vcombine.low %v3228, %v3252
      %v3858 = vcombine.low %v3266, %v3274
      %v3859 = vcombine.low %v3276, %v3259
      %v3861 = vunpack.c.l.s4 1966171168
      %v3862 = vunpack.c.0.s8 %v3861
      %v3863 = vlaneseq
      %v3864 = vshrl.u32 %v3863, 7
      %v3865 = vsub.s32 %v3862, %v3864
      %v3866 = vrot.slane %v3856, %v3865
      %v3868 = vunpack.c.l.s4 1966171168
      %v3869 = vunpack.c.0.s8 %v3868
      %v3870 = vlaneseq
      %v3871 = vshrl.u32 %v3870, 7
      %v3872 = vsub.s32 %v3869, %v3871
      %v3873 = vrot.slane %v3857, %v3872
      %v3875 = vunpack.c.l.s4 1966171168
      %v3876 = vunpack.c.0.s8 %v3875
      %v3877 = vlaneseq
      %v3878 = vshrl.u32 %v3877, 7
      %v3879 = vsub.s32 %v3876, %v3878
      %v3880 = vrot.slane %v3858, %v3879
      %v3882 = vunpack.c.l.s4 1966171168
      %v3883 = vunpack.c.0.s8 %v3882
      %v3884 = vlaneseq
      %v3885 = vshrl.u32 %v3884, 7
      %v3886 = vsub.s32 %v3883, %v3885
      %v3887 = vrot.slane %v3859, %v3886
      %v3888 = vcombine.low %v3866, %v3873
      %v3889 = vcombine.low %v3880, %v3887
      %v3891 = vunpack.c.l.s4 1966171168
      %v3892 = vunpack.c.0.s8 %v3891
      %v3893 = vlaneseq
      %v3894 = vshrl.u32 %v3893, 7
      %v3895 = vsub.s32 %v3892, %v3894
      %v3896 = vrot.slane %v3888, %v3895
      %v3898 = vunpack.c.l.s4 1966171168
      %v3899 = vunpack.c.0.s8 %v3898
      %v3900 = vlaneseq
      %v3901 = vshrl.u32 %v3900, 7
      %v3902 = vsub.s32 %v3899, %v3901
      %v3903 = vrot.slane %v3889, %v3902
      %v3904 = vcombine.low %v3896, %v3903
      %v3905 = vcombine.low %v3273, %v3275
      %v3906 = vcombine.low %v3277, %v3301
      %v3908 = vunpack.c.l.s4 1966171168
      %v3909 = vunpack.c.0.s8 %v3908
      %v3910 = vlaneseq
      %v3911 = vshrl.u32 %v3910, 7
      %v3912 = vsub.s32 %v3909, %v3911
      %v3913 = vrot.slane %v3905, %v3912
      %v3915 = vunpack.c.l.s4 1966171168
      %v3916 = vunpack.c.0.s8 %v3915
      %v3917 = vlaneseq
      %v3918 = vshrl.u32 %v3917, 7
      %v3919 = vsub.s32 %v3916, %v3918
      %v3920 = vrot.slane %v3906, %v3919
      %v3922 = vunpack.c.l.s4 1966171168
      %v3923 = vunpack.c.0.s8 %v3922
      %v3924 = vlaneseq
      %v3925 = vshrl.u32 %v3924, 7
      %v3926 = vsub.s32 %v3923, %v3925
      %v3927 = vrot.slane %v3315, %v3926
      %v3928 = vcombine.low %v3913, %v3920
      %v3930 = vunpack.c.l.s4 1966171168
      %v3931 = vunpack.c.0.s8 %v3930
      %v3932 = vlaneseq
      %v3933 = vshrl.u32 %v3932, 7
      %v3934 = vsub.s32 %v3931, %v3933
      %v3935 = vrot.slane %v3928, %v3934
      %v3937 = vunpack.c.l.s4 1966171168
      %v3938 = vunpack.c.0.s8 %v3937
      %v3939 = vlaneseq
      %v3940 = vshrl.u32 %v3939, 7
      %v3941 = vsub.s32 %v3938, %v3940
      %v3942 = vrot.slane %v3927, %v3941
      %v3943 = vcombine.low %v3935, %v3942
      %v3944 = vcombine.low %v3323, %v3325
      %v3945 = vcombine.low %v3308, %v3322
      %v3946 = vcombine.low %v3324, %v3326
      %v3947 = vcombine.low %v3350, %v3364
      %v3949 = vunpack.c.l.s4 1966171168
      %v3950 = vunpack.c.0.s8 %v3949
      %v3951 = vlaneseq
      %v3952 = vshrl.u32 %v3951, 7
      %v3953 = vsub.s32 %v3950, %v3952
      %v3954 = vrot.slane %v3944, %v3953
      %v3956 = vunpack.c.l.s4 1966171168
      %v3957 = vunpack.c.0.s8 %v3956
      %v3958 = vlaneseq
      %v3959 = vshrl.u32 %v3958, 7
      %v3960 = vsub.s32 %v3957, %v3959
      %v3961 = vrot.slane %v3945, %v3960
      %v3963 = vunpack.c.l.s4 1966171168
      %v3964 = vunpack.c.0.s8 %v3963
      %v3965 = vlaneseq
      %v3966 = vshrl.u32 %v3965, 7
      %v3967 = vsub.s32 %v3964, %v3966
      %v3968 = vrot.slane %v3946, %v3967
      %v3970 = vunpack.c.l.s4 1966171168
      %v3971 = vunpack.c.0.s8 %v3970
      %v3972 = vlaneseq
      %v3973 = vshrl.u32 %v3972, 7
      %v3974 = vsub.s32 %v3971, %v3973
      %v3975 = vrot.slane %v3947, %v3974
      %v3976 = vcombine.low %v3954, %v3961
      %v3977 = vcombine.low %v3968, %v3975
      %v3979 = vunpack.c.l.s4 1966171168
      %v3980 = vunpack.c.0.s8 %v3979
      %v3981 = vlaneseq
      %v3982 = vshrl.u32 %v3981, 7
      %v3983 = vsub.s32 %v3980, %v3982
      %v3984 = vrot.slane %v3976, %v3983
      %v3986 = vunpack.c.l.s4 1966171168
      %v3987 = vunpack.c.0.s8 %v3986
      %v3988 = vlaneseq
      %v3989 = vshrl.u32 %v3988, 7
      %v3990 = vsub.s32 %v3987, %v3989
      %v3991 = vrot.slane %v3977, %v3990
      %v3992 = vcombine.low %v3984, %v3991
      %v3993 = vcombine.low %v3372, %v3374
      %v3994 = vcombine.low %v3357, %v3371
      %v3996 = vunpack.c.l.s4 1966171168
      %v3997 = vunpack.c.0.s8 %v3996
      %v3998 = vlaneseq
      %v3999 = vshrl.u32 %v3998, 7
      %v4000 = vsub.s32 %v3997, %v3999
      %v4001 = vrot.slane %v3993, %v4000
      %v4003 = vunpack.c.l.s4 1966171168
      %v4004 = vunpack.c.0.s8 %v4003
      %v4005 = vlaneseq
      %v4006 = vshrl.u32 %v4005, 7
      %v4007 = vsub.s32 %v4004, %v4006
      %v4008 = vrot.slane %v3994, %v4007
      %v4010 = vunpack.c.l.s4 1966171168
      %v4011 = vunpack.c.0.s8 %v4010
      %v4012 = vlaneseq
      %v4013 = vshrl.u32 %v4012, 7
      %v4014 = vsub.s32 %v4011, %v4013
      %v4015 = vrot.slane %v3373, %v4014
      %v4016 = vcombine.low %v4001, %v4008
      %v4018 = vunpack.c.l.s4 1966171168
      %v4019 = vunpack.c.0.s8 %v4018
      %v4020 = vlaneseq
      %v4021 = vshrl.u32 %v4020, 7
      %v4022 = vsub.s32 %v4019, %v4021
      %v4023 = vrot.slane %v4016, %v4022
      %v4025 = vunpack.c.l.s4 1966171168
      %v4026 = vunpack.c.0.s8 %v4025
      %v4027 = vlaneseq
      %v4028 = vshrl.u32 %v4027, 7
      %v4029 = vsub.s32 %v4026, %v4028
      %v4030 = vrot.slane %v4015, %v4029
      %v4031 = vcombine.low %v4023, %v4030
      %v4032 = vcombine.low %v3375, %v3399
      %v4033 = vcombine.low %v3413, %v3421
      %v4034 = vcombine.low %v3423, %v3406
      %v4035 = vcombine.low %v3420, %v3422
      %v4037 = vunpack.c.l.s4 1966171168
      %v4038 = vunpack.c.0.s8 %v4037
      %v4039 = vlaneseq
      %v4040 = vshrl.u32 %v4039, 7
      %v4041 = vsub.s32 %v4038, %v4040
      %v4042 = vrot.slane %v4032, %v4041
      %v4044 = vunpack.c.l.s4 1966171168
      %v4045 = vunpack.c.0.s8 %v4044
      %v4046 = vlaneseq
      %v4047 = vshrl.u32 %v4046, 7
      %v4048 = vsub.s32 %v4045, %v4047
      %v4049 = vrot.slane %v4033, %v4048
      %v4051 = vunpack.c.l.s4 1966171168
      %v4052 = vunpack.c.0.s8 %v4051
      %v4053 = vlaneseq
      %v4054 = vshrl.u32 %v4053, 7
      %v4055 = vsub.s32 %v4052, %v4054
      %v4056 = vrot.slane %v4034, %v4055
      %v4058 = vunpack.c.l.s4 1966171168
      %v4059 = vunpack.c.0.s8 %v4058
      %v4060 = vlaneseq
      %v4061 = vshrl.u32 %v4060, 7
      %v4062 = vsub.s32 %v4059, %v4061
      %v4063 = vrot.slane %v4035, %v4062
      %v4064 = vcombine.low %v4042, %v4049
      %v4065 = vcombine.low %v4056, %v4063
      %v4067 = vunpack.c.l.s4 1966171168
      %v4068 = vunpack.c.0.s8 %v4067
      %v4069 = vlaneseq
      %v4070 = vshrl.u32 %v4069, 7
      %v4071 = vsub.s32 %v4068, %v4070
      %v4072 = vrot.slane %v4064, %v4071
      %v4074 = vunpack.c.l.s4 1966171168
      %v4075 = vunpack.c.0.s8 %v4074
      %v4076 = vlaneseq
      %v4077 = vshrl.u32 %v4076, 7
      %v4078 = vsub.s32 %v4075, %v4077
      %v4079 = vrot.slane %v4065, %v4078
      %v4080 = vcombine.low %v4072, %v4079
      %v4081 = vcombine.low %v3424, %v3448
      %v4082 = vcombine.low %v3462, %v3470
      %v4084 = vunpack.c.l.s4 1966171168
      %v4085 = vunpack.c.0.s8 %v4084
      %v4086 = vlaneseq
      %v4087 = vshrl.u32 %v4086, 7
      %v4088 = vsub.s32 %v4085, %v4087
      %v4089 = vrot.slane %v4081, %v4088
      %v4091 = vunpack.c.l.s4 1966171168
      %v4092 = vunpack.c.0.s8 %v4091
      %v4093 = vlaneseq
      %v4094 = vshrl.u32 %v4093, 7
      %v4095 = vsub.s32 %v4092, %v4094
      %v4096 = vrot.slane %v4082, %v4095
      %v4098 = vunpack.c.l.s4 1966171168
      %v4099 = vunpack.c.0.s8 %v4098
      %v4100 = vlaneseq
      %v4101 = vshrl.u32 %v4100, 7
      %v4102 = vsub.s32 %v4099, %v4101
      %v4103 = vrot.slane %v3472, %v4102
      %v4104 = vcombine.low %v4089, %v4096
      %v4106 = vunpack.c.l.s4 1966171168
      %v4107 = vunpack.c.0.s8 %v4106
      %v4108 = vlaneseq
      %v4109 = vshrl.u32 %v4108, 7
      %v4110 = vsub.s32 %v4107, %v4109
      %v4111 = vrot.slane %v4104, %v4110
      %v4113 = vunpack.c.l.s4 1966171168
      %v4114 = vunpack.c.0.s8 %v4113
      %v4115 = vlaneseq
      %v4116 = vshrl.u32 %v4115, 7
      %v4117 = vsub.s32 %v4114, %v4116
      %v4118 = vrot.slane %v4103, %v4117
      %v4119 = vcombine.low %v4111, %v4118
      %v4120 = vcombine.low %v3455, %v3469
      %v4121 = vcombine.low %v3471, %v3473
      %v4122 = vcombine.low %v3497, %v3511
      %v4123 = vcombine.low %v3519, %v3521
      %v4125 = vunpack.c.l.s4 1966171168
      %v4126 = vunpack.c.0.s8 %v4125
      %v4127 = vlaneseq
      %v4128 = vshrl.u32 %v4127, 7
      %v4129 = vsub.s32 %v4126, %v4128
      %v4130 = vrot.slane %v4120, %v4129
      %v4132 = vunpack.c.l.s4 1966171168
      %v4133 = vunpack.c.0.s8 %v4132
      %v4134 = vlaneseq
      %v4135 = vshrl.u32 %v4134, 7
      %v4136 = vsub.s32 %v4133, %v4135
      %v4137 = vrot.slane %v4121, %v4136
      %v4139 = vunpack.c.l.s4 1966171168
      %v4140 = vunpack.c.0.s8 %v4139
      %v4141 = vlaneseq
      %v4142 = vshrl.u32 %v4141, 7
      %v4143 = vsub.s32 %v4140, %v4142
      %v4144 = vrot.slane %v4122, %v4143
      %v4146 = vunpack.c.l.s4 1966171168
      %v4147 = vunpack.c.0.s8 %v4146
      %v4148 = vlaneseq
      %v4149 = vshrl.u32 %v4148, 7
      %v4150 = vsub.s32 %v4147, %v4149
      %v4151 = vrot.slane %v4123, %v4150
      %v4152 = vcombine.low %v4130, %v4137
      %v4153 = vcombine.low %v4144, %v4151
      %v4155 = vunpack.c.l.s4 1966171168
      %v4156 = vunpack.c.0.s8 %v4155
      %v4157 = vlaneseq
      %v4158 = vshrl.u32 %v4157, 7
      %v4159 = vsub.s32 %v4156, %v4158
      %v4160 = vrot.slane %v4152, %v4159
      %v4162 = vunpack.c.l.s4 1966171168
      %v4163 = vunpack.c.0.s8 %v4162
      %v4164 = vlaneseq
      %v4165 = vshrl.u32 %v4164, 7
      %v4166 = vsub.s32 %v4163, %v4165
      %v4167 = vrot.slane %v4153, %v4166
      %v4168 = vcombine.low %v4160, %v4167
      %v4169 = vcombine.low %v3504, %v3518
      %v4170 = vcombine.low %v3520, %v3522
      %v4172 = vunpack.c.l.s4 1966171168
      %v4173 = vunpack.c.0.s8 %v4172
      %v4174 = vlaneseq
      %v4175 = vshrl.u32 %v4174, 7
      %v4176 = vsub.s32 %v4173, %v4175
      %v4177 = vrot.slane %v4169, %v4176
      %v4179 = vunpack.c.l.s4 1966171168
      %v4180 = vunpack.c.0.s8 %v4179
      %v4181 = vlaneseq
      %v4182 = vshrl.u32 %v4181, 7
      %v4183 = vsub.s32 %v4180, %v4182
      %v4184 = vrot.slane %v4170, %v4183
      %v4186 = vunpack.c.l.s4 1966171168
      %v4187 = vunpack.c.0.s8 %v4186
      %v4188 = vlaneseq
      %v4189 = vshrl.u32 %v4188, 7
      %v4190 = vsub.s32 %v4187, %v4189
      %v4191 = vrot.slane %v3546, %v4190
      %v4192 = vcombine.low %v4177, %v4184
      %v4194 = vunpack.c.l.s4 1966171168
      %v4195 = vunpack.c.0.s8 %v4194
      %v4196 = vlaneseq
      %v4197 = vshrl.u32 %v4196, 7
      %v4198 = vsub.s32 %v4195, %v4197
      %v4199 = vrot.slane %v4192, %v4198
      %v4201 = vunpack.c.l.s4 1966171168
      %v4202 = vunpack.c.0.s8 %v4201
      %v4203 = vlaneseq
      %v4204 = vshrl.u32 %v4203, 7
      %v4205 = vsub.s32 %v4202, %v4204
      %v4206 = vrot.slane %v4191, %v4205
      %v4207 = vcombine.low %v4199, %v4206
      %v4208 = vcombine.low %v3560, %v3568
      %v4209 = vcombine.low %v3570, %v3553
      %v4210 = vcombine.low %v3567, %v3569
      %v4211 = vcombine.low %v3571, %v3595
      %v4213 = vunpack.c.l.s4 1966171168
      %v4214 = vunpack.c.0.s8 %v4213
      %v4215 = vlaneseq
      %v4216 = vshrl.u32 %v4215, 7
      %v4217 = vsub.s32 %v4214, %v4216
      %v4218 = vrot.slane %v4208, %v4217
      %v4220 = vunpack.c.l.s4 1966171168
      %v4221 = vunpack.c.0.s8 %v4220
      %v4222 = vlaneseq
      %v4223 = vshrl.u32 %v4222, 7
      %v4224 = vsub.s32 %v4221, %v4223
      %v4225 = vrot.slane %v4209, %v4224
      %v4227 = vunpack.c.l.s4 1966171168
      %v4228 = vunpack.c.0.s8 %v4227
      %v4229 = vlaneseq
      %v4230 = vshrl.u32 %v4229, 7
      %v4231 = vsub.s32 %v4228, %v4230
      %v4232 = vrot.slane %v4210, %v4231
      %v4234 = vunpack.c.l.s4 1966171168
      %v4235 = vunpack.c.0.s8 %v4234
      %v4236 = vlaneseq
      %v4237 = vshrl.u32 %v4236, 7
      %v4238 = vsub.s32 %v4235, %v4237
      %v4239 = vrot.slane %v4211, %v4238
      %v4240 = vcombine.low %v4218, %v4225
      %v4241 = vcombine.low %v4232, %v4239
      %v4243 = vunpack.c.l.s4 1966171168
      %v4244 = vunpack.c.0.s8 %v4243
      %v4245 = vlaneseq
      %v4246 = vshrl.u32 %v4245, 7
      %v4247 = vsub.s32 %v4244, %v4246
      %v4248 = vrot.slane %v4240, %v4247
      %v4250 = vunpack.c.l.s4 1966171168
      %v4251 = vunpack.c.0.s8 %v4250
      %v4252 = vlaneseq
      %v4253 = vshrl.u32 %v4252, 7
      %v4254 = vsub.s32 %v4251, %v4253
      %v4255 = vrot.slane %v4241, %v4254
      %v4256 = vcombine.low %v4248, %v4255
      %v4257 = vcombine.low %v3609, %v3617
      %v4258 = vcombine.low %v3619, %v3602
      %v4260 = vunpack.c.l.s4 1966171168
      %v4261 = vunpack.c.0.s8 %v4260
      %v4262 = vlaneseq
      %v4263 = vshrl.u32 %v4262, 7
      %v4264 = vsub.s32 %v4261, %v4263
      %v4265 = vrot.slane %v4257, %v4264
      %v4267 = vunpack.c.l.s4 1966171168
      %v4268 = vunpack.c.0.s8 %v4267
      %v4269 = vlaneseq
      %v4270 = vshrl.u32 %v4269, 7
      %v4271 = vsub.s32 %v4268, %v4270
      %v4272 = vrot.slane %v4258, %v4271
      %v4274 = vunpack.c.l.s4 1966171168
      %v4275 = vunpack.c.0.s8 %v4274
      %v4276 = vlaneseq
      %v4277 = vshrl.u32 %v4276, 7
      %v4278 = vsub.s32 %v4275, %v4277
      %v4279 = vrot.slane %v3616, %v4278
      %v4280 = vcombine.low %v4265, %v4272
      %v4282 = vunpack.c.l.s4 1966171168
      %v4283 = vunpack.c.0.s8 %v4282
      %v4284 = vlaneseq
      %v4285 = vshrl.u32 %v4284, 7
      %v4286 = vsub.s32 %v4283, %v4285
      %v4287 = vrot.slane %v4280, %v4286
      %v4289 = vunpack.c.l.s4 1966171168
      %v4290 = vunpack.c.0.s8 %v4289
      %v4291 = vlaneseq
      %v4292 = vshrl.u32 %v4291, 7
      %v4293 = vsub.s32 %v4290, %v4292
      %v4294 = vrot.slane %v4279, %v4293
      %v4295 = vcombine.low %v4287, %v4294
      %v4296 = vcombine.low %v3618, %v3620
      %v4297 = vcombine.low %v3644, %v3658
      %v4298 = vcombine.low %v3666, %v3668
      %v4299 = vcombine.low %v3651, %v3665
      %v4301 = vunpack.c.l.s4 1966171168
      %v4302 = vunpack.c.0.s8 %v4301
      %v4303 = vlaneseq
      %v4304 = vshrl.u32 %v4303, 7
      %v4305 = vsub.s32 %v4302, %v4304
      %v4306 = vrot.slane %v4296, %v4305
      %v4308 = vunpack.c.l.s4 1966171168
      %v4309 = vunpack.c.0.s8 %v4308
      %v4310 = vlaneseq
      %v4311 = vshrl.u32 %v4310, 7
      %v4312 = vsub.s32 %v4309, %v4311
      %v4313 = vrot.slane %v4297, %v4312
      %v4315 = vunpack.c.l.s4 1966171168
      %v4316 = vunpack.c.0.s8 %v4315
      %v4317 = vlaneseq
      %v4318 = vshrl.u32 %v4317, 7
      %v4319 = vsub.s32 %v4316, %v4318
      %v4320 = vrot.slane %v4298, %v4319
      %v4322 = vunpack.c.l.s4 1966171168
      %v4323 = vunpack.c.0.s8 %v4322
      %v4324 = vlaneseq
      %v4325 = vshrl.u32 %v4324, 7
      %v4326 = vsub.s32 %v4323, %v4325
      %v4327 = vrot.slane %v4299, %v4326
      %v4328 = vcombine.low %v4306, %v4313
      %v4329 = vcombine.low %v4320, %v4327
      %v4331 = vunpack.c.l.s4 1966171168
      %v4332 = vunpack.c.0.s8 %v4331
      %v4333 = vlaneseq
      %v4334 = vshrl.u32 %v4333, 7
      %v4335 = vsub.s32 %v4332, %v4334
      %v4336 = vrot.slane %v4328, %v4335
      %v4338 = vunpack.c.l.s4 1966171168
      %v4339 = vunpack.c.0.s8 %v4338
      %v4340 = vlaneseq
      %v4341 = vshrl.u32 %v4340, 7
      %v4342 = vsub.s32 %v4339, %v4341
      %v4343 = vrot.slane %v4329, %v4342
      %v4344 = vcombine.low %v4336, %v4343
      %v4345 = vcombine.low %v3667, %v3669
      %v4346 = vcombine.low %v3693, %v3707
      %v4348 = vunpack.c.l.s4 1966171168
      %v4349 = vunpack.c.0.s8 %v4348
      %v4350 = vlaneseq
      %v4351 = vshrl.u32 %v4350, 7
      %v4352 = vsub.s32 %v4349, %v4351
      %v4353 = vrot.slane %v4345, %v4352
      %v4355 = vunpack.c.l.s4 1966171168
      %v4356 = vunpack.c.0.s8 %v4355
      %v4357 = vlaneseq
      %v4358 = vshrl.u32 %v4357, 7
      %v4359 = vsub.s32 %v4356, %v4358
      %v4360 = vrot.slane %v4346, %v4359
      %v4362 = vunpack.c.l.s4 1966171168
      %v4363 = vunpack.c.0.s8 %v4362
      %v4364 = vlaneseq
      %v4365 = vshrl.u32 %v4364, 7
      %v4366 = vsub.s32 %v4363, %v4365
      %v4367 = vrot.slane %v3715, %v4366
      %v4368 = vcombine.low %v4353, %v4360
      %v4370 = vunpack.c.l.s4 1966171168
      %v4371 = vunpack.c.0.s8 %v4370
      %v4372 = vlaneseq
      %v4373 = vshrl.u32 %v4372, 7
      %v4374 = vsub.s32 %v4371, %v4373
      %v4375 = vrot.slane %v4368, %v4374
      %v4377 = vunpack.c.l.s4 1966171168
      %v4378 = vunpack.c.0.s8 %v4377
      %v4379 = vlaneseq
      %v4380 = vshrl.u32 %v4379, 7
      %v4381 = vsub.s32 %v4378, %v4380
      %v4382 = vrot.slane %v4367, %v4381
      %v4383 = vcombine.low %v4375, %v4382
      %v4384 = vcombine.low %v3717, %v3700
      %v4385 = vcombine.low %v3714, %v3716
      %v4386 = vcombine.low %v3718, %v3742
      %v4387 = vcombine.low %v3756, %v3764
      %v4389 = vunpack.c.l.s4 1966171168
      %v4390 = vunpack.c.0.s8 %v4389
      %v4391 = vlaneseq
      %v4392 = vshrl.u32 %v4391, 7
      %v4393 = vsub.s32 %v4390, %v4392
      %v4394 = vrot.slane %v4384, %v4393
      %v4396 = vunpack.c.l.s4 1966171168
      %v4397 = vunpack.c.0.s8 %v4396
      %v4398 = vlaneseq
      %v4399 = vshrl.u32 %v4398, 7
      %v4400 = vsub.s32 %v4397, %v4399
      %v4401 = vrot.slane %v4385, %v4400
      %v4403 = vunpack.c.l.s4 1966171168
      %v4404 = vunpack.c.0.s8 %v4403
      %v4405 = vlaneseq
      %v4406 = vshrl.u32 %v4405, 7
      %v4407 = vsub.s32 %v4404, %v4406
      %v4408 = vrot.slane %v4386, %v4407
      %v4410 = vunpack.c.l.s4 1966171168
      %v4411 = vunpack.c.0.s8 %v4410
      %v4412 = vlaneseq
      %v4413 = vshrl.u32 %v4412, 7
      %v4414 = vsub.s32 %v4411, %v4413
      %v4415 = vrot.slane %v4387, %v4414
      %v4416 = vcombine.low %v4394, %v4401
      %v4417 = vcombine.low %v4408, %v4415
      %v4419 = vunpack.c.l.s4 1966171168
      %v4420 = vunpack.c.0.s8 %v4419
      %v4421 = vlaneseq
      %v4422 = vshrl.u32 %v4421, 7
      %v4423 = vsub.s32 %v4420, %v4422
      %v4424 = vrot.slane %v4416, %v4423
      %v4426 = vunpack.c.l.s4 1966171168
      %v4427 = vunpack.c.0.s8 %v4426
      %v4428 = vlaneseq
      %v4429 = vshrl.u32 %v4428, 7
      %v4430 = vsub.s32 %v4427, %v4429
      %v4431 = vrot.slane %v4417, %v4430
      %v4432 = vcombine.low %v4424, %v4431
      %v4433 = vcombine.low %v3766, %v3749
      %v4434 = vcombine.low %v3763, %v3765
      %v4436 = vunpack.c.l.s4 1966171168
      %v4437 = vunpack.c.0.s8 %v4436
      %v4438 = vlaneseq
      %v4439 = vshrl.u32 %v4438, 7
      %v4440 = vsub.s32 %v4437, %v4439
      %v4441 = vrot.slane %v4433, %v4440
      %v4443 = vunpack.c.l.s4 1966171168
      %v4444 = vunpack.c.0.s8 %v4443
      %v4445 = vlaneseq
      %v4446 = vshrl.u32 %v4445, 7
      %v4447 = vsub.s32 %v4444, %v4446
      %v4448 = vrot.slane %v4434, %v4447
      %v4450 = vunpack.c.l.s4 1966171168
      %v4451 = vunpack.c.0.s8 %v4450
      %v4452 = vlaneseq
      %v4453 = vshrl.u32 %v4452, 7
      %v4454 = vsub.s32 %v4451, %v4453
      %v4455 = vrot.slane %v3767, %v4454
      %v4456 = vcombine.low %v4441, %v4448
      %v4458 = vunpack.c.l.s4 1966171168
      %v4459 = vunpack.c.0.s8 %v4458
      %v4460 = vlaneseq
      %v4461 = vshrl.u32 %v4460, 7
      %v4462 = vsub.s32 %v4459, %v4461
      %v4463 = vrot.slane %v4456, %v4462
      %v4465 = vunpack.c.l.s4 1966171168
      %v4466 = vunpack.c.0.s8 %v4465
      %v4467 = vlaneseq
      %v4468 = vshrl.u32 %v4467, 7
      %v4469 = vsub.s32 %v4466, %v4468
      %v4470 = vrot.slane %v4455, %v4469
      %v4471 = vcombine.low %v4463, %v4470
      %vm4488 = vcmask 1044480
      %v4489 = vsel %vm4488, %v3855, -inf
      %v4490 = vmax.f32 %v3816, %v4489
      %v4491 = vrot.slane %v4490, 4
      %v4492 = vmax.f32 %v4490, %v4491
      %v4493 = vrot.slane %v4492, 2
      %v4494 = vmax.f32 %v4492, %v4493
      %v4495 = vrot.slane %v4494, 1
      %v4496 = vmax.f32 %v4494, %v4495
      %v4497 = vsel %vm4488, %v3943, -inf
      %v4498 = vmax.f32 %v3904, %v4497
      %v4499 = vrot.slane %v4498, 4
      %v4500 = vmax.f32 %v4498, %v4499
      %v4501 = vrot.slane %v4500, 2
      %v4502 = vmax.f32 %v4500, %v4501
      %v4503 = vrot.slane %v4502, 1
      %v4504 = vmax.f32 %v4502, %v4503
      %v4505 = vsel %vm4488, %v4031, -inf
      %v4506 = vmax.f32 %v3992, %v4505
      %v4507 = vrot.slane %v4506, 4
      %v4508 = vmax.f32 %v4506, %v4507
      %v4509 = vrot.slane %v4508, 2
      %v4510 = vmax.f32 %v4508, %v4509
      %v4511 = vrot.slane %v4510, 1
      %v4512 = vmax.f32 %v4510, %v4511
      %v4513 = vsel %vm4488, %v4119, -inf
      %v4514 = vmax.f32 %v4080, %v4513
      %v4515 = vrot.slane %v4514, 4
      %v4516 = vmax.f32 %v4514, %v4515
      %v4517 = vrot.slane %v4516, 2
      %v4518 = vmax.f32 %v4516, %v4517
      %v4519 = vrot.slane %v4518, 1
      %v4520 = vmax.f32 %v4518, %v4519
      %v4521 = vsel %vm4488, %v4207, -inf
      %v4522 = vmax.f32 %v4168, %v4521
      %v4523 = vrot.slane %v4522, 4
      %v4524 = vmax.f32 %v4522, %v4523
      %v4525 = vrot.slane %v4524, 2
      %v4526 = vmax.f32 %v4524, %v4525
      %v4527 = vrot.slane %v4526, 1
      %v4528 = vmax.f32 %v4526, %v4527
      %v4529 = vsel %vm4488, %v4295, -inf
      %v4530 = vmax.f32 %v4256, %v4529
      %v4531 = vrot.slane %v4530, 4
      %v4532 = vmax.f32 %v4530, %v4531
      %v4533 = vrot.slane %v4532, 2
      %v4534 = vmax.f32 %v4532, %v4533
      %v4535 = vrot.slane %v4534, 1
      %v4536 = vmax.f32 %v4534, %v4535
      %v4537 = vsel %vm4488, %v4383, -inf
      %v4538 = vmax.f32 %v4344, %v4537
      %v4539 = vrot.slane %v4538, 4
      %v4540 = vmax.f32 %v4538, %v4539
      %v4541 = vrot.slane %v4540, 2
      %v4542 = vmax.f32 %v4540, %v4541
      %v4543 = vrot.slane %v4542, 1
      %v4544 = vmax.f32 %v4542, %v4543
      %v4545 = vsel %vm4488, %v4471, -inf
      %v4546 = vmax.f32 %v4432, %v4545
      %v4547 = vrot.slane %v4546, 4
      %v4548 = vmax.f32 %v4546, %v4547
      %v4549 = vrot.slane %v4548, 2
      %v4550 = vmax.f32 %v4548, %v4549
      %v4551 = vrot.slane %v4550, 1
      %v4552 = vmax.f32 %v4550, %v4551
      %v4553 = vld [vmem:[%s4] sm:$0x1]
      %v4555 = vlaneseq
      %v4556 = vshrl.u32 %v4555, 7
      %v4557 = vsub.s32 0, %v4556
      %v4558 = vrot.slane %v4553, %v4557
      %v4560 = vadd.f32 %v4496, %v4558
      %v4561 = vadd.f32 %v4504, %v4558
      %v4562 = vadd.f32 %v4512, %v4558
      %v4563 = vadd.f32 %v4520, %v4558
      %v4564 = vadd.f32 %v4528, %v4558
      %v4565 = vadd.f32 %v4536, %v4558
      %v4566 = vadd.f32 %v4544, %v4558
      %v4567 = vadd.f32 %v4552, %v4558
      %v4568 = vmax.f32 %v4560, 0.0
      %v4569 = vmax.f32 %v4561, 0.0
      %v4570 = vmax.f32 %v4562, 0.0
      %v4571 = vmax.f32 %v4563, 0.0
      %v4572 = vmax.f32 %v4564, 0.0
      %v4573 = vmax.f32 %v4565, 0.0
      %v4574 = vmax.f32 %v4566, 0.0
      %v4575 = vmax.f32 %v4567, 0.0
      %v4576 = vrot.slane %v385, 2
      %v4577 = vrot.slane %v386, 2
      %v4578 = vrot.slane %v387, 2
      %v4579 = vrot.slane %v388, 2
      %v4580 = vrot.slane %v389, 2
      %v4581 = vrot.slane %v390, 2
      %v4582 = vrot.slane %v391, 2
      %v4583 = vrot.slane %v392, 2
      %v4584 = vld [vmem:[%s5] sm:$0xf]
      %v4585 = vld [vmem:[%s5 + $0x4] sm:$0xf]
      %v4586 = vld [vmem:[%s5 + $0x8] sm:$0xf]
      %v4587 = vld [vmem:[%s5 + $0xc] sm:$0xf]
      %v4588 = vld [vmem:[%s5 + $0x10] sm:$0xf]
      %v4589 = vld [vmem:[%s5 + $0x14] sm:$0xf]
      %v4590 = vld [vmem:[%s5 + $0x18] sm:$0xf]
      %v4591 = vld [vmem:[%s5 + $0x1c] sm:$0xf]
      %v4592 = vld [vmem:[%s5 + $0x20] sm:$0xf]
      %v4593 = vld [vmem:[%s5 + $0x24] sm:$0xf]
      %v4594 = vld [vmem:[%s5 + $0x28] sm:$0xf]
      %v4595 = vld [vmem:[%s5 + $0x2c] sm:$0xf]
      %v4596 = vld [vmem:[%s5 + $0x30] sm:$0xf]
      %v4597 = vld [vmem:[%s5 + $0x34] sm:$0xf]
      %v4598 = vld [vmem:[%s5 + $0x38] sm:$0xf]
      %v4599 = vld [vmem:[%s5 + $0x3c] sm:$0xf]
      %v4600 = vld [vmem:[%s5 + $0x40] sm:$0xf]
      %v4601 = vld [vmem:[%s5 + $0x44] sm:$0xf]
      %v4602 = vld [vmem:[%s5 + $0x48] sm:$0xf]
      %v4603 = vld [vmem:[%s5 + $0x4c] sm:$0xf]
      %v4604 = vcombine.low %v2078, %v4576
      %v4605 = vcombine.high %v2078, %v4576
      %v4607 = vunpack.c.l.s4 1983009808
      %v4608 = vunpack.c.0.s8 %v4607
      %v4609 = vlaneseq
      %v4610 = vshrl.u32 %v4609, 7
      %v4611 = vsub.s32 %v4608, %v4610
      %v4612 = vrot.slane %v4604, %v4611
      %v4614 = vunpack.c.l.s4 1983009808
      %v4615 = vunpack.c.0.s8 %v4614
      %v4616 = vlaneseq
      %v4617 = vshrl.u32 %v4616, 7
      %v4618 = vsub.s32 %v4615, %v4617
      %v4619 = vrot.slane %v4605, %v4618
      %v4620 = vcombine.high %v4612, %v4612
      %v4621 = vcombine.low %v2080, %v4577
      %v4622 = vcombine.high %v2080, %v4577
      %v4624 = vunpack.c.l.s4 1983009808
      %v4625 = vunpack.c.0.s8 %v4624
      %v4626 = vlaneseq
      %v4627 = vshrl.u32 %v4626, 7
      %v4628 = vsub.s32 %v4625, %v4627
      %v4629 = vrot.slane %v4621, %v4628
      %v4631 = vunpack.c.l.s4 1983009808
      %v4632 = vunpack.c.0.s8 %v4631
      %v4633 = vlaneseq
      %v4634 = vshrl.u32 %v4633, 7
      %v4635 = vsub.s32 %v4632, %v4634
      %v4636 = vrot.slane %v4622, %v4635
      %v4637 = vcombine.high %v4629, %v4629
      %v4638 = vcombine.low %v2082, %v4578
      %v4639 = vcombine.high %v2082, %v4578
      %v4641 = vunpack.c.l.s4 1983009808
      %v4642 = vunpack.c.0.s8 %v4641
      %v4643 = vlaneseq
      %v4644 = vshrl.u32 %v4643, 7
      %v4645 = vsub.s32 %v4642, %v4644
      %v4646 = vrot.slane %v4638, %v4645
      %v4648 = vunpack.c.l.s4 1983009808
      %v4649 = vunpack.c.0.s8 %v4648
      %v4650 = vlaneseq
      %v4651 = vshrl.u32 %v4650, 7
      %v4652 = vsub.s32 %v4649, %v4651
      %v4653 = vrot.slane %v4639, %v4652
      %v4654 = vcombine.high %v4646, %v4646
      %v4655 = vcombine.low %v2084, %v4579
      %v4656 = vcombine.high %v2084, %v4579
      %v4658 = vunpack.c.l.s4 1983009808
      %v4659 = vunpack.c.0.s8 %v4658
      %v4660 = vlaneseq
      %v4661 = vshrl.u32 %v4660, 7
      %v4662 = vsub.s32 %v4659, %v4661
      %v4663 = vrot.slane %v4655, %v4662
      %v4665 = vunpack.c.l.s4 1983009808
      %v4666 = vunpack.c.0.s8 %v4665
      %v4667 = vlaneseq
      %v4668 = vshrl.u32 %v4667, 7
      %v4669 = vsub.s32 %v4666, %v4668
      %v4670 = vrot.slane %v4656, %v4669
      %v4671 = vcombine.high %v4663, %v4663
      %v4672 = vcombine.low %v2086, %v4580
      %v4673 = vcombine.high %v2086, %v4580
      %v4675 = vunpack.c.l.s4 1983009808
      %v4676 = vunpack.c.0.s8 %v4675
      %v4677 = vlaneseq
      %v4678 = vshrl.u32 %v4677, 7
      %v4679 = vsub.s32 %v4676, %v4678
      %v4680 = vrot.slane %v4672, %v4679
      %v4682 = vunpack.c.l.s4 1983009808
      %v4683 = vunpack.c.0.s8 %v4682
      %v4684 = vlaneseq
      %v4685 = vshrl.u32 %v4684, 7
      %v4686 = vsub.s32 %v4683, %v4685
      %v4687 = vrot.slane %v4673, %v4686
      %v4688 = vcombine.high %v4680, %v4680
      %v4689 = vcombine.low %v2088, %v4581
      %v4690 = vcombine.high %v2088, %v4581
      %v4692 = vunpack.c.l.s4 1983009808
      %v4693 = vunpack.c.0.s8 %v4692
      %v4694 = vlaneseq
      %v4695 = vshrl.u32 %v4694, 7
      %v4696 = vsub.s32 %v4693, %v4695
      %v4697 = vrot.slane %v4689, %v4696
      %v4699 = vunpack.c.l.s4 1983009808
      %v4700 = vunpack.c.0.s8 %v4699
      %v4701 = vlaneseq
      %v4702 = vshrl.u32 %v4701, 7
      %v4703 = vsub.s32 %v4700, %v4702
      %v4704 = vrot.slane %v4690, %v4703
      %v4705 = vcombine.high %v4697, %v4697
      %v4706 = vcombine.low %v2090, %v4582
      %v4707 = vcombine.high %v2090, %v4582
      %v4709 = vunpack.c.l.s4 1983009808
      %v4710 = vunpack.c.0.s8 %v4709
      %v4711 = vlaneseq
      %v4712 = vshrl.u32 %v4711, 7
      %v4713 = vsub.s32 %v4710, %v4712
      %v4714 = vrot.slane %v4706, %v4713
      %v4716 = vunpack.c.l.s4 1983009808
      %v4717 = vunpack.c.0.s8 %v4716
      %v4718 = vlaneseq
      %v4719 = vshrl.u32 %v4718, 7
      %v4720 = vsub.s32 %v4717, %v4719
      %v4721 = vrot.slane %v4707, %v4720
      %v4722 = vcombine.high %v4714, %v4714
      %v4723 = vcombine.low %v2092, %v4583
      %v4724 = vcombine.high %v2092, %v4583
      %v4726 = vunpack.c.l.s4 1983009808
      %v4727 = vunpack.c.0.s8 %v4726
      %v4728 = vlaneseq
      %v4729 = vshrl.u32 %v4728, 7
      %v4730 = vsub.s32 %v4727, %v4729
      %v4731 = vrot.slane %v4723, %v4730
      %v4733 = vunpack.c.l.s4 1983009808
      %v4734 = vunpack.c.0.s8 %v4733
      %v4735 = vlaneseq
      %v4736 = vshrl.u32 %v4735, 7
      %v4737 = vsub.s32 %v4734, %v4736
      %v4738 = vrot.slane %v4724, %v4737
      %v4739 = vcombine.high %v4731, %v4731
      %v4740 = vcombine.low %v4612, %v4620
      %v4741 = vcombine.low %v4619, %v4629
      %v4743 = vunpack.c.l.s4 1983009808
      %v4744 = vunpack.c.0.s8 %v4743
      %v4745 = vlaneseq
      %v4746 = vshrl.u32 %v4745, 7
      %v4747 = vsub.s32 %v4744, %v4746
      %v4748 = vrot.slane %v4740, %v4747
      %v4750 = vunpack.c.l.s4 1983009808
      %v4751 = vunpack.c.0.s8 %v4750
      %v4752 = vlaneseq
      %v4753 = vshrl.u32 %v4752, 7
      %v4754 = vsub.s32 %v4751, %v4753
      %v4755 = vrot.slane %v4741, %v4754
      %v4756 = vcombine.low %v4748, %v4755
      %v4757 = vcombine.high %v4748, %v4755
      %v4758 = vcombine.low %v4637, %v4636
      %v4759 = vcombine.low %v4646, %v4654
      %v4761 = vunpack.c.l.s4 1983009808
      %v4762 = vunpack.c.0.s8 %v4761
      %v4763 = vlaneseq
      %v4764 = vshrl.u32 %v4763, 7
      %v4765 = vsub.s32 %v4762, %v4764
      %v4766 = vrot.slane %v4758, %v4765
      %v4768 = vunpack.c.l.s4 1983009808
      %v4769 = vunpack.c.0.s8 %v4768
      %v4770 = vlaneseq
      %v4771 = vshrl.u32 %v4770, 7
      %v4772 = vsub.s32 %v4769, %v4771
      %v4773 = vrot.slane %v4759, %v4772
      %v4774 = vcombine.low %v4766, %v4773
      %v4775 = vcombine.high %v4766, %v4773
      %v4776 = vcombine.low %v4653, %v4663
      %v4777 = vcombine.low %v4671, %v4670
      %v4779 = vunpack.c.l.s4 1983009808
      %v4780 = vunpack.c.0.s8 %v4779
      %v4781 = vlaneseq
      %v4782 = vshrl.u32 %v4781, 7
      %v4783 = vsub.s32 %v4780, %v4782
      %v4784 = vrot.slane %v4776, %v4783
      %v4786 = vunpack.c.l.s4 1983009808
      %v4787 = vunpack.c.0.s8 %v4786
      %v4788 = vlaneseq
      %v4789 = vshrl.u32 %v4788, 7
      %v4790 = vsub.s32 %v4787, %v4789
      %v4791 = vrot.slane %v4777, %v4790
      %v4792 = vcombine.low %v4784, %v4791
      %v4793 = vcombine.high %v4784, %v4791
      %v4794 = vcombine.low %v4680, %v4688
      %v4795 = vcombine.low %v4687, %v4697
      %v4797 = vunpack.c.l.s4 1983009808
      %v4798 = vunpack.c.0.s8 %v4797
      %v4799 = vlaneseq
      %v4800 = vshrl.u32 %v4799, 7
      %v4801 = vsub.s32 %v4798, %v4800
      %v4802 = vrot.slane %v4794, %v4801
      %v4804 = vunpack.c.l.s4 1983009808
      %v4805 = vunpack.c.0.s8 %v4804
      %v4806 = vlaneseq
      %v4807 = vshrl.u32 %v4806, 7
      %v4808 = vsub.s32 %v4805, %v4807
      %v4809 = vrot.slane %v4795, %v4808
      %v4810 = vcombine.low %v4802, %v4809
      %v4811 = vcombine.high %v4802, %v4809
      %v4812 = vcombine.low %v4705, %v4704
      %v4813 = vcombine.low %v4714, %v4722
      %v4815 = vunpack.c.l.s4 1983009808
      %v4816 = vunpack.c.0.s8 %v4815
      %v4817 = vlaneseq
      %v4818 = vshrl.u32 %v4817, 7
      %v4819 = vsub.s32 %v4816, %v4818
      %v4820 = vrot.slane %v4812, %v4819
      %v4822 = vunpack.c.l.s4 1983009808
      %v4823 = vunpack.c.0.s8 %v4822
      %v4824 = vlaneseq
      %v4825 = vshrl.u32 %v4824, 7
      %v4826 = vsub.s32 %v4823, %v4825
      %v4827 = vrot.slane %v4813, %v4826
      %v4828 = vcombine.low %v4820, %v4827
      %v4829 = vcombine.high %v4820, %v4827
      %v4830 = vcombine.low %v4721, %v4731
      %v4831 = vcombine.low %v4739, %v4738
      %v4833 = vunpack.c.l.s4 1983009808
      %v4834 = vunpack.c.0.s8 %v4833
      %v4835 = vlaneseq
      %v4836 = vshrl.u32 %v4835, 7
      %v4837 = vsub.s32 %v4834, %v4836
      %v4838 = vrot.slane %v4830, %v4837
      %v4840 = vunpack.c.l.s4 1983009808
      %v4841 = vunpack.c.0.s8 %v4840
      %v4842 = vlaneseq
      %v4843 = vshrl.u32 %v4842, 7
      %v4844 = vsub.s32 %v4841, %v4843
      %v4845 = vrot.slane %v4831, %v4844
      %v4846 = vcombine.low %v4838, %v4845
      %v4847 = vcombine.high %v4838, %v4845
      %v4874 = vunpack.c.l.b16 %v4584
      %v4875 = vunpack.c.l.b16 %v4585
      %v4876 = vunpack.c.l.b16 %v4586
      %v4877 = vunpack.c.l.b16 %v4587
      %v4878 = vunpack.c.l.b16 %v4588
      %v4879 = vunpack.c.l.b16 %v4589
      %v4880 = vunpack.c.l.b16 %v4590
      %v4881 = vunpack.c.l.b16 %v4591
      %v4882 = vunpack.c.l.b16 %v4592
      %v4883 = vunpack.c.l.b16 %v4593
      %v4884 = vunpack.c.l.b16 %v4594
      %v4885 = vunpack.c.l.b16 %v4595
      %v4886 = vunpack.c.l.b16 %v4596
      %v4887 = vunpack.c.l.b16 %v4597
      %v4888 = vunpack.c.l.b16 %v4598
      %v4889 = vunpack.c.l.b16 %v4599
      %v4890 = vunpack.c.l.b16 %v4600
      %v4891 = vunpack.c.l.b16 %v4601
      %v4892 = vunpack.c.l.b16 %v4602
      %v4893 = vunpack.c.l.b16 %v4603
      %v4894 = vpack.c.b16 %v4875, %v4874
      %v4895 = vpack.c.b16 %v4877, %v4876
      %v4896 = vpack.c.b16 %v4879, %v4878
      %v4897 = vpack.c.b16 %v4881, %v4880
      %v4898 = vpack.c.b16 %v4883, %v4882
      %v4899 = vpack.c.b16 %v4885, %v4884
      %v4900 = vpack.c.b16 %v4887, %v4886
      %v4901 = vpack.c.b16 %v4889, %v4888
      %v4902 = vpack.c.b16 %v4891, %v4890
      %v4903 = vpack.c.b16 %v4893, %v4892
      %v4915 = vsel %vm489, %v4757, 0
      %v4918 = vsel %vm489, %v4775, 0
      %v4921 = vsel %vm489, %v4793, 0
      %v4924 = vsel %vm489, %v4811, 0
      %v4927 = vsel %vm489, %v4829, 0
      %v4930 = vsel %vm489, %v4847, 0
      %4932 = vmatprep.subr.bf16.mxu0 0
      %4933 = vmatpush1.bf16.msra.mxu0 %v4894
      %4934 = vmatprep.subr.bf16.mxu0 0
      %4935 = vmatpush1.bf16.msra.mxu0 %v4895
      %4936 = vmatprep.subr.bf16.mxu0 0
      %4937 = vmatpush1.bf16.msra.mxu0 %v4896
      %4938 = vmatprep.subr.bf16.mxu0 0
      %4939 = vmatpush1.bf16.msra.mxu0 %v4897
      %4940 = vmatprep.subr.bf16.mxu0 0
      %4941 = vmatpush1.bf16.msra.mxu0 %v4898
      %4942 = vmatprep.subr.bf16.mxu0 0
      %4943 = vmatpush1.bf16.msra.mxu0 %v4899
      %4944 = vmatprep.subr.bf16.mxu0 0
      %4945 = vmatpush1.bf16.msra.mxu0 %v4900
      %4946 = vmatprep.subr.bf16.mxu0 0
      %4947 = vmatpush1.bf16.msra.mxu0 %v4901
      %4948 = vmatprep.subr.bf16.mxu0 0
      %4949 = vmatpush1.bf16.msra.mxu0 %v4902
      %4950 = vmatprep.subr.bf16.mxu0 0
      %4951 = vmatpush1.bf16.msra.mxu0 %v4903
      %4952 = vmatprep.subr.bf16.mxu0 0
      %4953 = vmatpush1.bf16.msra.mxu0 0
      %4954 = vmatprep.subr.bf16.mxu0 0
      %4955 = vmatpush1.bf16.msra.mxu0 0
      %4956 = vmatprep.subr.bf16.mxu0 0
      %4957 = vmatpush1.bf16.msra.mxu0 0
      %4958 = vmatprep.subr.bf16.mxu0 0
      %4959 = vmatpush1.bf16.msra.mxu0 0
      %4960 = vmatprep.subr.bf16.mxu0 0
      %4961 = vmatpush1.bf16.msra.mxu0 0
      %4962 = vmatprep.subr.bf16.mxu0 0
      %4963 = vmatpush1.bf16.msra.mxu0 0
      %4964 = vmatprep.mubr.bf16.mxu0 %v4915
      %4965 = vmatmul.mubr.bf16.gmra.mrb[0].mxu0 %v4756
      %v4966 = vpop.f32.mrb[0].mxu0
      %v4967 = vadd.f32 0.0, %v4966
      %v4968 = vpop.f32.mrb[0].mxu0
      %v4969 = vpop.f32.mrb[0].mxu0
      %v4970 = vadd.f32 0.0, %v4969
      %v4971 = vpop.f32.mrb[0].mxu0
      %4972 = vmatprep.mubr.bf16.mxu0 %v4918
      %4973 = vmatmul.mubr.bf16.gmra.mrb[0].mxu0 %v4774
      %v4974 = vpop.f32.mrb[0].mxu0
      %v4975 = vadd.f32 0.0, %v4974
      %v4976 = vpop.f32.mrb[0].mxu0
      %v4977 = vpop.f32.mrb[0].mxu0
      %v4978 = vadd.f32 0.0, %v4977
      %v4979 = vpop.f32.mrb[0].mxu0
      %4980 = vmatprep.mubr.bf16.mxu0 %v4921
      %4981 = vmatmul.mubr.bf16.gmra.mrb[0].mxu0 %v4792
      %v4982 = vpop.f32.mrb[0].mxu0
      %v4983 = vadd.f32 0.0, %v4982
      %v4984 = vpop.f32.mrb[0].mxu0
      %v4985 = vpop.f32.mrb[0].mxu0
      %v4986 = vadd.f32 0.0, %v4985
      %v4987 = vpop.f32.mrb[0].mxu0
      %4988 = vmatprep.mubr.bf16.mxu0 %v4924
      %4989 = vmatmul.mubr.bf16.gmra.mrb[0].mxu0 %v4810
      %v4990 = vpop.f32.mrb[0].mxu0
      %v4991 = vadd.f32 0.0, %v4990
      %v4992 = vpop.f32.mrb[0].mxu0
      %v4993 = vpop.f32.mrb[0].mxu0
      %v4994 = vadd.f32 0.0, %v4993
      %v4995 = vpop.f32.mrb[0].mxu0
      %4996 = vmatprep.mubr.bf16.mxu0 %v4927
      %4997 = vmatmul.mubr.bf16.gmra.mrb[0].mxu0 %v4828
      %v4998 = vpop.f32.mrb[0].mxu0
      %v4999 = vadd.f32 0.0, %v4998
      %v5000 = vpop.f32.mrb[0].mxu0
      %v5001 = vpop.f32.mrb[0].mxu0
      %v5002 = vadd.f32 0.0, %v5001
      %v5003 = vpop.f32.mrb[0].mxu0
      %5004 = vmatprep.mubr.bf16.mxu0 %v4930
      %5005 = vmatmul.mubr.bf16.gmra.mrb[0].mxu0 %v4846
      %v5006 = vpop.f32.mrb[0].mxu0
      %v5007 = vadd.f32 0.0, %v5006
      %v5008 = vpop.f32.mrb[0].mxu0
      %v5009 = vpop.f32.mrb[0].mxu0
      %v5010 = vadd.f32 0.0, %v5009
      %v5011 = vpop.f32.mrb[0].mxu0
      %5012 = vdwg.mxu0
      %v5025 = vcombine.high %v4967, %v4967
      %v5026 = vcombine.high %v4970, %v4970
      %v5027 = vcombine.high %v4975, %v4975
      %v5028 = vcombine.high %v4978, %v4978
      %v5029 = vcombine.high %v4983, %v4983
      %v5030 = vcombine.high %v4986, %v4986
      %v5031 = vcombine.high %v4991, %v4991
      %v5032 = vcombine.high %v4994, %v4994
      %v5033 = vcombine.high %v4999, %v4999
      %v5034 = vcombine.high %v5002, %v5002
      %v5035 = vcombine.high %v5007, %v5007
      %v5036 = vcombine.high %v5010, %v5010
      %v5041 = vcombine.low %v4967, %v5025
      %v5042 = vcombine.low %v5026, %v4975
      %v5043 = vcombine.low %v4978, %v5028
      %v5044 = vcombine.low %v5029, %v4986
      %v5045 = vcombine.low %v4991, %v5031
      %v5046 = vcombine.low %v5032, %v4999
      %v5047 = vcombine.low %v5002, %v5034
      %v5048 = vcombine.low %v5035, %v5010
      %vm5057 = vcmask 1043456
      %v5058 = vsel %vm5057, %v4970, -inf
      %v5059 = vmax.f32 %v5041, %v5058
      %v5060 = vrot.slane %v5059, 4
      %v5061 = vmax.f32 %v5059, %v5060
      %v5062 = vrot.slane %v5061, 2
      %v5063 = vmax.f32 %v5061, %v5062
      %v5064 = vrot.slane %v5063, 1
      %v5065 = vmax.f32 %v5063, %v5064
      %v5066 = vsel %vm5057, %v5027, -inf
      %v5067 = vmax.f32 %v5042, %v5066
      %v5068 = vrot.slane %v5067, 4
      %v5069 = vmax.f32 %v5067, %v5068
      %v5070 = vrot.slane %v5069, 2
      %v5071 = vmax.f32 %v5069, %v5070
      %v5072 = vrot.slane %v5071, 1
      %v5073 = vmax.f32 %v5071, %v5072
      %v5074 = vsel %vm5057, %v4983, -inf
      %v5075 = vmax.f32 %v5043, %v5074
      %v5076 = vrot.slane %v5075, 4
      %v5077 = vmax.f32 %v5075, %v5076
      %v5078 = vrot.slane %v5077, 2
      %v5079 = vmax.f32 %v5077, %v5078
      %v5080 = vrot.slane %v5079, 1
      %v5081 = vmax.f32 %v5079, %v5080
      %v5082 = vsel %vm5057, %v5030, -inf
      %v5083 = vmax.f32 %v5044, %v5082
      %v5084 = vrot.slane %v5083, 4
      %v5085 = vmax.f32 %v5083, %v5084
      %v5086 = vrot.slane %v5085, 2
      %v5087 = vmax.f32 %v5085, %v5086
      %v5088 = vrot.slane %v5087, 1
      %v5089 = vmax.f32 %v5087, %v5088
      %v5090 = vsel %vm5057, %v4994, -inf
      %v5091 = vmax.f32 %v5045, %v5090
      %v5092 = vrot.slane %v5091, 4
      %v5093 = vmax.f32 %v5091, %v5092
      %v5094 = vrot.slane %v5093, 2
      %v5095 = vmax.f32 %v5093, %v5094
      %v5096 = vrot.slane %v5095, 1
      %v5097 = vmax.f32 %v5095, %v5096
      %v5098 = vsel %vm5057, %v5033, -inf
      %v5099 = vmax.f32 %v5046, %v5098
      %v5100 = vrot.slane %v5099, 4
      %v5101 = vmax.f32 %v5099, %v5100
      %v5102 = vrot.slane %v5101, 2
      %v5103 = vmax.f32 %v5101, %v5102
      %v5104 = vrot.slane %v5103, 1
      %v5105 = vmax.f32 %v5103, %v5104
      %v5106 = vsel %vm5057, %v5007, -inf
      %v5107 = vmax.f32 %v5047, %v5106
      %v5108 = vrot.slane %v5107, 4
      %v5109 = vmax.f32 %v5107, %v5108
      %v5110 = vrot.slane %v5109, 2
      %v5111 = vmax.f32 %v5109, %v5110
      %v5112 = vrot.slane %v5111, 1
      %v5113 = vmax.f32 %v5111, %v5112
      %v5114 = vsel %vm5057, %v5036, -inf
      %v5115 = vmax.f32 %v5048, %v5114
      %v5116 = vrot.slane %v5115, 4
      %v5117 = vmax.f32 %v5115, %v5116
      %v5118 = vrot.slane %v5117, 2
      %v5119 = vmax.f32 %v5117, %v5118
      %v5120 = vrot.slane %v5119, 1
      %v5121 = vmax.f32 %v5119, %v5120
      %v5122 = vld [vmem:[%s6] sm:$0x1]
      %v5124 = vlaneseq
      %v5125 = vshrl.u32 %v5124, 7
      %v5126 = vsub.s32 0, %v5125
      %v5127 = vrot.slane %v5122, %v5126
      %v5129 = vadd.f32 %v5065, %v5127
      %v5130 = vadd.f32 %v5073, %v5127
      %v5131 = vadd.f32 %v5081, %v5127
      %v5132 = vadd.f32 %v5089, %v5127
      %v5133 = vadd.f32 %v5097, %v5127
      %v5134 = vadd.f32 %v5105, %v5127
      %v5135 = vadd.f32 %v5113, %v5127
      %v5136 = vadd.f32 %v5121, %v5127
      %v5137 = vmax.f32 %v5129, 0.0
      %v5138 = vmax.f32 %v5130, 0.0
      %v5139 = vmax.f32 %v5131, 0.0
      %v5140 = vmax.f32 %v5132, 0.0
      %v5141 = vmax.f32 %v5133, 0.0
      %v5142 = vmax.f32 %v5134, 0.0
      %v5143 = vmax.f32 %v5135, 0.0
      %v5144 = vmax.f32 %v5136, 0.0
      %v5153 = vrot.slane %v2030, 7
      %vm5154 = vcmask 1041409
      %v5155 = vsel %vm5154, %v5153, %v2029
      %v5156 = vrot.slane %v2031, 6
      %vm5157 = vcmask 1042434
      %v5158 = vsel %vm5157, %v5156, %v5155
      %v5159 = vrot.slane %v2032, 5
      %vm5160 = vcmask 1043459
      %v5161 = vsel %vm5160, %v5159, %v5158
      %v5162 = vrot.slane %v2033, 4
      %vm5163 = vcmask 1044484
      %v5164 = vsel %vm5163, %v5162, %v5161
      %v5165 = vrot.slane %v2034, 3
      %vm5166 = vcmask 1045509
      %v5167 = vsel %vm5166, %v5165, %v5164
      %v5168 = vrot.slane %v2035, 2
      %vm5169 = vcmask 1046534
      %v5170 = vsel %vm5169, %v5168, %v5167
      %v5171 = vrot.slane %v2036, 1
      %vm5172 = vcmask 1047559
      %v5173 = vsel %vm5172, %v5171, %v5170
      %v5183 = vrot.slane %v4569, 7
      %v5184 = vsel %vm5154, %v5183, %v4568
      %v5185 = vrot.slane %v4570, 6
      %v5186 = vsel %vm5157, %v5185, %v5184
      %v5187 = vrot.slane %v4571, 5
      %v5188 = vsel %vm5160, %v5187, %v5186
      %v5189 = vrot.slane %v4572, 4
      %v5190 = vsel %vm5163, %v5189, %v5188
      %v5191 = vrot.slane %v4573, 3
      %v5192 = vsel %vm5166, %v5191, %v5190
      %v5193 = vrot.slane %v4574, 2
      %v5194 = vsel %vm5169, %v5193, %v5192
      %v5195 = vrot.slane %v4575, 1
      %v5196 = vsel %vm5172, %v5195, %v5194
      %v5206 = vrot.slane %v5138, 7
      %v5207 = vsel %vm5154, %v5206, %v5137
      %v5208 = vrot.slane %v5139, 6
      %v5209 = vsel %vm5157, %v5208, %v5207
      %v5210 = vrot.slane %v5140, 5
      %v5211 = vsel %vm5160, %v5210, %v5209
      %v5212 = vrot.slane %v5141, 4
      %v5213 = vsel %vm5163, %v5212, %v5211
      %v5214 = vrot.slane %v5142, 3
      %v5215 = vsel %vm5166, %v5214, %v5213
      %v5216 = vrot.slane %v5143, 2
      %v5217 = vsel %vm5169, %v5216, %v5215
      %v5218 = vrot.slane %v5144, 1
      %v5219 = vsel %vm5172, %v5218, %v5217
      %v5221 = vpack.c.bf16 %v5173, %v5173
      %v5222 = vpack.c.bf16 %v5196, %v5196
      %v5223 = vpack.c.bf16 %v5219, %v5219
      %v5224 = vld [vmem:[%s7] sm:$0xf]
      %v5225 = vld [vmem:[%s7 + $0x4] sm:$0xf]
      %v5226 = vld [vmem:[%s7 + $0x8] sm:$0xf]
      %v5227 = vld [vmem:[%s7 + $0xc] sm:$0xf]
      %v5228 = vld [vmem:[%s7 + $0x10] sm:$0xf]
      %v5229 = vld [vmem:[%s7 + $0x14] sm:$0xf]
      %v5230 = vld [vmem:[%s7 + $0x18] sm:$0xf]
      %v5231 = vld [vmem:[%s7 + $0x1c] sm:$0xf]
      %v5232 = vld [vmem:[%s7 + $0x20] sm:$0xf]
      %v5233 = vld [vmem:[%s7 + $0x24] sm:$0xf]
      %v5234 = vld [vmem:[%s7 + $0x28] sm:$0xf]
      %v5235 = vld [vmem:[%s7 + $0x2c] sm:$0xf]
      %v5236 = vld [vmem:[%s7 + $0x30] sm:$0xf]
      %v5237 = vld [vmem:[%s7 + $0x34] sm:$0xf]
      %v5238 = vld [vmem:[%s7 + $0x38] sm:$0xf]
      %v5239 = vld [vmem:[%s7 + $0x3c] sm:$0xf]
      %v5240 = vld [vmem:[%s7 + $0x40] sm:$0xf]
      %v5241 = vld [vmem:[%s7 + $0x44] sm:$0xf]
      %v5242 = vld [vmem:[%s7 + $0x48] sm:$0xf]
      %v5243 = vld [vmem:[%s7 + $0x4c] sm:$0xf]
      %v5244 = vld [vmem:[%s7 + $0x50] sm:$0xf]
      %v5245 = vld [vmem:[%s7 + $0x54] sm:$0xf]
      %v5246 = vld [vmem:[%s7 + $0x58] sm:$0xf]
      %v5247 = vld [vmem:[%s7 + $0x5c] sm:$0xf]
      %v5248 = vld [vmem:[%s7 + $0x60] sm:$0xf]
      %v5249 = vld [vmem:[%s7 + $0x64] sm:$0xf]
      %v5250 = vld [vmem:[%s7 + $0x68] sm:$0xf]
      %v5251 = vld [vmem:[%s7 + $0x6c] sm:$0xf]
      %v5252 = vld [vmem:[%s7 + $0x70] sm:$0xf]
      %v5253 = vld [vmem:[%s7 + $0x74] sm:$0xf]
      %v5254 = vld [vmem:[%s7 + $0x78] sm:$0xf]
      %v5255 = vld [vmem:[%s7 + $0x7c] sm:$0xf]
      %v5256 = vld [vmem:[%s7 + $0x80] sm:$0xf]
      %v5257 = vld [vmem:[%s7 + $0x84] sm:$0xf]
      %v5258 = vld [vmem:[%s7 + $0x88] sm:$0xf]
      %v5259 = vld [vmem:[%s7 + $0x8c] sm:$0xf]
      %v5260 = vld [vmem:[%s7 + $0x90] sm:$0xf]
      %v5261 = vld [vmem:[%s7 + $0x94] sm:$0xf]
      %v5262 = vld [vmem:[%s7 + $0x98] sm:$0xf]
      %v5263 = vld [vmem:[%s7 + $0x9c] sm:$0xf]
      %v5264 = vld [vmem:[%s7 + $0xa0] sm:$0xf]
      %v5265 = vld [vmem:[%s7 + $0xa4] sm:$0xf]
      %v5266 = vld [vmem:[%s7 + $0xa8] sm:$0xf]
      %v5267 = vld [vmem:[%s7 + $0xac] sm:$0xf]
      %v5268 = vld [vmem:[%s7 + $0xb0] sm:$0xf]
      %v5269 = vld [vmem:[%s7 + $0xb4] sm:$0xf]
      %v5270 = vld [vmem:[%s7 + $0xb8] sm:$0xf]
      %v5271 = vld [vmem:[%s7 + $0xbc] sm:$0xf]
      %v5272 = vld [vmem:[%s8] sm:$0x1]
      %v5274 = vlaneseq
      %v5275 = vshrl.u32 %v5274, 7
      %v5276 = vsub.s32 0, %v5275
      %v5277 = vrot.slane %v5272, %v5276
      %v5327 = vunpack.c.l.b16 %v5224
      %v5328 = vunpack.c.l.b16 %v5225
      %v5329 = vunpack.c.l.b16 %v5226
      %v5330 = vunpack.c.l.b16 %v5227
      %v5331 = vunpack.c.l.b16 %v5228
      %v5332 = vunpack.c.l.b16 %v5229
      %v5333 = vunpack.c.l.b16 %v5230
      %v5334 = vunpack.c.l.b16 %v5231
      %v5335 = vunpack.c.l.b16 %v5232
      %v5336 = vunpack.c.l.b16 %v5233
      %v5337 = vunpack.c.l.b16 %v5234
      %v5338 = vunpack.c.l.b16 %v5235
      %v5339 = vunpack.c.l.b16 %v5236
      %v5340 = vunpack.c.l.b16 %v5237
      %v5341 = vunpack.c.l.b16 %v5238
      %v5342 = vunpack.c.l.b16 %v5239
      %v5343 = vunpack.c.l.b16 %v5240
      %v5344 = vunpack.c.l.b16 %v5241
      %v5345 = vunpack.c.l.b16 %v5242
      %v5346 = vunpack.c.l.b16 %v5243
      %v5347 = vunpack.c.l.b16 %v5244
      %v5348 = vunpack.c.l.b16 %v5245
      %v5349 = vunpack.c.l.b16 %v5246
      %v5350 = vunpack.c.l.b16 %v5247
      %v5351 = vunpack.c.l.b16 %v5248
      %v5352 = vunpack.c.l.b16 %v5249
      %v5353 = vunpack.c.l.b16 %v5250
      %v5354 = vunpack.c.l.b16 %v5251
      %v5355 = vunpack.c.l.b16 %v5252
      %v5356 = vunpack.c.l.b16 %v5253
      %v5357 = vunpack.c.l.b16 %v5254
      %v5358 = vunpack.c.l.b16 %v5255
      %v5359 = vunpack.c.l.b16 %v5256
      %v5360 = vunpack.c.l.b16 %v5257
      %v5361 = vunpack.c.l.b16 %v5258
      %v5362 = vunpack.c.l.b16 %v5259
      %v5363 = vunpack.c.l.b16 %v5260
      %v5364 = vunpack.c.l.b16 %v5261
      %v5365 = vunpack.c.l.b16 %v5262
      %v5366 = vunpack.c.l.b16 %v5263
      %v5367 = vunpack.c.l.b16 %v5264
      %v5368 = vunpack.c.l.b16 %v5265
      %v5369 = vunpack.c.l.b16 %v5266
      %v5370 = vunpack.c.l.b16 %v5267
      %v5371 = vunpack.c.l.b16 %v5268
      %v5372 = vunpack.c.l.b16 %v5269
      %v5373 = vunpack.c.l.b16 %v5270
      %v5374 = vunpack.c.l.b16 %v5271
      %v5375 = vpack.c.b16 %v5328, %v5327
      %v5376 = vpack.c.b16 %v5330, %v5329
      %v5377 = vpack.c.b16 %v5332, %v5331
      %v5378 = vpack.c.b16 %v5334, %v5333
      %v5379 = vpack.c.b16 %v5336, %v5335
      %v5380 = vpack.c.b16 %v5338, %v5337
      %v5381 = vpack.c.b16 %v5340, %v5339
      %v5382 = vpack.c.b16 %v5342, %v5341
      %v5383 = vpack.c.b16 %v5344, %v5343
      %v5384 = vpack.c.b16 %v5346, %v5345
      %v5385 = vpack.c.b16 %v5348, %v5347
      %v5386 = vpack.c.b16 %v5350, %v5349
      %v5387 = vpack.c.b16 %v5352, %v5351
      %v5388 = vpack.c.b16 %v5354, %v5353
      %v5389 = vpack.c.b16 %v5356, %v5355
      %v5390 = vpack.c.b16 %v5358, %v5357
      %v5391 = vpack.c.b16 %v5360, %v5359
      %v5392 = vpack.c.b16 %v5362, %v5361
      %v5393 = vpack.c.b16 %v5364, %v5363
      %v5394 = vpack.c.b16 %v5366, %v5365
      %v5395 = vpack.c.b16 %v5368, %v5367
      %v5396 = vpack.c.b16 %v5370, %v5369
      %v5397 = vpack.c.b16 %v5372, %v5371
      %v5398 = vpack.c.b16 %v5374, %v5373
      %5423 = vmatprep.subr.bf16.mxu0 0
      %5424 = vmatpush1.bf16.msra.mxu0 %v5375
      %5425 = vmatprep.subr.bf16.mxu0 0
      %5426 = vmatpush1.bf16.msra.mxu0 %v5376
      %5427 = vmatprep.subr.bf16.mxu0 0
      %5428 = vmatpush1.bf16.msra.mxu0 %v5377
      %5429 = vmatprep.subr.bf16.mxu0 0
      %5430 = vmatpush1.bf16.msra.mxu0 %v5378
      %5431 = vmatprep.subr.bf16.mxu0 0
      %5432 = vmatpush1.bf16.msra.mxu0 %v5379
      %5433 = vmatprep.subr.bf16.mxu0 0
      %5434 = vmatpush1.bf16.msra.mxu0 %v5380
      %5435 = vmatprep.subr.bf16.mxu0 0
      %5436 = vmatpush1.bf16.msra.mxu0 %v5381
      %5437 = vmatprep.subr.bf16.mxu0 0
      %5438 = vmatpush1.bf16.msra.mxu0 %v5382
      %5439 = vmatprep.subr.bf16.mxu0 0
      %5440 = vmatpush1.bf16.msra.mxu0 %v5383
      %5441 = vmatprep.subr.bf16.mxu0 0
      %5442 = vmatpush1.bf16.msra.mxu0 %v5384
      %5443 = vmatprep.subr.bf16.mxu0 0
      %5444 = vmatpush1.bf16.msra.mxu0 %v5385
      %5445 = vmatprep.subr.bf16.mxu0 0
      %5446 = vmatpush1.bf16.msra.mxu0 %v5386
      %5447 = vmatprep.subr.bf16.mxu0 0
      %5448 = vmatpush1.bf16.msra.mxu0 %v5387
      %5449 = vmatprep.subr.bf16.mxu0 0
      %5450 = vmatpush1.bf16.msra.mxu0 %v5388
      %5451 = vmatprep.subr.bf16.mxu0 0
      %5452 = vmatpush1.bf16.msra.mxu0 %v5389
      %5453 = vmatprep.subr.bf16.mxu0 0
      %5454 = vmatpush1.bf16.msra.mxu0 %v5390
      %5455 = vmatprep.mubr.bf16.mxu0 %v5222
      %5456 = vmatmul.mubr.bf16.gmra.mrb[0].mxu0 %v5221
      %v5457 = vpop.f32.mrb[0].mxu0
      %v5458 = vadd.f32 %v5277, %v5457
      %v5459 = vpop.f32.mrb[0].mxu0
      %v5460 = vpop.f32.mrb[0].mxu0
      %v5461 = vpop.f32.mrb[0].mxu0
      %5462 = vdwg.mxu0
      %5463 = vmatprep.subr.bf16.mxu0 0
      %5464 = vmatpush1.bf16.msra.mxu0 %v5391
      %5465 = vmatprep.subr.bf16.mxu0 0
      %5466 = vmatpush1.bf16.msra.mxu0 %v5392
      %5467 = vmatprep.subr.bf16.mxu0 0
      %5468 = vmatpush1.bf16.msra.mxu0 %v5393
      %5469 = vmatprep.subr.bf16.mxu0 0
      %5470 = vmatpush1.bf16.msra.mxu0 %v5394
      %5471 = vmatprep.subr.bf16.mxu0 0
      %5472 = vmatpush1.bf16.msra.mxu0 %v5395
      %5473 = vmatprep.subr.bf16.mxu0 0
      %5474 = vmatpush1.bf16.msra.mxu0 %v5396
      %5475 = vmatprep.subr.bf16.mxu0 0
      %5476 = vmatpush1.bf16.msra.mxu0 %v5397
      %5477 = vmatprep.subr.bf16.mxu0 0
      %5478 = vmatpush1.bf16.msra.mxu0 %v5398
      %5479 = vmatprep.subr.bf16.mxu0 0
      %5480 = vmatpush1.bf16.msra.mxu0 0
      %5481 = vmatprep.subr.bf16.mxu0 0
      %5482 = vmatpush1.bf16.msra.mxu0 0
      %5483 = vmatprep.subr.bf16.mxu0 0
      %5484 = vmatpush1.bf16.msra.mxu0 0
      %5485 = vmatprep.subr.bf16.mxu0 0
      %5486 = vmatpush1.bf16.msra.mxu0 0
      %5487 = vmatprep.subr.bf16.mxu0 0
      %5488 = vmatpush1.bf16.msra.mxu0 0
      %5489 = vmatprep.subr.bf16.mxu0 0
      %5490 = vmatpush1.bf16.msra.mxu0 0
      %5491 = vmatprep.subr.bf16.mxu0 0
      %5492 = vmatpush1.bf16.msra.mxu0 0
      %5493 = vmatprep.subr.bf16.mxu0 0
      %5494 = vmatpush1.bf16.msra.mxu0 0
      %5495 = vmatprep.mubr.bf16.mxu0 0
      %5496 = vmatmul.mubr.bf16.gmra.mrb[0].mxu0 %v5223
      %v5497 = vpop.f32.mrb[0].mxu0
      %v5498 = vadd.f32 %v5458, %v5497
      %v5499 = vpop.f32.mrb[0].mxu0
      %v5500 = vpop.f32.mrb[0].mxu0
      %v5501 = vpop.f32.mrb[0].mxu0
      %5502 = vdwg.mxu0
      %5503 = vst [vmem:[%s335] sm:$0xff] %v5498
      %p5504 = scmp.lt.s32.totalorder %s20, 1
      %s5505 = scalar_select %p5504, %s20, 1
      %s5506 = smul.addr %s5505, 8
      %s5507 = scalar_lea.vmem %s9, %s5506
      // Predicated region
      $region57: #{textcnn_forward.1} parent=55 // pred_check
        %p5508 = pneg %p232
      $region58: #{textcnn_forward.1} parent=55 // pred_check_branch
        %5510 = sbr.rel (%p5508) target = $region60
      $region59: #{textcnn_forward.1} parent=55 // pred_region
        _
      $region60: #{textcnn_forward.1} parent=55 // pred_fallthru
        _
    $region56: #{textcnn_forward.1} parent=5 // pred_fallthru
      _
    %p5511 = scmp.le.s32.totalorder 2, %s15
    // Predicated region
    $region61: #{textcnn_forward.1} parent=5 // pred_check
      %p5512 = pneg %p5511
    $region62: #{textcnn_forward.1} parent=5 // pred_check_branch
      %5514 = sbr.rel (%p5512) target = $region64
    $region63: #{textcnn_forward.1} parent=5 // pred_region
      %s5515 = ssub.s32 %s15, 2
      // Predicated region
      $region65: #{textcnn_forward.1} parent=63 // pred_check
        %p5516 = pneg %p238
      $region66: #{textcnn_forward.1} parent=63 // pred_check_branch
        %5518 = sbr.rel (%p5516) target = $region68
      $region67: #{textcnn_forward.1} parent=63 // pred_region
        %p5519 = scmp.lt.s32.totalorder %s21, 1
        %s5520 = scalar_select %p5519, %s21, 1
        %s5521 = smul.addr %s5520, 8
        %s5522 = scalar_lea.vmem %s9, %s5521
      $region68: #{textcnn_forward.1} parent=63 // pred_fallthru
        _
    $region64: #{textcnn_forward.1} parent=5 // pred_fallthru
      _
  $region6: #{textcnn_forward.1} parent=0 // loop_footer
    %s19 = sadd.s32 1, %s15
  $region7: #{textcnn_forward.1} parent=0 // loop_footer_branch
    %14 = sbr.rel target = $region3
  $region8: #{textcnn_forward.1} parent=0 // loop_exit
    _

</llo_original>
